<compile_context>
chip_gen: v5e
topology: v5e:2x2
jax: 0.10.0
libtpu: 0.0.40
codegen_flags: <defaults>
</compile_context>

<pallas_src>
import jax
import jax.numpy as jnp
from jax.experimental import pallas as pl
from jax.experimental.pallas import tpu as pltpu

EPS = 1e-5


def attn_readout_kernel(
    feat_ref,   # (Bt, T, D+2) bf16: [:, :, :D] raw feat, [:, :, D] mask, [:, :, D+1] posw
    il_ref,     # (Bt, 2D)     bf16: [intend | last-node raw features]
    wu_ref,     # (D+2, H)     bf16: BN-scale-folded fc_u weight, zero rows for mask/posw cols
    bu_ref,     # (1, H)       f32 : BN shift @ wu
    wvi_ref,    # (2D, H)      bf16: [wv ; BN-scale-folded wi]
    bvi_ref,    # (1, H)       f32 : bv + bi + BN shift @ wi
    we_ref,     # (1, H)       f32 : fc_e weight (row)
    wout_ref,   # (D+2, O_pad) f32 : BN-scale-folded fc_out weight, zero rows for mask/posw cols
    so_ref,     # (1, O_pad)   f32 : BN shift @ wout
    out_ref,    # (2*Bt, O_pad) f32: rows [0:Bt] attention readout, [Bt:2Bt] position readout
):
    Bt, T, DE = feat_ref.shape
    H = wu_ref.shape[1]
    D = il_ref.shape[1] // 2

    feat = feat_ref[...]                                    # (Bt, T, DE) bf16
    mask = feat[:, :, D:D + 1].astype(jnp.float32)          # (Bt, T, 1) validity (exact 0/1)
    posw = feat[:, :, D + 1:D + 2].astype(jnp.float32)      # (Bt, T, 1) position weight (0 on pad)

    # fc_u over all Bt*T nodes at once.  BN scale folded into wu, BN shift into bu;
    # the mask/posw columns of feat hit zero rows of wu and contribute nothing.
    feat_u = jnp.dot(feat.reshape(Bt * T, DE), wu_ref[...],
                     preferred_element_type=jnp.float32) + bu_ref[...]        # (Bt*T, H)

    # fc_v(intend) + fc_i(BN(last)) fused into a single matmul on [intend | last_raw].
    vl = jnp.dot(il_ref[...], wvi_ref[...],
                 preferred_element_type=jnp.float32) + bvi_ref[...]           # (Bt, H)

    s = jax.nn.sigmoid(feat_u.reshape(Bt, T, H) + vl[:, None, :])             # (Bt, T, H)

    # fc_e (N=1 matmul) as a VPU broadcast-multiply + lane reduction (keeps the MXU free).
    e = jnp.sum(s * we_ref[...], axis=-1, keepdims=True)                      # (Bt, T, 1)

    # Masked per-graph softmax over T (segment_softmax).
    e_m = jnp.where(mask > 0, e, jnp.float32(-1e30))
    e_max = jnp.max(e_m, axis=1, keepdims=True)                               # (Bt, 1, 1)
    p = jnp.exp(e_m - e_max) * mask                                           # zeros on padding
    denom = jnp.sum(p, axis=1, keepdims=True)                                 # (Bt, 1, 1)
    # Valid graphs always have denom >= 1 (their max element contributes exp(0)=1); flooring
    # at 1.0 only affects all-padding dummy graphs (whose rows are discarded on the host).
    alpha = p * (1.0 / jnp.maximum(denom, jnp.float32(1.0)))                  # (Bt, T, 1), exact recip

    # Dual weighted readout: VPU multiply + sublane reduction over T (no tiny batched MXU ops).
    red_a = jnp.sum(alpha * feat, axis=1)                                     # (Bt, DE) f32
    red_p = jnp.sum(posw * feat, axis=1)                                      # (Bt, DE) f32
    red = jnp.concatenate([red_a, red_p], axis=0)                             # (2*Bt, DE)
    wsum = jnp.concatenate([jnp.sum(alpha, axis=1),
                            jnp.sum(posw, axis=1)], axis=0)                   # (2*Bt, 1)

    # fc_out (BN scale folded into wout); BN shift enters through the weight sums.
    out = jnp.dot(red, wout_ref[...], preferred_element_type=jnp.float32)     # (2*Bt, O_pad)
    out_ref[...] = out + wsum * so_ref[...]                                   # lane-dense store


def _choose_bt(B, T, DE, O_pad, itemsize, *, target_steps=4, vmem_budget=20 << 20):
    """Graphs per grid step: as large as the VMEM budget allows while keeping >= target_steps
    grid steps (so the 'parallel' axis can split across v7x's two TensorCores)."""
    if B <= 8:
        return max(B, 1)
    per_graph = 2 * (T * DE * itemsize + 2 * DE * itemsize + 2 * O_pad * 4)   # double-buffered streams
    bt = min(pl.cdiv(B, target_steps), max(8, vmem_budget // per_graph))
    return max(8, 8 * (bt // 8))                                              # sublane-aligned blocks


def attn_readout(feat_pad, mask, posw, intend, last_feat, params, *,
                 bt=None, compute_dtype=jnp.bfloat16):
    """AttnReadout forward on a padded-dense batch of graphs.

    feat_pad : (B, T, D) raw node features (padding rows are masked out)
    mask     : (B, T, 1) 1.0 on valid nodes, 0.0 on padding
    posw     : (B, T, 1) position weights, 0.0 on padding
    intend   : (B, D)    per-graph intent vectors
    last_feat: (B, D)    raw features of each graph's last node
    Returns (rst, position_rst), each (B, O), float32.
    """
    B, T, D = feat_pad.shape
    H = params["wu"].shape[1]
    O = params["wout"].shape[1]
    O_pad = 128 * pl.cdiv(O, 128)                         # lane-dense output width
    DE = D + 2

    # ---- host-side folding: BatchNorm1d (eval) -> scale/shift folded into the weights ----
    scale = params["gamma"] * jax.lax.rsqrt(params["var"] + EPS)     # (1, D)
    shift = params["beta"] - params["mean"] * scale                  # (1, D)
    wout_p = jnp.pad(params["wout"], ((0, 0), (0, O_pad - O)))       # (D, O_pad)

    wu_ext = jnp.pad(scale.reshape(D, 1) * params["wu"],
                     ((0, 2), (0, 0))).astype(compute_dtype)         # (D+2, H)
    bu = (shift @ params["wu"]).astype(jnp.float32)                  # (1, H)
    wvi = jnp.concatenate([params["wv"], scale.reshape(D, 1) * params["wi"]],
                          axis=0).astype(compute_dtype)              # (2D, H)
    bvi = (params["bv"] + params["bi"] + shift @ params["wi"]).astype(jnp.float32)  # (1, H)
    we_row = params["we"].reshape(1, H).astype(jnp.float32)          # (1, H)
    wout_ext = jnp.pad(scale.reshape(D, 1) * wout_p,
                       ((0, 2), (0, 0))).astype(jnp.float32)         # (D+2, O_pad), f32 (tiny matmul)
    so = (shift @ wout_p).astype(jnp.float32)                        # (1, O_pad)

    # ---- pack mask/posw as two extra feature lanes (they ride in lanes DMA'd anyway) ----
    feat_ext = jnp.concatenate([feat_pad, mask, posw], axis=-1)      # (B, T, D+2)

    # ---- pad T to a bf16 sublane-packing multiple so in-kernel reshapes are layout-preserving ----
    T_pad = 16 * pl.cdiv(T, 16)
    if T_pad != T:
        feat_ext = jnp.pad(feat_ext, ((0, 0), (0, T_pad - T), (0, 0)))
    feat_ext = feat_ext.astype(compute_dtype)
    il = jnp.concatenate([intend, last_feat], axis=-1).astype(compute_dtype)  # (B, 2D)

    # ---- choose graphs-per-step and pad the batch ----
    itemsize = jnp.zeros((), compute_dtype).dtype.itemsize
    if bt is None:
        bt = _choose_bt(B, T_pad, DE, O_pad, itemsize)
    bt = max(1, min(int(bt), max(B, 1)))
    if bt < B:                                   # multi-step: keep blocks sublane-aligned
        bt = 8 * pl.cdiv(bt, 8)
    num_steps = pl.cdiv(B, bt)
    B_pad = num_steps * bt
    if B_pad != B:
        feat_ext = jnp.pad(feat_ext, ((0, B_pad - B), (0, 0), (0, 0)))
        il = jnp.pad(il, ((0, B_pad - B), (0, 0)))

    in_specs = [
        pl.BlockSpec((bt, T_pad, DE), lambda g: (g, 0, 0)),   # node stream (feat|mask|posw)
        pl.BlockSpec((bt, 2 * D), lambda g: (g, 0)),          # [intend | last_raw]
        pl.BlockSpec((DE, H), lambda g: (0, 0)),              # wu (BN-folded, extended)
        pl.BlockSpec((1, H), lambda g: (0, 0)),               # bu
        pl.BlockSpec((2 * D, H), lambda g: (0, 0)),           # wvi
        pl.BlockSpec((1, H), lambda g: (0, 0)),               # bvi
        pl.BlockSpec((1, H), lambda g: (0, 0)),               # we row
        pl.BlockSpec((DE, O_pad), lambda g: (0, 0)),          # wout (BN-folded, extended)
        pl.BlockSpec((1, O_pad), lambda g: (0, 0)),           # shift @ wout
    ]
    out_spec = pl.BlockSpec((2 * bt, O_pad), lambda g: (g, 0))
    out_shape = jax.ShapeDtypeStruct((2 * B_pad, O_pad), jnp.float32)

    # Streamed VMEM estimate (double-buffered); raise the scoped limit only if needed.
    stream_bytes = 2 * (bt * T_pad * DE * itemsize + bt * 2 * D * itemsize + 2 * bt * O_pad * 4)
    const_bytes = ((wu_ext.size + wvi.size) * itemsize
                   + (bu.size + bvi.size + we_row.size + wout_ext.size + so.size) * 4)
    cp_kwargs = dict(dimension_semantics=("parallel",))       # graphs independent -> megacore split
    if stream_bytes + const_bytes > (28 << 20):
        cp_kwargs["vmem_limit_bytes"] = int(min((stream_bytes + const_bytes) * 5 // 4, 60 << 20))

    out = pl.pallas_call(
        attn_readout_kernel,
        grid=(num_steps,),
        in_specs=in_specs,
        out_specs=out_spec,
        out_shape=out_shape,
        compiler_params=pltpu.CompilerParams(**cp_kwargs),
    )(feat_ext, il, wu_ext, bu, wvi, bvi, we_row, wout_ext, so)

    out = out.reshape(num_steps, 2, bt, O_pad)
    rst = out[:, 0].reshape(B_pad, O_pad)[:B, :O]
    position_rst = out[:, 1].reshape(B_pad, O_pad)[:B, :O]
    return rst, position_rst


def reference(feat, intend, last_nodes, pos_w, seg_ids, num_segments, params):
    """Pure-JAX f32 reference on the flat (segment) representation — module semantics."""
    gamma, beta, mean, var = params["gamma"], params["beta"], params["mean"], params["var"]
    feat_n = (feat - mean) * jax.lax.rsqrt(var + EPS) * gamma + beta
    feat_u = feat_n @ params["wu"]
    feat_v = intend @ params["wv"] + params["bv"]                  # (B, H)
    feat_l = feat_n[last_nodes] @ params["wi"] + params["bi"]      # (B, H)
    e = jax.nn.sigmoid(feat_u + feat_v[seg_ids] + feat_l[seg_ids]) @ params["we"]  # (N, 1)
    seg_max = jax.ops.segment_max(e, seg_ids, num_segments)
    p = jnp.exp(e - seg_max[seg_ids])
    denom = jax.ops.segment_sum(p, seg_ids, num_segments)
    alpha = p / denom[seg_ids]
    rst = jax.ops.segment_sum(feat_n * alpha, seg_ids, num_segments) @ params["wout"]
    prst = jax.ops.segment_sum(feat_n * pos_w[:, None], seg_ids, num_segments) @ params["wout"]
    return rst, prst


if __name__ == "__main__":
    # sizes: input_dim, hidden_dim, output_dim (fc_out active since O != D)
    D, H, O = 16, 32, 24
    B = 96                     # graphs in the DGL batch
    MAX_NODES = 13

    key = jax.random.PRNGKey(0)
    ks = jax.random.split(key, 20)

    # per-graph node counts (>= 1); pin one graph to the max so T is deterministic
    sizes = jax.random.randint(ks[0], (B,), 1, MAX_NODES + 1).at[0].set(MAX_NODES)
    offsets = jnp.cumsum(sizes) - sizes
    N = int(jnp.sum(sizes))
    last_nodes = offsets + sizes - 1
    seg_ids = jnp.repeat(jnp.arange(B), sizes, total_repeat_length=N)

    feat = jax.random.normal(ks[1], (N, D), jnp.float32)
    intend = jax.random.normal(ks[2], (B, D), jnp.float32)
    pos_w = jax.random.uniform(ks[3], (N,), jnp.float32)

    params = {
        "gamma": 1.0 + 0.1 * jax.random.normal(ks[4], (1, D), jnp.float32),
        "beta": 0.1 * jax.random.normal(ks[5], (1, D), jnp.float32),
        "mean": 0.1 * jax.random.normal(ks[6], (1, D), jnp.float32),
        "var": 1.0 + 0.1 * jax.random.uniform(ks[7], (1, D), jnp.float32),
        "wu": jax.random.normal(ks[8], (D, H), jnp.float32) / jnp.sqrt(D),
        "wv": jax.random.normal(ks[9], (D, H), jnp.float32) / jnp.sqrt(D),
        "bv": 0.1 * jax.random.normal(ks[10], (1, H), jnp.float32),
        "wi": jax.random.normal(ks[11], (D, H), jnp.float32) / jnp.sqrt(D),
        "bi": 0.1 * jax.random.normal(ks[12], (1, H), jnp.float32),
        "we": jax.random.normal(ks[13], (H, 1), jnp.float32) / jnp.sqrt(H),
        "wout": jax.random.normal(ks[14], (D, O), jnp.float32) / jnp.sqrt(D),
    }

    # glue: flat segment layout -> padded dense (B, T, D) + mask/posw + per-graph gathers
    T = int(jnp.max(sizes))
    pos = jnp.arange(T)
    valid = pos[None, :] < sizes[:, None]                               # (B, T)
    gidx = jnp.minimum(offsets[:, None] + pos[None, :], N - 1)
    feat_pad = jnp.where(valid[:, :, None], feat[gidx], 0.0)            # (B, T, D)
    mask = valid.astype(jnp.float32)[:, :, None]                        # (B, T, 1)
    posw_pad = jnp.where(valid, pos_w[gidx], 0.0)[:, :, None]           # (B, T, 1)
    last_feat = feat[last_nodes]                                        # (B, D) raw; BN folded in weights

    rst, pos_rst = attn_readout(feat_pad, mask, posw_pad, intend, last_feat, params)
    jax.block_until_ready((rst, pos_rst))

    rst_ref, pos_rst_ref = reference(feat, intend, last_nodes, pos_w, seg_ids, B, params)
    # Tolerance reflects bf16 storage of the node-feature stream and fc_u/fc_vi weights
    # (accumulation, softmax and fc_out are f32; the softmax reciprocal is exact).
    assert jnp.allclose(rst, rst_ref, rtol=5e-2, atol=5e-2), "rst mismatch"
    assert jnp.allclose(pos_rst, pos_rst_ref, rtol=5e-2, atol=5e-2), "position_rst mismatch"

    print("KERNEL_OK")
</pallas_src>

<mosaic_0001>
module attributes {stable_mosaic.version = 11 : i64} {
  func.func @attn_readout_kernel(%arg0: i32, %arg1: memref<24x16x18xbf16, #tpu.memory_space<vmem>>, %arg2: memref<24x32xbf16, #tpu.memory_space<vmem>>, %arg3: memref<18x32xbf16, #tpu.memory_space<vmem>>, %arg4: memref<1x32xf32, #tpu.memory_space<vmem>>, %arg5: memref<32x32xbf16, #tpu.memory_space<vmem>>, %arg6: memref<1x32xf32, #tpu.memory_space<vmem>>, %arg7: memref<1x32xf32, #tpu.memory_space<vmem>>, %arg8: memref<18x128xf32, #tpu.memory_space<vmem>>, %arg9: memref<1x128xf32, #tpu.memory_space<vmem>>, %arg10: memref<48x128xf32, #tpu.memory_space<vmem>>) attributes {dimension_semantics = [#tpu.dimension_semantics<parallel>], iteration_bounds = array<i64: 4>, scalar_prefetch = 0 : i64, scratch_operands = 0 : i64, tpu.core_type = #tpu.core_type<tc>, window_params = [{transform_indices = @transform_0, window_bounds = array<i64: 24, 16, 18>}, {transform_indices = @transform_1, window_bounds = array<i64: 24, 32>}, {pipeline_mode = #tpu.pipeline_mode<synchronous>, transform_indices = @transform_2, window_bounds = array<i64: 18, 32>}, {pipeline_mode = #tpu.pipeline_mode<synchronous>, transform_indices = @transform_3, window_bounds = array<i64: 1, 32>}, {pipeline_mode = #tpu.pipeline_mode<synchronous>, transform_indices = @transform_4, window_bounds = array<i64: 32, 32>}, {pipeline_mode = #tpu.pipeline_mode<synchronous>, transform_indices = @transform_5, window_bounds = array<i64: 1, 32>}, {pipeline_mode = #tpu.pipeline_mode<synchronous>, transform_indices = @transform_6, window_bounds = array<i64: 1, 32>}, {pipeline_mode = #tpu.pipeline_mode<synchronous>, transform_indices = @transform_7, window_bounds = array<i64: 18, 128>}, {pipeline_mode = #tpu.pipeline_mode<synchronous>, transform_indices = @transform_8, window_bounds = array<i64: 1, 128>}, {transform_indices = @transform_9, window_bounds = array<i64: 48, 128>}]} {
    %c0 = arith.constant 0 : index
    %c0_0 = arith.constant 0 : index
    %c0_1 = arith.constant 0 : index
    %0 = vector.load %arg1[%c0, %c0_0, %c0_1] : memref<24x16x18xbf16, #tpu.memory_space<vmem>>, vector<24x16x18xbf16>
    %1 = vector.extract_strided_slice %0 {offsets = [0, 0, 16], sizes = [24, 16, 1], strides = [1, 1, 1]} : vector<24x16x18xbf16> to vector<24x16x1xbf16>
    %2 = arith.extf %1 : vector<24x16x1xbf16> to vector<24x16x1xf32>
    %3 = vector.extract_strided_slice %0 {offsets = [0, 0, 17], sizes = [24, 16, 1], strides = [1, 1, 1]} : vector<24x16x18xbf16> to vector<24x16x1xbf16>
    %4 = arith.extf %3 : vector<24x16x1xbf16> to vector<24x16x1xf32>
    %5 = vector.shape_cast %0 : vector<24x16x18xbf16> to vector<384x18xbf16>
    %c0_2 = arith.constant 0 : index
    %c0_3 = arith.constant 0 : index
    %6 = vector.load %arg3[%c0_2, %c0_3] : memref<18x32xbf16, #tpu.memory_space<vmem>>, vector<18x32xbf16>
    %cst = arith.constant dense<0.000000e+00> : vector<384x32xf32>
    %7 = tpu.matmul %5, %6, %cst {dimension_numbers = #tpu.dot_dimension_numbers<[1], [0], [0], [1], [0, 0, 1, 1], [], []>} : vector<384x18xbf16>, vector<18x32xbf16>, vector<384x32xf32> -> vector<384x32xf32>
    %c0_4 = arith.constant 0 : index
    %c0_5 = arith.constant 0 : index
    %8 = vector.load %arg4[%c0_4, %c0_5] : memref<1x32xf32, #tpu.memory_space<vmem>>, vector<1x32xf32>
    %9 = vector.broadcast %8 : vector<1x32xf32> to vector<384x32xf32>
    %10 = arith.addf %7, %9 : vector<384x32xf32>
    %c0_6 = arith.constant 0 : index
    %c0_7 = arith.constant 0 : index
    %11 = vector.load %arg2[%c0_6, %c0_7] : memref<24x32xbf16, #tpu.memory_space<vmem>>, vector<24x32xbf16>
    %c0_8 = arith.constant 0 : index
    %c0_9 = arith.constant 0 : index
    %12 = vector.load %arg5[%c0_8, %c0_9] : memref<32x32xbf16, #tpu.memory_space<vmem>>, vector<32x32xbf16>
    %cst_10 = arith.constant dense<0.000000e+00> : vector<24x32xf32>
    %13 = tpu.matmul %11, %12, %cst_10 {dimension_numbers = #tpu.dot_dimension_numbers<[1], [0], [0], [1], [0, 0, 1, 1], [], []>} : vector<24x32xbf16>, vector<32x32xbf16>, vector<24x32xf32> -> vector<24x32xf32>
    %c0_11 = arith.constant 0 : index
    %c0_12 = arith.constant 0 : index
    %14 = vector.load %arg6[%c0_11, %c0_12] : memref<1x32xf32, #tpu.memory_space<vmem>>, vector<1x32xf32>
    %15 = vector.broadcast %14 : vector<1x32xf32> to vector<24x32xf32>
    %16 = arith.addf %13, %15 : vector<24x32xf32>
    %17 = vector.shape_cast %10 : vector<384x32xf32> to vector<24x16x32xf32>
    %18 = vector.shape_cast %16 : vector<24x32xf32> to vector<24x1x32xf32>
    %19 = vector.broadcast %18 : vector<24x1x32xf32> to vector<24x16x32xf32>
    %20 = arith.addf %17, %19 : vector<24x16x32xf32>
    %21 = arith.negf %20 : vector<24x16x32xf32>
    %22 = math.exp %21 : vector<24x16x32xf32>
    %cst_13 = arith.constant 1.000000e+00 : f32
    %23 = vector.broadcast %cst_13 : f32 to vector<24x16x32xf32>
    %24 = arith.addf %23, %22 : vector<24x16x32xf32>
    %25 = arith.divf %23, %24 : vector<24x16x32xf32>
    %c0_14 = arith.constant 0 : index
    %c0_15 = arith.constant 0 : index
    %26 = vector.load %arg7[%c0_14, %c0_15] : memref<1x32xf32, #tpu.memory_space<vmem>>, vector<1x32xf32>
    %27 = vector.shape_cast %26 : vector<1x32xf32> to vector<1x1x32xf32>
    %28 = vector.broadcast %27 : vector<1x1x32xf32> to vector<24x16x32xf32>
    %29 = arith.mulf %25, %28 : vector<24x16x32xf32>
    %cst_16 = arith.constant dense<0.000000e+00> : vector<24x16xf32>
    %30 = vector.multi_reduction <add>, %29, %cst_16 [2] : vector<24x16x32xf32> to vector<24x16xf32>
    %31 = vector.shape_cast %30 : vector<24x16xf32> to vector<24x16x1xf32>
    %cst_17 = arith.constant 0.000000e+00 : f32
    %32 = vector.broadcast %cst_17 : f32 to vector<24x16x1xf32>
    %33 = arith.cmpf ogt, %2, %32 : vector<24x16x1xf32>
    %cst_18 = arith.constant -1.000000e+30 : f32
    %34 = vector.broadcast %cst_18 : f32 to vector<24x16x1xf32>
    %35 = arith.select %33, %31, %34 : vector<24x16x1xi1>, vector<24x16x1xf32>
    %cst_19 = arith.constant dense<0xFF800000> : vector<24x1xf32>
    %36 = vector.multi_reduction <maximumf>, %35, %cst_19 [1] : vector<24x16x1xf32> to vector<24x1xf32>
    %37 = vector.shape_cast %36 : vector<24x1xf32> to vector<24x1x1xf32>
    %38 = vector.broadcast %37 : vector<24x1x1xf32> to vector<24x16x1xf32>
    %39 = arith.subf %35, %38 : vector<24x16x1xf32>
    %40 = math.exp %39 : vector<24x16x1xf32>
    %41 = arith.mulf %40, %2 : vector<24x16x1xf32>
    %cst_20 = arith.constant dense<0.000000e+00> : vector<24x1xf32>
    %42 = vector.multi_reduction <add>, %41, %cst_20 [1] : vector<24x16x1xf32> to vector<24x1xf32>
    %43 = vector.shape_cast %42 : vector<24x1xf32> to vector<24x1x1xf32>
    %cst_21 = arith.constant 1.000000e+00 : f32
    %44 = vector.broadcast %cst_21 : f32 to vector<24x1x1xf32>
    %45 = arith.maximumf %43, %44 : vector<24x1x1xf32>
    %cst_22 = arith.constant 1.000000e+00 : f32
    %46 = vector.broadcast %cst_22 : f32 to vector<24x1x1xf32>
    %47 = arith.divf %46, %45 : vector<24x1x1xf32>
    %48 = vector.broadcast %47 : vector<24x1x1xf32> to vector<24x16x1xf32>
    %49 = arith.mulf %41, %48 : vector<24x16x1xf32>
    %50 = arith.extf %0 : vector<24x16x18xbf16> to vector<24x16x18xf32>
    %51 = vector.broadcast %49 : vector<24x16x1xf32> to vector<24x16x18xf32>
    %52 = arith.mulf %51, %50 : vector<24x16x18xf32>
    %cst_23 = arith.constant dense<0.000000e+00> : vector<24x18xf32>
    %53 = vector.multi_reduction <add>, %52, %cst_23 [1] : vector<24x16x18xf32> to vector<24x18xf32>
    %54 = arith.extf %0 : vector<24x16x18xbf16> to vector<24x16x18xf32>
    %55 = vector.broadcast %4 : vector<24x16x1xf32> to vector<24x16x18xf32>
    %56 = arith.mulf %55, %54 : vector<24x16x18xf32>
    %cst_24 = arith.constant dense<0.000000e+00> : vector<24x18xf32>
    %57 = vector.multi_reduction <add>, %56, %cst_24 [1] : vector<24x16x18xf32> to vector<24x18xf32>
    %58 = tpu.concatenate %53, %57 in 0 : vector<24x18xf32>, vector<24x18xf32> -> vector<48x18xf32>
    %cst_25 = arith.constant dense<0.000000e+00> : vector<24x1xf32>
    %59 = vector.multi_reduction <add>, %49, %cst_25 [1] : vector<24x16x1xf32> to vector<24x1xf32>
    %cst_26 = arith.constant dense<0.000000e+00> : vector<24x1xf32>
    %60 = vector.multi_reduction <add>, %4, %cst_26 [1] : vector<24x16x1xf32> to vector<24x1xf32>
    %61 = tpu.concatenate %59, %60 in 0 : vector<24x1xf32>, vector<24x1xf32> -> vector<48x1xf32>
    %c0_27 = arith.constant 0 : index
    %c0_28 = arith.constant 0 : index
    %62 = vector.load %arg8[%c0_27, %c0_28] : memref<18x128xf32, #tpu.memory_space<vmem>>, vector<18x128xf32>
    %cst_29 = arith.constant dense<0.000000e+00> : vector<48x128xf32>
    %63 = tpu.matmul %58, %62, %cst_29 {dimension_numbers = #tpu.dot_dimension_numbers<[1], [0], [0], [1], [0, 0, 1, 1], [], []>} : vector<48x18xf32>, vector<18x128xf32>, vector<48x128xf32> -> vector<48x128xf32>
    %c0_30 = arith.constant 0 : index
    %c0_31 = arith.constant 0 : index
    %64 = vector.load %arg9[%c0_30, %c0_31] : memref<1x128xf32, #tpu.memory_space<vmem>>, vector<1x128xf32>
    %65 = vector.broadcast %61 : vector<48x1xf32> to vector<48x128xf32>
    %66 = vector.broadcast %64 : vector<1x128xf32> to vector<48x128xf32>
    %67 = arith.mulf %65, %66 : vector<48x128xf32>
    %68 = arith.addf %63, %67 : vector<48x128xf32>
    %c0_32 = arith.constant 0 : index
    %c0_33 = arith.constant 0 : index
    %69 = vector.load %arg10[%c0_32, %c0_33] : memref<48x128xf32, #tpu.memory_space<vmem>>, vector<48x128xf32>
    tpu.vector_store %arg10[%c0_32, %c0_33], %68 {strides = array<i32>} : memref<48x128xf32, #tpu.memory_space<vmem>>, vector<48x128xf32>,
    return
  }
  func.func @transform_0(%arg0: i32) -> (i32, i32, i32) {
    %c0_i32 = arith.constant 0 : i32
    %c0_i32_0 = arith.constant 0 : i32
    %c0_i32_1 = arith.constant 0 : i32
    return %arg0, %c0_i32, %c0_i32_0 : i32, i32, i32
  }
  func.func @transform_1(%arg0: i32) -> (i32, i32) {
    %c0_i32 = arith.constant 0 : i32
    %c0_i32_0 = arith.constant 0 : i32
    return %arg0, %c0_i32 : i32, i32
  }
  func.func @transform_2(%arg0: i32) -> (i32, i32) {
    %c0_i32 = arith.constant 0 : i32
    %c0_i32_0 = arith.constant 0 : i32
    %c0_i32_1 = arith.constant 0 : i32
    return %c0_i32, %c0_i32_0 : i32, i32
  }
  func.func @transform_3(%arg0: i32) -> (i32, i32) {
    %c0_i32 = arith.constant 0 : i32
    %c0_i32_0 = arith.constant 0 : i32
    %c0_i32_1 = arith.constant 0 : i32
    return %c0_i32, %c0_i32_0 : i32, i32
  }
  func.func @transform_4(%arg0: i32) -> (i32, i32) {
    %c0_i32 = arith.constant 0 : i32
    %c0_i32_0 = arith.constant 0 : i32
    %c0_i32_1 = arith.constant 0 : i32
    return %c0_i32, %c0_i32_0 : i32, i32
  }
  func.func @transform_5(%arg0: i32) -> (i32, i32) {
    %c0_i32 = arith.constant 0 : i32
    %c0_i32_0 = arith.constant 0 : i32
    %c0_i32_1 = arith.constant 0 : i32
    return %c0_i32, %c0_i32_0 : i32, i32
  }
  func.func @transform_6(%arg0: i32) -> (i32, i32) {
    %c0_i32 = arith.constant 0 : i32
    %c0_i32_0 = arith.constant 0 : i32
    %c0_i32_1 = arith.constant 0 : i32
    return %c0_i32, %c0_i32_0 : i32, i32
  }
  func.func @transform_7(%arg0: i32) -> (i32, i32) {
    %c0_i32 = arith.constant 0 : i32
    %c0_i32_0 = arith.constant 0 : i32
    %c0_i32_1 = arith.constant 0 : i32
    return %c0_i32, %c0_i32_0 : i32, i32
  }
  func.func @transform_8(%arg0: i32) -> (i32, i32) {
    %c0_i32 = arith.constant 0 : i32
    %c0_i32_0 = arith.constant 0 : i32
    %c0_i32_1 = arith.constant 0 : i32
    return %c0_i32, %c0_i32_0 : i32, i32
  }
  func.func @transform_9(%arg0: i32) -> (i32, i32) {
    %c0_i32 = arith.constant 0 : i32
    %c0_i32_0 = arith.constant 0 : i32
    return %arg0, %c0_i32 : i32, i32
  }
}

</mosaic_0001>

<llo_original>
// kernel: tpu_custom_call.1
$region0: #{tpu_custom_call.1}
  #allocation0 [shape = 'u32[]', space=smem, size = 0x4, offset = 0x4, fixed_abs, tag = 'smem constant byte address 0x4 - core index']
  #allocation1 [shape = 'u32[72,128]{1,0:T(1,128)}', space=vmem, size = 0x9000, scoped, tag = 'internal scratch']
  %s0 = inlined_call_operand.vmem [shape: bf16[96,16,18], index: 0, kind: input, shape index: {}]
  %s1 = inlined_call_operand.vmem [shape: bf16[96,32], index: 1, kind: input, shape index: {}]
  %s2 = inlined_call_operand.vmem [shape: bf16[18,32], index: 2, kind: input, shape index: {}]
  %s3 = inlined_call_operand.vmem [shape: f32[1,32], index: 3, kind: input, shape index: {}]
  %s4 = inlined_call_operand.vmem [shape: bf16[32,32], index: 4, kind: input, shape index: {}]
  %s5 = inlined_call_operand.vmem [shape: f32[1,32], index: 5, kind: input, shape index: {}]
  %s6 = inlined_call_operand.vmem [shape: f32[1,32], index: 6, kind: input, shape index: {}]
  %s7 = inlined_call_operand.vmem [shape: f32[18,128], index: 7, kind: input, shape index: {}]
  %s8 = inlined_call_operand.vmem [shape: f32[1,128], index: 8, kind: input, shape index: {}]
  %s9 = inlined_call_operand.hbm [shape: f32[192,128], index: 9, kind: output, shape index: {}]
  %s10 = sld [smem:[#allocation0]]
  $region69: #{tpu_custom_call.1} parent=0
    _
  %s12 = ssub.s32 1, %s10
  %s13 = scalar_select 0, %s12, %s10
  $region1: #{tpu_custom_call.1} parent=0
    #allocation2 [shape = 'u8[49152]{0}', space=vmem, size = 0xc000, scoped, tag = 'output window, operand 0']
    #allocation3 [shape = 's32[2]{0}', space=sflag, size = 0x8, scoped, tag = 'scoped memory for tpu_custom_call.1']
    %14 = vsyncpa [#allocation3], 0
    %s15 = scalar_lea.sflag [#allocation3], 1
    %16 = vsyncpa %s15, 0
    loop: start=0, step=1, limit=6
    $region2: #{tpu_custom_call.1} parent=1 // loop_pre_header
      _
    $region3: #{tpu_custom_call.1} parent=1 // loop_header
      %s18 = sphi 0, %s22
      %p19 = scmp.ge.s32.totalorder %s18, 6
      %s28 = sphi 0, %s30
      %s31 = sphi 0, %s28
      %s32 = sphi 0, %s31
      %s48 = sphi 0, %s32
      %s54 = sphi 0, %s56
      %s57 = sphi 0, %s54
      %s58 = sphi 0, %s57
      %s74 = sphi 0, %s58
      %s78 = sphi 0, %s78
      %s80 = sphi 0, %s78
      %s81 = sphi 0, %s80
      %s95 = sphi 0, %s81
      %s99 = sphi 0, %s99
      %s101 = sphi 0, %s99
      %s102 = sphi 0, %s101
      %s116 = sphi 0, %s102
      %s120 = sphi 0, %s120
      %s122 = sphi 0, %s120
      %s123 = sphi 0, %s122
      %s137 = sphi 0, %s123
      %s141 = sphi 0, %s141
      %s143 = sphi 0, %s141
      %s144 = sphi 0, %s143
      %s158 = sphi 0, %s144
      %s162 = sphi 0, %s162
      %s164 = sphi 0, %s162
      %s165 = sphi 0, %s164
      %s179 = sphi 0, %s165
      %s183 = sphi 0, %s183
      %s185 = sphi 0, %s183
      %s186 = sphi 0, %s185
      %s200 = sphi 0, %s186
      %s204 = sphi 0, %s204
      %s206 = sphi 0, %s204
      %s207 = sphi 0, %s206
      %s221 = sphi 0, %s207
      %s227 = sphi 0, %s229
      %s230 = sphi 0, %s227
      %s231 = sphi 0, %s230
      %s247 = sphi 0, %s231
    $region4: #{tpu_custom_call.1} parent=1 // loop_header_branch
      %21 = sbr.rel (%p19) target = $region8
    $region5: #{tpu_custom_call.1} parent=1 // loop_body
      %s23 = ssub.s32 %s18, 1
      %s24 = ssub.s32 %s18, 2
      %s25 = sadd.s32 %s18, 1
      %s26 = ssub.s32 %s18, %s25
      %p27 = scmp.eq.s32.totalorder %s26, 0
      %s29 = sadd.s32 %s28, 1
      %s30 = scalar_select %p27, %s28, %s29
      %p33 = pneg %p27
      %p34 = scmp.eq.s32.totalorder %s18, 3
      %p35 = por %p33, %p34
      %p36 = scmp.ne.s32.totalorder %s28, %s31
      %p37 = scmp.eq.s32.totalorder %s18, 0
      %p38 = por %p36, %p37
      %p39 = scmp.ne.s32.totalorder %s28, %s31
      %p40 = scmp.eq.s32.totalorder %s23, 3
      %p41 = por %p39, %p40
      %p42 = scmp.ne.s32.totalorder %s31, %s32
      %p43 = scmp.eq.s32.totalorder %s23, 0
      %p44 = por %p42, %p43
      %p45 = scmp.ne.s32.totalorder %s31, %s32
      %p46 = scmp.eq.s32.totalorder %s24, 3
      %p47 = por %p45, %p46
      %p49 = scmp.ne.s32.totalorder %s32, %s48
      %p50 = scmp.eq.s32.totalorder %s24, 0
      %p51 = por %p49, %p50
      %s52 = ssub.s32 %s18, %s25
      %p53 = scmp.eq.s32.totalorder %s52, 0
      %s55 = sadd.s32 %s54, 1
      %s56 = scalar_select %p53, %s54, %s55
      %p59 = pneg %p53
      %p60 = scmp.eq.s32.totalorder %s18, 3
      %p61 = por %p59, %p60
      %p62 = scmp.ne.s32.totalorder %s54, %s57
      %p63 = scmp.eq.s32.totalorder %s18, 0
      %p64 = por %p62, %p63
      %p65 = scmp.ne.s32.totalorder %s54, %s57
      %p66 = scmp.eq.s32.totalorder %s23, 3
      %p67 = por %p65, %p66
      %p68 = scmp.ne.s32.totalorder %s57, %s58
      %p69 = scmp.eq.s32.totalorder %s23, 0
      %p70 = por %p68, %p69
      %p71 = scmp.ne.s32.totalorder %s57, %s58
      %p72 = scmp.eq.s32.totalorder %s24, 3
      %p73 = por %p71, %p72
      %p75 = scmp.ne.s32.totalorder %s58, %s74
      %p76 = scmp.eq.s32.totalorder %s24, 0
      %p77 = por %p75, %p76
      %s79 = sadd.s32 %s78, 1
      %p82 = scmp.eq.s32.totalorder %s18, 3
      %p83 = scmp.ne.s32.totalorder %s78, %s80
      %p84 = scmp.eq.s32.totalorder %s18, 0
      %p85 = por %p83, %p84
      %p86 = scmp.ne.s32.totalorder %s78, %s80
      %p87 = scmp.eq.s32.totalorder %s23, 3
      %p88 = por %p86, %p87
      %p89 = scmp.ne.s32.totalorder %s80, %s81
      %p90 = scmp.eq.s32.totalorder %s23, 0
      %p91 = por %p89, %p90
      %p92 = scmp.ne.s32.totalorder %s80, %s81
      %p93 = scmp.eq.s32.totalorder %s24, 3
      %p94 = por %p92, %p93
      %p96 = scmp.ne.s32.totalorder %s81, %s95
      %p97 = scmp.eq.s32.totalorder %s24, 0
      %p98 = por %p96, %p97
      %s100 = sadd.s32 %s99, 1
      %p103 = scmp.eq.s32.totalorder %s18, 3
      %p104 = scmp.ne.s32.totalorder %s99, %s101
      %p105 = scmp.eq.s32.totalorder %s18, 0
      %p106 = por %p104, %p105
      %p107 = scmp.ne.s32.totalorder %s99, %s101
      %p108 = scmp.eq.s32.totalorder %s23, 3
      %p109 = por %p107, %p108
      %p110 = scmp.ne.s32.totalorder %s101, %s102
      %p111 = scmp.eq.s32.totalorder %s23, 0
      %p112 = por %p110, %p111
      %p113 = scmp.ne.s32.totalorder %s101, %s102
      %p114 = scmp.eq.s32.totalorder %s24, 3
      %p115 = por %p113, %p114
      %p117 = scmp.ne.s32.totalorder %s102, %s116
      %p118 = scmp.eq.s32.totalorder %s24, 0
      %p119 = por %p117, %p118
      %s121 = sadd.s32 %s120, 1
      %p124 = scmp.eq.s32.totalorder %s18, 3
      %p125 = scmp.ne.s32.totalorder %s120, %s122
      %p126 = scmp.eq.s32.totalorder %s18, 0
      %p127 = por %p125, %p126
      %p128 = scmp.ne.s32.totalorder %s120, %s122
      %p129 = scmp.eq.s32.totalorder %s23, 3
      %p130 = por %p128, %p129
      %p131 = scmp.ne.s32.totalorder %s122, %s123
      %p132 = scmp.eq.s32.totalorder %s23, 0
      %p133 = por %p131, %p132
      %p134 = scmp.ne.s32.totalorder %s122, %s123
      %p135 = scmp.eq.s32.totalorder %s24, 3
      %p136 = por %p134, %p135
      %p138 = scmp.ne.s32.totalorder %s123, %s137
      %p139 = scmp.eq.s32.totalorder %s24, 0
      %p140 = por %p138, %p139
      %s142 = sadd.s32 %s141, 1
      %p145 = scmp.eq.s32.totalorder %s18, 3
      %p146 = scmp.ne.s32.totalorder %s141, %s143
      %p147 = scmp.eq.s32.totalorder %s18, 0
      %p148 = por %p146, %p147
      %p149 = scmp.ne.s32.totalorder %s141, %s143
      %p150 = scmp.eq.s32.totalorder %s23, 3
      %p151 = por %p149, %p150
      %p152 = scmp.ne.s32.totalorder %s143, %s144
      %p153 = scmp.eq.s32.totalorder %s23, 0
      %p154 = por %p152, %p153
      %p155 = scmp.ne.s32.totalorder %s143, %s144
      %p156 = scmp.eq.s32.totalorder %s24, 3
      %p157 = por %p155, %p156
      %p159 = scmp.ne.s32.totalorder %s144, %s158
      %p160 = scmp.eq.s32.totalorder %s24, 0
      %p161 = por %p159, %p160
      %s163 = sadd.s32 %s162, 1
      %p166 = scmp.eq.s32.totalorder %s18, 3
      %p167 = scmp.ne.s32.totalorder %s162, %s164
      %p168 = scmp.eq.s32.totalorder %s18, 0
      %p169 = por %p167, %p168
      %p170 = scmp.ne.s32.totalorder %s162, %s164
      %p171 = scmp.eq.s32.totalorder %s23, 3
      %p172 = por %p170, %p171
      %p173 = scmp.ne.s32.totalorder %s164, %s165
      %p174 = scmp.eq.s32.totalorder %s23, 0
      %p175 = por %p173, %p174
      %p176 = scmp.ne.s32.totalorder %s164, %s165
      %p177 = scmp.eq.s32.totalorder %s24, 3
      %p178 = por %p176, %p177
      %p180 = scmp.ne.s32.totalorder %s165, %s179
      %p181 = scmp.eq.s32.totalorder %s24, 0
      %p182 = por %p180, %p181
      %s184 = sadd.s32 %s183, 1
      %p187 = scmp.eq.s32.totalorder %s18, 3
      %p188 = scmp.ne.s32.totalorder %s183, %s185
      %p189 = scmp.eq.s32.totalorder %s18, 0
      %p190 = por %p188, %p189
      %p191 = scmp.ne.s32.totalorder %s183, %s185
      %p192 = scmp.eq.s32.totalorder %s23, 3
      %p193 = por %p191, %p192
      %p194 = scmp.ne.s32.totalorder %s185, %s186
      %p195 = scmp.eq.s32.totalorder %s23, 0
      %p196 = por %p194, %p195
      %p197 = scmp.ne.s32.totalorder %s185, %s186
      %p198 = scmp.eq.s32.totalorder %s24, 3
      %p199 = por %p197, %p198
      %p201 = scmp.ne.s32.totalorder %s186, %s200
      %p202 = scmp.eq.s32.totalorder %s24, 0
      %p203 = por %p201, %p202
      %s205 = sadd.s32 %s204, 1
      %p208 = scmp.eq.s32.totalorder %s18, 3
      %p209 = scmp.ne.s32.totalorder %s204, %s206
      %p210 = scmp.eq.s32.totalorder %s18, 0
      %p211 = por %p209, %p210
      %p212 = scmp.ne.s32.totalorder %s204, %s206
      %p213 = scmp.eq.s32.totalorder %s23, 3
      %p214 = por %p212, %p213
      %p215 = scmp.ne.s32.totalorder %s206, %s207
      %p216 = scmp.eq.s32.totalorder %s23, 0
      %p217 = por %p215, %p216
      %p218 = scmp.ne.s32.totalorder %s206, %s207
      %p219 = scmp.eq.s32.totalorder %s24, 3
      %p220 = por %p218, %p219
      %p222 = scmp.ne.s32.totalorder %s207, %s221
      %p223 = scmp.eq.s32.totalorder %s24, 0
      %p224 = por %p222, %p223
      %s225 = ssub.s32 %s18, %s25
      %p226 = scmp.eq.s32.totalorder %s225, 0
      %s228 = sadd.s32 %s227, 1
      %s229 = scalar_select %p226, %s227, %s228
      %p232 = pneg %p226
      %p233 = scmp.eq.s32.totalorder %s18, 3
      %p234 = por %p232, %p233
      %p235 = scmp.ne.s32.totalorder %s227, %s230
      %p236 = scmp.eq.s32.totalorder %s18, 0
      %p237 = por %p235, %p236
      %p238 = scmp.ne.s32.totalorder %s227, %s230
      %p239 = scmp.eq.s32.totalorder %s23, 3
      %p240 = por %p238, %p239
      %p241 = scmp.ne.s32.totalorder %s230, %s231
      %p242 = scmp.eq.s32.totalorder %s23, 0
      %p243 = por %p241, %p242
      %p244 = scmp.ne.s32.totalorder %s230, %s231
      %p245 = scmp.eq.s32.totalorder %s24, 3
      %p246 = por %p244, %p245
      %p248 = scmp.ne.s32.totalorder %s231, %s247
      %p249 = scmp.eq.s32.totalorder %s24, 0
      %p250 = por %p248, %p249
      %p251 = scmp.le.s32.totalorder 1, %s18
      %p252 = scmp.lt.s32.totalorder %s18, 5
      %p253 = pnand %p251, %p252
      %p254 = pneg %p253
      // Predicated region
      $region9: #{tpu_custom_call.1} parent=5 // pred_check
        _
      $region10: #{tpu_custom_call.1} parent=5 // pred_check_branch
        %256 = sbr.rel (%p253) target = $region12
      $region11: #{tpu_custom_call.1} parent=5 // pred_region
        %s257 = ssub.s32 %s18, 1
        // Predicated region
        $region13: #{tpu_custom_call.1} parent=11 // pred_check
          %p258 = pneg %p91
        $region14: #{tpu_custom_call.1} parent=11 // pred_check_branch
          %260 = sbr.rel (%p258) target = $region16
        $region15: #{tpu_custom_call.1} parent=11 // pred_region
          _
        $region16: #{tpu_custom_call.1} parent=11 // pred_fallthru
          _
        // Predicated region
        $region17: #{tpu_custom_call.1} parent=11 // pred_check
          %p261 = pneg %p112
        $region18: #{tpu_custom_call.1} parent=11 // pred_check_branch
          %263 = sbr.rel (%p261) target = $region20
        $region19: #{tpu_custom_call.1} parent=11 // pred_region
          _
        $region20: #{tpu_custom_call.1} parent=11 // pred_fallthru
          _
        // Predicated region
        $region21: #{tpu_custom_call.1} parent=11 // pred_check
          %p264 = pneg %p133
        $region22: #{tpu_custom_call.1} parent=11 // pred_check_branch
          %266 = sbr.rel (%p264) target = $region24
        $region23: #{tpu_custom_call.1} parent=11 // pred_region
          _
        $region24: #{tpu_custom_call.1} parent=11 // pred_fallthru
          _
        // Predicated region
        $region25: #{tpu_custom_call.1} parent=11 // pred_check
          %p267 = pneg %p154
        $region26: #{tpu_custom_call.1} parent=11 // pred_check_branch
          %269 = sbr.rel (%p267) target = $region28
        $region27: #{tpu_custom_call.1} parent=11 // pred_region
          _
        $region28: #{tpu_custom_call.1} parent=11 // pred_fallthru
          _
        // Predicated region
        $region29: #{tpu_custom_call.1} parent=11 // pred_check
          %p270 = pneg %p175
        $region30: #{tpu_custom_call.1} parent=11 // pred_check_branch
          %272 = sbr.rel (%p270) target = $region32
        $region31: #{tpu_custom_call.1} parent=11 // pred_region
          _
        $region32: #{tpu_custom_call.1} parent=11 // pred_fallthru
          _
        // Predicated region
        $region33: #{tpu_custom_call.1} parent=11 // pred_check
          %p273 = pneg %p196
        $region34: #{tpu_custom_call.1} parent=11 // pred_check_branch
          %275 = sbr.rel (%p273) target = $region36
        $region35: #{tpu_custom_call.1} parent=11 // pred_region
          _
        $region36: #{tpu_custom_call.1} parent=11 // pred_fallthru
          _
        // Predicated region
        $region37: #{tpu_custom_call.1} parent=11 // pred_check
          %p276 = pneg %p217
        $region38: #{tpu_custom_call.1} parent=11 // pred_check_branch
          %278 = sbr.rel (%p276) target = $region40
        $region39: #{tpu_custom_call.1} parent=11 // pred_region
          _
        $region40: #{tpu_custom_call.1} parent=11 // pred_fallthru
          _
      $region12: #{tpu_custom_call.1} parent=5 // pred_fallthru
        _
      %p279 = scmp.lt.s32.totalorder %s18, 4
      // Predicated region
      $region41: #{tpu_custom_call.1} parent=5 // pred_check
        %p280 = pneg %p279
      $region42: #{tpu_custom_call.1} parent=5 // pred_check_branch
        %282 = sbr.rel (%p280) target = $region44
      $region43: #{tpu_custom_call.1} parent=5 // pred_region
        // Predicated region
        $region45: #{tpu_custom_call.1} parent=43 // pred_check
          %p283 = pneg %p38
        $region46: #{tpu_custom_call.1} parent=43 // pred_check_branch
          %285 = sbr.rel (%p283) target = $region48
        $region47: #{tpu_custom_call.1} parent=43 // pred_region
          %s286 = smul.u32 24, %s18
          %p287 = scmp.lt.s32.totalorder %s286, 95
          %s288 = scalar_select %p287, %s286, 95
          %s289 = smul.addr %s288, 2
          %s290 = smul.addr %s289, 4
          %s291 = scalar_lea.vmem %s0, %s290
          %s292 = smul.u32 24, %s18
        $region48: #{tpu_custom_call.1} parent=43 // pred_fallthru
          _
        // Predicated region
        $region49: #{tpu_custom_call.1} parent=43 // pred_check
          %p293 = pneg %p64
        $region50: #{tpu_custom_call.1} parent=43 // pred_check_branch
          %295 = sbr.rel (%p293) target = $region52
        $region51: #{tpu_custom_call.1} parent=43 // pred_region
          %s296 = smul.u32 3, %s18
          %p297 = scmp.lt.s32.totalorder %s296, 11
          %s298 = scalar_select %p297, %s296, 11
          %s299 = smul.addr %s298, 4
          %s300 = scalar_lea.vmem %s1, %s299
          %s301 = smul.u32 3, %s18
        $region52: #{tpu_custom_call.1} parent=43 // pred_fallthru
          _
      $region44: #{tpu_custom_call.1} parent=5 // pred_fallthru
        _
      %p302 = scmp.le.s32.totalorder 1, %s18
      %p303 = scmp.lt.s32.totalorder %s18, 5
      %p304 = pnand %p302, %p303
      %p305 = pneg %p304
      // Predicated region
      $region53: #{tpu_custom_call.1} parent=5 // pred_check
        _
      $region54: #{tpu_custom_call.1} parent=5 // pred_check_branch
        %307 = sbr.rel (%p304) target = $region56
      $region55: #{tpu_custom_call.1} parent=5 // pred_region
        %s308 = ssub.s32 %s18, 1
        %s309 = smul.u32 24, %s23
        %p310 = scmp.lt.s32.totalorder %s309, 95
        %s311 = scalar_select %p310, %s309, 95
        %s312 = smul.addr %s311, 2
        %s313 = smul.addr %s312, 4
        %s314 = scalar_lea.vmem %s0, %s313
        %p315 = pneg %p44
        %p316 = pneg %p41
        %s317 = smul.u32 3, %s23
        %p318 = scmp.lt.s32.totalorder %s317, 11
        %s319 = scalar_select %p318, %s317, 11
        %s320 = smul.addr %s319, 4
        %s321 = scalar_lea.vmem %s1, %s320
        %p322 = pneg %p70
        %p323 = pneg %p67
        %p324 = pneg %p91
        %p325 = pneg %p88
        %p326 = pneg %p112
        %p327 = pneg %p109
        %p328 = pneg %p133
        %p329 = pneg %p130
        %p330 = pneg %p154
        %p331 = pneg %p151
        %p332 = pneg %p175
        %p333 = pneg %p172
        %p334 = pneg %p196
        %p335 = pneg %p193
        %p336 = pneg %p217
        %p337 = pneg %p214
        %p338 = pneg %p243
        %p339 = pneg %p240
        %s340 = sand.u32 %s230, 1
        %s341 = scalar_lea.sflag [#allocation3], %s340
        %s342 = sand.u32 %s230, 1
        %s343 = smul.addr %s342, 48
        %s344 = scalar_lea.vmem [#allocation2], %s343
        %s345 = smul.u32 24, %s23
        %p346 = scmp.lt.s32.totalorder %s345, 95
        %s347 = scalar_select %p346, %s345, 95
        %s348 = smul.addr %s347, 2
        %s349 = smul.addr %s348, 4
        %s350 = scalar_lea.vmem %s0, %s349
        %s351 = smul.u32 24, %s23
        %s352 = smul.u32 3, %s23
        %p353 = scmp.lt.s32.totalorder %s352, 11
        %s354 = scalar_select %p353, %s352, 11
        %s355 = smul.addr %s354, 4
        %s356 = scalar_lea.vmem %s1, %s355
        %s357 = smul.u32 3, %s23
        %s358 = smul.u32 6, %s23
        %v360 = vld [vmem:[%s350] sm:$0xf]
        %v361 = vld [vmem:[%s350 + $0x4] sm:$0xf]
        %v362 = vld [vmem:[%s350 + $0x8] sm:$0xf]
        %v363 = vld [vmem:[%s350 + $0xc] sm:$0xf]
        %v364 = vld [vmem:[%s350 + $0x10] sm:$0xf]
        %v365 = vld [vmem:[%s350 + $0x14] sm:$0xf]
        %v366 = vld [vmem:[%s350 + $0x18] sm:$0xf]
        %v367 = vld [vmem:[%s350 + $0x1c] sm:$0xf]
        %v368 = vld [vmem:[%s350 + $0x20] sm:$0xf]
        %v369 = vld [vmem:[%s350 + $0x24] sm:$0xf]
        %v370 = vld [vmem:[%s350 + $0x28] sm:$0xf]
        %v371 = vld [vmem:[%s350 + $0x2c] sm:$0xf]
        %v372 = vld [vmem:[%s350 + $0x30] sm:$0xf]
        %v373 = vld [vmem:[%s350 + $0x34] sm:$0xf]
        %v374 = vld [vmem:[%s350 + $0x38] sm:$0xf]
        %v375 = vld [vmem:[%s350 + $0x3c] sm:$0xf]
        %v376 = vld [vmem:[%s350 + $0x40] sm:$0xf]
        %v377 = vld [vmem:[%s350 + $0x44] sm:$0xf]
        %v378 = vld [vmem:[%s350 + $0x48] sm:$0xf]
        %v379 = vld [vmem:[%s350 + $0x4c] sm:$0xf]
        %v380 = vld [vmem:[%s350 + $0x50] sm:$0xf]
        %v381 = vld [vmem:[%s350 + $0x54] sm:$0xf]
        %v382 = vld [vmem:[%s350 + $0x58] sm:$0xf]
        %v383 = vld [vmem:[%s350 + $0x5c] sm:$0xf]
        %v384 = vld [vmem:[%s350 + $0x60] sm:$0xf]
        %v385 = vld [vmem:[%s350 + $0x64] sm:$0xf]
        %v386 = vld [vmem:[%s350 + $0x68] sm:$0xf]
        %v387 = vld [vmem:[%s350 + $0x6c] sm:$0xf]
        %v388 = vld [vmem:[%s350 + $0x70] sm:$0xf]
        %v389 = vld [vmem:[%s350 + $0x74] sm:$0xf]
        %v390 = vld [vmem:[%s350 + $0x78] sm:$0xf]
        %v391 = vld [vmem:[%s350 + $0x7c] sm:$0xf]
        %v392 = vld [vmem:[%s350 + $0x80] sm:$0xf]
        %v393 = vld [vmem:[%s350 + $0x84] sm:$0xf]
        %v394 = vld [vmem:[%s350 + $0x88] sm:$0xf]
        %v395 = vld [vmem:[%s350 + $0x8c] sm:$0xf]
        %v396 = vld [vmem:[%s350 + $0x90] sm:$0xf]
        %v397 = vld [vmem:[%s350 + $0x94] sm:$0xf]
        %v398 = vld [vmem:[%s350 + $0x98] sm:$0xf]
        %v399 = vld [vmem:[%s350 + $0x9c] sm:$0xf]
        %v400 = vld [vmem:[%s350 + $0xa0] sm:$0xf]
        %v401 = vld [vmem:[%s350 + $0xa4] sm:$0xf]
        %v402 = vld [vmem:[%s350 + $0xa8] sm:$0xf]
        %v403 = vld [vmem:[%s350 + $0xac] sm:$0xf]
        %v404 = vld [vmem:[%s350 + $0xb0] sm:$0xf]
        %v405 = vld [vmem:[%s350 + $0xb4] sm:$0xf]
        %v406 = vld [vmem:[%s350 + $0xb8] sm:$0xf]
        %v407 = vld [vmem:[%s350 + $0xbc] sm:$0xf]
        %v408 = vunpack.c.l.bf16 %v360
        %v409 = vunpack.c.l.bf16 %v361
        %v410 = vunpack.c.l.bf16 %v362
        %v411 = vunpack.c.l.bf16 %v363
        %v412 = vunpack.c.l.bf16 %v364
        %v413 = vunpack.c.l.bf16 %v365
        %v414 = vunpack.c.l.bf16 %v366
        %v415 = vunpack.c.l.bf16 %v367
        %v416 = vunpack.c.l.bf16 %v368
        %v417 = vunpack.c.l.bf16 %v369
        %v418 = vunpack.c.l.bf16 %v370
        %v419 = vunpack.c.l.bf16 %v371
        %v420 = vunpack.c.l.bf16 %v372
        %v421 = vunpack.c.l.bf16 %v373
        %v422 = vunpack.c.l.bf16 %v374
        %v423 = vunpack.c.l.bf16 %v375
        %v424 = vunpack.c.l.bf16 %v376
        %v425 = vunpack.c.l.bf16 %v377
        %v426 = vunpack.c.l.bf16 %v378
        %v427 = vunpack.c.l.bf16 %v379
        %v428 = vunpack.c.l.bf16 %v380
        %v429 = vunpack.c.l.bf16 %v381
        %v430 = vunpack.c.l.bf16 %v382
        %v431 = vunpack.c.l.bf16 %v383
        %v432 = vunpack.c.l.bf16 %v384
        %v433 = vunpack.c.l.bf16 %v385
        %v434 = vunpack.c.l.bf16 %v386
        %v435 = vunpack.c.l.bf16 %v387
        %v436 = vunpack.c.l.bf16 %v388
        %v437 = vunpack.c.l.bf16 %v389
        %v438 = vunpack.c.l.bf16 %v390
        %v439 = vunpack.c.l.bf16 %v391
        %v440 = vunpack.c.l.bf16 %v392
        %v441 = vunpack.c.l.bf16 %v393
        %v442 = vunpack.c.l.bf16 %v394
        %v443 = vunpack.c.l.bf16 %v395
        %v444 = vunpack.c.l.bf16 %v396
        %v445 = vunpack.c.l.bf16 %v397
        %v446 = vunpack.c.l.bf16 %v398
        %v447 = vunpack.c.l.bf16 %v399
        %v448 = vunpack.c.l.bf16 %v400
        %v449 = vunpack.c.l.bf16 %v401
        %v450 = vunpack.c.l.bf16 %v402
        %v451 = vunpack.c.l.bf16 %v403
        %v452 = vunpack.c.l.bf16 %v404
        %v453 = vunpack.c.l.bf16 %v405
        %v454 = vunpack.c.l.bf16 %v406
        %v455 = vunpack.c.l.bf16 %v407
        %v456 = vld [vmem:[%s2] sm:$0xf]
        %v457 = vld [vmem:[%s2 + $0x4] sm:$0xf]
        %v458 = vld [vmem:[%s2 + $0x8] sm:$0x1]
        %v459 = vld [vmem:[%s3] sm:$0x1]
        %v461 = vperm.slane %v459, 0
        %v511 = vunpack.c.l.b16 %v360
        %v512 = vunpack.c.l.b16 %v361
        %v513 = vunpack.c.l.b16 %v362
        %v514 = vunpack.c.l.b16 %v363
        %v515 = vunpack.c.l.b16 %v364
        %v516 = vunpack.c.l.b16 %v365
        %v517 = vunpack.c.l.b16 %v366
        %v518 = vunpack.c.l.b16 %v367
        %v519 = vunpack.c.l.b16 %v368
        %v520 = vunpack.c.l.b16 %v369
        %v521 = vunpack.c.l.b16 %v370
        %v522 = vunpack.c.l.b16 %v371
        %v523 = vunpack.c.l.b16 %v372
        %v524 = vunpack.c.l.b16 %v373
        %v525 = vunpack.c.l.b16 %v374
        %v526 = vunpack.c.l.b16 %v375
        %v527 = vunpack.c.l.b16 %v376
        %v528 = vunpack.c.l.b16 %v377
        %v529 = vunpack.c.l.b16 %v378
        %v530 = vunpack.c.l.b16 %v379
        %v531 = vunpack.c.l.b16 %v380
        %v532 = vunpack.c.l.b16 %v381
        %v533 = vunpack.c.l.b16 %v382
        %v534 = vunpack.c.l.b16 %v383
        %v535 = vunpack.c.l.b16 %v384
        %v536 = vunpack.c.l.b16 %v385
        %v537 = vunpack.c.l.b16 %v386
        %v538 = vunpack.c.l.b16 %v387
        %v539 = vunpack.c.l.b16 %v388
        %v540 = vunpack.c.l.b16 %v389
        %v541 = vunpack.c.l.b16 %v390
        %v542 = vunpack.c.l.b16 %v391
        %v543 = vunpack.c.l.b16 %v392
        %v544 = vunpack.c.l.b16 %v393
        %v545 = vunpack.c.l.b16 %v394
        %v546 = vunpack.c.l.b16 %v395
        %v547 = vunpack.c.l.b16 %v396
        %v548 = vunpack.c.l.b16 %v397
        %v549 = vunpack.c.l.b16 %v398
        %v550 = vunpack.c.l.b16 %v399
        %v551 = vunpack.c.l.b16 %v400
        %v552 = vunpack.c.l.b16 %v401
        %v553 = vunpack.c.l.b16 %v402
        %v554 = vunpack.c.l.b16 %v403
        %v555 = vunpack.c.l.b16 %v404
        %v556 = vunpack.c.l.b16 %v405
        %v557 = vunpack.c.l.b16 %v406
        %v558 = vunpack.c.l.b16 %v407
        %v559 = vpack.c.b16 %v512, %v511
        %v560 = vpack.c.b16 %v514, %v513
        %v561 = vpack.c.b16 %v516, %v515
        %v562 = vpack.c.b16 %v518, %v517
        %v563 = vpack.c.b16 %v520, %v519
        %v564 = vpack.c.b16 %v522, %v521
        %v565 = vpack.c.b16 %v524, %v523
        %v566 = vpack.c.b16 %v526, %v525
        %v567 = vpack.c.b16 %v528, %v527
        %v568 = vpack.c.b16 %v530, %v529
        %v569 = vpack.c.b16 %v532, %v531
        %v570 = vpack.c.b16 %v534, %v533
        %v571 = vpack.c.b16 %v536, %v535
        %v572 = vpack.c.b16 %v538, %v537
        %v573 = vpack.c.b16 %v540, %v539
        %v574 = vpack.c.b16 %v542, %v541
        %v575 = vpack.c.b16 %v544, %v543
        %v576 = vpack.c.b16 %v546, %v545
        %v577 = vpack.c.b16 %v548, %v547
        %v578 = vpack.c.b16 %v550, %v549
        %v579 = vpack.c.b16 %v552, %v551
        %v580 = vpack.c.b16 %v554, %v553
        %v581 = vpack.c.b16 %v556, %v555
        %v582 = vpack.c.b16 %v558, %v557
        %v586 = vunpack.c.l.b16 %v456
        %v587 = vunpack.c.l.b16 %v457
        %v588 = vunpack.c.l.b16 %v458
        %v589 = vpack.c.b16 %v587, %v586
        %v590 = vpack.c.b16 %v588, %v588
        %vm592 = vcmask 146432
        %v594 = vsel %vm592, %v559, 0
        %v597 = vsel %vm592, %v560, 0
        %v600 = vsel %vm592, %v561, 0
        %v603 = vsel %vm592, %v562, 0
        %v606 = vsel %vm592, %v563, 0
        %v609 = vsel %vm592, %v564, 0
        %v612 = vsel %vm592, %v565, 0
        %v615 = vsel %vm592, %v566, 0
        %v618 = vsel %vm592, %v567, 0
        %v621 = vsel %vm592, %v568, 0
        %v624 = vsel %vm592, %v569, 0
        %v627 = vsel %vm592, %v570, 0
        %v630 = vsel %vm592, %v571, 0
        %v633 = vsel %vm592, %v572, 0
        %v636 = vsel %vm592, %v573, 0
        %v639 = vsel %vm592, %v574, 0
        %v642 = vsel %vm592, %v575, 0
        %v645 = vsel %vm592, %v576, 0
        %v648 = vsel %vm592, %v577, 0
        %v651 = vsel %vm592, %v578, 0
        %v654 = vsel %vm592, %v579, 0
        %v657 = vsel %vm592, %v580, 0
        %v660 = vsel %vm592, %v581, 0
        %v663 = vsel %vm592, %v582, 0
        %vm665 = vcmask 1040384
        %v667 = vsel %vm665, %v590, 0
        %669 = vmatpush.bf16.msra.mxu0 0
        %670 = vmatpush.bf16.msra.mxu0 0
        %671 = vmatpush.bf16.msra.mxu0 0
        %672 = vmatpush.bf16.msra.mxu0 0
        %673 = vmatpush.bf16.msra.mxu0 0
        %674 = vmatpush.bf16.msra.mxu0 0
        %675 = vmatpush.bf16.msra.mxu0 %v667
        %676 = vmatpush.bf16.msra.mxu0 %v589
        %677 = vmatmul.bf16.gmra.mxu0 %v594
        %v678 = vpop.f32.mrf.mxu0
        %v679 = vadd.f32 %v461, %v678
        %v680 = vpop.f32.mrf.mxu0
        %v681 = vadd.f32 %v461, %v680
        %682 = vmatmul.bf16.gmra.mxu0 %v597
        %v683 = vpop.f32.mrf.mxu0
        %v684 = vadd.f32 %v461, %v683
        %v685 = vpop.f32.mrf.mxu0
        %v686 = vadd.f32 %v461, %v685
        %687 = vmatmul.bf16.gmra.mxu0 %v600
        %v688 = vpop.f32.mrf.mxu0
        %v689 = vadd.f32 %v461, %v688
        %v690 = vpop.f32.mrf.mxu0
        %v691 = vadd.f32 %v461, %v690
        %692 = vmatmul.bf16.gmra.mxu0 %v603
        %v693 = vpop.f32.mrf.mxu0
        %v694 = vadd.f32 %v461, %v693
        %v695 = vpop.f32.mrf.mxu0
        %v696 = vadd.f32 %v461, %v695
        %697 = vmatmul.bf16.gmra.mxu0 %v606
        %v698 = vpop.f32.mrf.mxu0
        %v699 = vadd.f32 %v461, %v698
        %v700 = vpop.f32.mrf.mxu0
        %v701 = vadd.f32 %v461, %v700
        %702 = vmatmul.bf16.gmra.mxu0 %v609
        %v703 = vpop.f32.mrf.mxu0
        %v704 = vadd.f32 %v461, %v703
        %v705 = vpop.f32.mrf.mxu0
        %v706 = vadd.f32 %v461, %v705
        %707 = vmatmul.bf16.gmra.mxu0 %v612
        %v708 = vpop.f32.mrf.mxu0
        %v709 = vadd.f32 %v461, %v708
        %v710 = vpop.f32.mrf.mxu0
        %v711 = vadd.f32 %v461, %v710
        %712 = vmatmul.bf16.gmra.mxu0 %v615
        %v713 = vpop.f32.mrf.mxu0
        %v714 = vadd.f32 %v461, %v713
        %v715 = vpop.f32.mrf.mxu0
        %v716 = vadd.f32 %v461, %v715
        %717 = vmatmul.bf16.gmra.mxu0 %v618
        %v718 = vpop.f32.mrf.mxu0
        %v719 = vadd.f32 %v461, %v718
        %v720 = vpop.f32.mrf.mxu0
        %v721 = vadd.f32 %v461, %v720
        %722 = vmatmul.bf16.gmra.mxu0 %v621
        %v723 = vpop.f32.mrf.mxu0
        %v724 = vadd.f32 %v461, %v723
        %v725 = vpop.f32.mrf.mxu0
        %v726 = vadd.f32 %v461, %v725
        %727 = vmatmul.bf16.gmra.mxu0 %v624
        %v728 = vpop.f32.mrf.mxu0
        %v729 = vadd.f32 %v461, %v728
        %v730 = vpop.f32.mrf.mxu0
        %v731 = vadd.f32 %v461, %v730
        %732 = vmatmul.bf16.gmra.mxu0 %v627
        %v733 = vpop.f32.mrf.mxu0
        %v734 = vadd.f32 %v461, %v733
        %v735 = vpop.f32.mrf.mxu0
        %v736 = vadd.f32 %v461, %v735
        %737 = vmatmul.bf16.gmra.mxu0 %v630
        %v738 = vpop.f32.mrf.mxu0
        %v739 = vadd.f32 %v461, %v738
        %v740 = vpop.f32.mrf.mxu0
        %v741 = vadd.f32 %v461, %v740
        %742 = vmatmul.bf16.gmra.mxu0 %v633
        %v743 = vpop.f32.mrf.mxu0
        %v744 = vadd.f32 %v461, %v743
        %v745 = vpop.f32.mrf.mxu0
        %v746 = vadd.f32 %v461, %v745
        %747 = vmatmul.bf16.gmra.mxu0 %v636
        %v748 = vpop.f32.mrf.mxu0
        %v749 = vadd.f32 %v461, %v748
        %v750 = vpop.f32.mrf.mxu0
        %v751 = vadd.f32 %v461, %v750
        %752 = vmatmul.bf16.gmra.mxu0 %v639
        %v753 = vpop.f32.mrf.mxu0
        %v754 = vadd.f32 %v461, %v753
        %v755 = vpop.f32.mrf.mxu0
        %v756 = vadd.f32 %v461, %v755
        %757 = vmatmul.bf16.gmra.mxu0 %v642
        %v758 = vpop.f32.mrf.mxu0
        %v759 = vadd.f32 %v461, %v758
        %v760 = vpop.f32.mrf.mxu0
        %v761 = vadd.f32 %v461, %v760
        %762 = vmatmul.bf16.gmra.mxu0 %v645
        %v763 = vpop.f32.mrf.mxu0
        %v764 = vadd.f32 %v461, %v763
        %v765 = vpop.f32.mrf.mxu0
        %v766 = vadd.f32 %v461, %v765
        %767 = vmatmul.bf16.gmra.mxu0 %v648
        %v768 = vpop.f32.mrf.mxu0
        %v769 = vadd.f32 %v461, %v768
        %v770 = vpop.f32.mrf.mxu0
        %v771 = vadd.f32 %v461, %v770
        %772 = vmatmul.bf16.gmra.mxu0 %v651
        %v773 = vpop.f32.mrf.mxu0
        %v774 = vadd.f32 %v461, %v773
        %v775 = vpop.f32.mrf.mxu0
        %v776 = vadd.f32 %v461, %v775
        %777 = vmatmul.bf16.gmra.mxu0 %v654
        %v778 = vpop.f32.mrf.mxu0
        %v779 = vadd.f32 %v461, %v778
        %v780 = vpop.f32.mrf.mxu0
        %v781 = vadd.f32 %v461, %v780
        %782 = vmatmul.bf16.gmra.mxu0 %v657
        %v783 = vpop.f32.mrf.mxu0
        %v784 = vadd.f32 %v461, %v783
        %v785 = vpop.f32.mrf.mxu0
        %v786 = vadd.f32 %v461, %v785
        %787 = vmatmul.bf16.gmra.mxu0 %v660
        %v788 = vpop.f32.mrf.mxu0
        %v789 = vadd.f32 %v461, %v788
        %v790 = vpop.f32.mrf.mxu0
        %v791 = vadd.f32 %v461, %v790
        %792 = vmatmul.bf16.gmra.mxu0 %v663
        %v793 = vpop.f32.mrf.mxu0
        %v794 = vadd.f32 %v461, %v793
        %v795 = vpop.f32.mrf.mxu0
        %v796 = vadd.f32 %v461, %v795
        %797 = vdwg.mxu0
        %v798 = vld [vmem:[%s356] sm:$0xf]
        %v799 = vld [vmem:[%s356 + $0x4] sm:$0xf]
        %v800 = vld [vmem:[%s356 + $0x8] sm:$0xf]
        %v801 = vld [vmem:[%s4] sm:$0xf]
        %v802 = vld [vmem:[%s4 + $0x4] sm:$0xf]
        %v803 = vld [vmem:[%s4 + $0x8] sm:$0xf]
        %v804 = vld [vmem:[%s4 + $0xc] sm:$0xf]
        %v805 = vld [vmem:[%s5] sm:$0x1]
        %v807 = vperm.slane %v805, 0
        %v812 = vunpack.c.l.b16 %v798
        %v813 = vunpack.c.l.b16 %v799
        %v814 = vunpack.c.l.b16 %v800
        %v815 = vpack.c.b16 %v813, %v812
        %v816 = vpack.c.b16 %v814, %v814
        %v821 = vunpack.c.l.b16 %v801
        %v822 = vunpack.c.l.b16 %v802
        %v823 = vunpack.c.l.b16 %v803
        %v824 = vunpack.c.l.b16 %v804
        %v825 = vpack.c.b16 %v822, %v821
        %v826 = vpack.c.b16 %v824, %v823
        %vm829 = vcmask 261120
        %v831 = vsel %vm829, %v815, 0
        %v834 = vsel %vm829, %v816, 0
        %836 = vmatpush.bf16.msra.mxu0 0
        %837 = vmatpush.bf16.msra.mxu0 0
        %838 = vmatpush.bf16.msra.mxu0 0
        %839 = vmatpush.bf16.msra.mxu0 0
        %840 = vmatpush.bf16.msra.mxu0 0
        %841 = vmatpush.bf16.msra.mxu0 0
        %842 = vmatpush.bf16.msra.mxu0 %v826
        %843 = vmatpush.bf16.msra.mxu0 %v825
        %844 = vmatmul.bf16.gmra.mxu0 %v831
        %v845 = vpop.f32.mrf.mxu0
        %v846 = vadd.f32 %v807, %v845
        %v847 = vpop.f32.mrf.mxu0
        %v848 = vadd.f32 %v807, %v847
        %849 = vmatmul.bf16.gmra.mxu0 %v834
        %v850 = vpop.f32.mrf.mxu0
        %v851 = vadd.f32 %v807, %v850
        %v852 = vpop.f32.mrf.mxu0
        %853 = vdwg.mxu0
        %v857 = vrot.slane %v846, 1
        %v858 = vrot.slane %v846, 2
        %v859 = vrot.slane %v846, 3
        %v860 = vrot.slane %v846, 4
        %v861 = vrot.slane %v846, 5
        %v862 = vrot.slane %v846, 6
        %v863 = vrot.slane %v846, 7
        %v864 = vrot.slane %v848, 1
        %v865 = vrot.slane %v848, 2
        %v866 = vrot.slane %v848, 3
        %v867 = vrot.slane %v848, 4
        %v868 = vrot.slane %v848, 5
        %v869 = vrot.slane %v848, 6
        %v870 = vrot.slane %v848, 7
        %v871 = vrot.slane %v851, 1
        %v872 = vrot.slane %v851, 2
        %v873 = vrot.slane %v851, 3
        %v874 = vrot.slane %v851, 4
        %v875 = vrot.slane %v851, 5
        %v876 = vrot.slane %v851, 6
        %v877 = vrot.slane %v851, 7
        %v878 = vperm.slane %v846, 0
        %v879 = vperm.slane %v857, 0
        %v880 = vperm.slane %v858, 0
        %v881 = vperm.slane %v859, 0
        %v882 = vperm.slane %v860, 0
        %v883 = vperm.slane %v861, 0
        %v884 = vperm.slane %v862, 0
        %v885 = vperm.slane %v863, 0
        %v886 = vperm.slane %v848, 0
        %v887 = vperm.slane %v864, 0
        %v888 = vperm.slane %v865, 0
        %v889 = vperm.slane %v866, 0
        %v890 = vperm.slane %v867, 0
        %v891 = vperm.slane %v868, 0
        %v892 = vperm.slane %v869, 0
        %v893 = vperm.slane %v870, 0
        %v894 = vperm.slane %v851, 0
        %v895 = vperm.slane %v871, 0
        %v896 = vperm.slane %v872, 0
        %v897 = vperm.slane %v873, 0
        %v898 = vperm.slane %v874, 0
        %v899 = vperm.slane %v875, 0
        %v900 = vperm.slane %v876, 0
        %v901 = vperm.slane %v877, 0
        %v926 = vadd.f32 %v679, %v878
        %v927 = vadd.f32 %v681, %v878
        %v928 = vadd.f32 %v684, %v879
        %v929 = vadd.f32 %v686, %v879
        %v930 = vadd.f32 %v689, %v880
        %v931 = vadd.f32 %v691, %v880
        %v932 = vadd.f32 %v694, %v881
        %v933 = vadd.f32 %v696, %v881
        %v934 = vadd.f32 %v699, %v882
        %v935 = vadd.f32 %v701, %v882
        %v936 = vadd.f32 %v704, %v883
        %v937 = vadd.f32 %v706, %v883
        %v938 = vadd.f32 %v709, %v884
        %v939 = vadd.f32 %v711, %v884
        %v940 = vadd.f32 %v714, %v885
        %v941 = vadd.f32 %v716, %v885
        %v942 = vadd.f32 %v719, %v886
        %v943 = vadd.f32 %v721, %v886
        %v944 = vadd.f32 %v724, %v887
        %v945 = vadd.f32 %v726, %v887
        %v946 = vadd.f32 %v729, %v888
        %v947 = vadd.f32 %v731, %v888
        %v948 = vadd.f32 %v734, %v889
        %v949 = vadd.f32 %v736, %v889
        %v950 = vadd.f32 %v739, %v890
        %v951 = vadd.f32 %v741, %v890
        %v952 = vadd.f32 %v744, %v891
        %v953 = vadd.f32 %v746, %v891
        %v954 = vadd.f32 %v749, %v892
        %v955 = vadd.f32 %v751, %v892
        %v956 = vadd.f32 %v754, %v893
        %v957 = vadd.f32 %v756, %v893
        %v958 = vadd.f32 %v759, %v894
        %v959 = vadd.f32 %v761, %v894
        %v960 = vadd.f32 %v764, %v895
        %v961 = vadd.f32 %v766, %v895
        %v962 = vadd.f32 %v769, %v896
        %v963 = vadd.f32 %v771, %v896
        %v964 = vadd.f32 %v774, %v897
        %v965 = vadd.f32 %v776, %v897
        %v966 = vadd.f32 %v779, %v898
        %v967 = vadd.f32 %v781, %v898
        %v968 = vadd.f32 %v784, %v899
        %v969 = vadd.f32 %v786, %v899
        %v970 = vadd.f32 %v789, %v900
        %v971 = vadd.f32 %v791, %v900
        %v972 = vadd.f32 %v794, %v901
        %v973 = vadd.f32 %v796, %v901
        %v974 = vxor.u32 %v926, 2147483648
        %v975 = vxor.u32 %v927, 2147483648
        %v976 = vxor.u32 %v928, 2147483648
        %v977 = vxor.u32 %v929, 2147483648
        %v978 = vxor.u32 %v930, 2147483648
        %v979 = vxor.u32 %v931, 2147483648
        %v980 = vxor.u32 %v932, 2147483648
        %v981 = vxor.u32 %v933, 2147483648
        %v982 = vxor.u32 %v934, 2147483648
        %v983 = vxor.u32 %v935, 2147483648
        %v984 = vxor.u32 %v936, 2147483648
        %v985 = vxor.u32 %v937, 2147483648
        %v986 = vxor.u32 %v938, 2147483648
        %v987 = vxor.u32 %v939, 2147483648
        %v988 = vxor.u32 %v940, 2147483648
        %v989 = vxor.u32 %v941, 2147483648
        %v990 = vxor.u32 %v942, 2147483648
        %v991 = vxor.u32 %v943, 2147483648
        %v992 = vxor.u32 %v944, 2147483648
        %v993 = vxor.u32 %v945, 2147483648
        %v994 = vxor.u32 %v946, 2147483648
        %v995 = vxor.u32 %v947, 2147483648
        %v996 = vxor.u32 %v948, 2147483648
        %v997 = vxor.u32 %v949, 2147483648
        %v998 = vxor.u32 %v950, 2147483648
        %v999 = vxor.u32 %v951, 2147483648
        %v1000 = vxor.u32 %v952, 2147483648
        %v1001 = vxor.u32 %v953, 2147483648
        %v1002 = vxor.u32 %v954, 2147483648
        %v1003 = vxor.u32 %v955, 2147483648
        %v1004 = vxor.u32 %v956, 2147483648
        %v1005 = vxor.u32 %v957, 2147483648
        %v1006 = vxor.u32 %v958, 2147483648
        %v1007 = vxor.u32 %v959, 2147483648
        %v1008 = vxor.u32 %v960, 2147483648
        %v1009 = vxor.u32 %v961, 2147483648
        %v1010 = vxor.u32 %v962, 2147483648
        %v1011 = vxor.u32 %v963, 2147483648
        %v1012 = vxor.u32 %v964, 2147483648
        %v1013 = vxor.u32 %v965, 2147483648
        %v1014 = vxor.u32 %v966, 2147483648
        %v1015 = vxor.u32 %v967, 2147483648
        %v1016 = vxor.u32 %v968, 2147483648
        %v1017 = vxor.u32 %v969, 2147483648
        %v1018 = vxor.u32 %v970, 2147483648
        %v1019 = vxor.u32 %v971, 2147483648
        %v1020 = vxor.u32 %v972, 2147483648
        %v1021 = vxor.u32 %v973, 2147483648
        %v1022 = vmul.f32 %v974, 1.442695
        %v1023 = vpow.pop %v1022
        %v1024 = vmul.f32 %v975, 1.442695
        %v1025 = vpow.pop %v1024
        %v1026 = vmul.f32 %v976, 1.442695
        %v1027 = vpow.pop %v1026
        %v1028 = vmul.f32 %v977, 1.442695
        %v1029 = vpow.pop %v1028
        %v1030 = vmul.f32 %v978, 1.442695
        %v1031 = vpow.pop %v1030
        %v1032 = vmul.f32 %v979, 1.442695
        %v1033 = vpow.pop %v1032
        %v1034 = vmul.f32 %v980, 1.442695
        %v1035 = vpow.pop %v1034
        %v1036 = vmul.f32 %v981, 1.442695
        %v1037 = vpow.pop %v1036
        %v1038 = vmul.f32 %v982, 1.442695
        %v1039 = vpow.pop %v1038
        %v1040 = vmul.f32 %v983, 1.442695
        %v1041 = vpow.pop %v1040
        %v1042 = vmul.f32 %v984, 1.442695
        %v1043 = vpow.pop %v1042
        %v1044 = vmul.f32 %v985, 1.442695
        %v1045 = vpow.pop %v1044
        %v1046 = vmul.f32 %v986, 1.442695
        %v1047 = vpow.pop %v1046
        %v1048 = vmul.f32 %v987, 1.442695
        %v1049 = vpow.pop %v1048
        %v1050 = vmul.f32 %v988, 1.442695
        %v1051 = vpow.pop %v1050
        %v1052 = vmul.f32 %v989, 1.442695
        %v1053 = vpow.pop %v1052
        %v1054 = vmul.f32 %v990, 1.442695
        %v1055 = vpow.pop %v1054
        %v1056 = vmul.f32 %v991, 1.442695
        %v1057 = vpow.pop %v1056
        %v1058 = vmul.f32 %v992, 1.442695
        %v1059 = vpow.pop %v1058
        %v1060 = vmul.f32 %v993, 1.442695
        %v1061 = vpow.pop %v1060
        %v1062 = vmul.f32 %v994, 1.442695
        %v1063 = vpow.pop %v1062
        %v1064 = vmul.f32 %v995, 1.442695
        %v1065 = vpow.pop %v1064
        %v1066 = vmul.f32 %v996, 1.442695
        %v1067 = vpow.pop %v1066
        %v1068 = vmul.f32 %v997, 1.442695
        %v1069 = vpow.pop %v1068
        %v1070 = vmul.f32 %v998, 1.442695
        %v1071 = vpow.pop %v1070
        %v1072 = vmul.f32 %v999, 1.442695
        %v1073 = vpow.pop %v1072
        %v1074 = vmul.f32 %v1000, 1.442695
        %v1075 = vpow.pop %v1074
        %v1076 = vmul.f32 %v1001, 1.442695
        %v1077 = vpow.pop %v1076
        %v1078 = vmul.f32 %v1002, 1.442695
        %v1079 = vpow.pop %v1078
        %v1080 = vmul.f32 %v1003, 1.442695
        %v1081 = vpow.pop %v1080
        %v1082 = vmul.f32 %v1004, 1.442695
        %v1083 = vpow.pop %v1082
        %v1084 = vmul.f32 %v1005, 1.442695
        %v1085 = vpow.pop %v1084
        %v1086 = vmul.f32 %v1006, 1.442695
        %v1087 = vpow.pop %v1086
        %v1088 = vmul.f32 %v1007, 1.442695
        %v1089 = vpow.pop %v1088
        %v1090 = vmul.f32 %v1008, 1.442695
        %v1091 = vpow.pop %v1090
        %v1092 = vmul.f32 %v1009, 1.442695
        %v1093 = vpow.pop %v1092
        %v1094 = vmul.f32 %v1010, 1.442695
        %v1095 = vpow.pop %v1094
        %v1096 = vmul.f32 %v1011, 1.442695
        %v1097 = vpow.pop %v1096
        %v1098 = vmul.f32 %v1012, 1.442695
        %v1099 = vpow.pop %v1098
        %v1100 = vmul.f32 %v1013, 1.442695
        %v1101 = vpow.pop %v1100
        %v1102 = vmul.f32 %v1014, 1.442695
        %v1103 = vpow.pop %v1102
        %v1104 = vmul.f32 %v1015, 1.442695
        %v1105 = vpow.pop %v1104
        %v1106 = vmul.f32 %v1016, 1.442695
        %v1107 = vpow.pop %v1106
        %v1108 = vmul.f32 %v1017, 1.442695
        %v1109 = vpow.pop %v1108
        %v1110 = vmul.f32 %v1018, 1.442695
        %v1111 = vpow.pop %v1110
        %v1112 = vmul.f32 %v1019, 1.442695
        %v1113 = vpow.pop %v1112
        %v1114 = vmul.f32 %v1020, 1.442695
        %v1115 = vpow.pop %v1114
        %v1116 = vmul.f32 %v1021, 1.442695
        %v1117 = vpow.pop %v1116
        %v1118 = vadd.f32 %v1023, 1.0
        %v1119 = vadd.f32 %v1025, 1.0
        %v1120 = vadd.f32 %v1027, 1.0
        %v1121 = vadd.f32 %v1029, 1.0
        %v1122 = vadd.f32 %v1031, 1.0
        %v1123 = vadd.f32 %v1033, 1.0
        %v1124 = vadd.f32 %v1035, 1.0
        %v1125 = vadd.f32 %v1037, 1.0
        %v1126 = vadd.f32 %v1039, 1.0
        %v1127 = vadd.f32 %v1041, 1.0
        %v1128 = vadd.f32 %v1043, 1.0
        %v1129 = vadd.f32 %v1045, 1.0
        %v1130 = vadd.f32 %v1047, 1.0
        %v1131 = vadd.f32 %v1049, 1.0
        %v1132 = vadd.f32 %v1051, 1.0
        %v1133 = vadd.f32 %v1053, 1.0
        %v1134 = vadd.f32 %v1055, 1.0
        %v1135 = vadd.f32 %v1057, 1.0
        %v1136 = vadd.f32 %v1059, 1.0
        %v1137 = vadd.f32 %v1061, 1.0
        %v1138 = vadd.f32 %v1063, 1.0
        %v1139 = vadd.f32 %v1065, 1.0
        %v1140 = vadd.f32 %v1067, 1.0
        %v1141 = vadd.f32 %v1069, 1.0
        %v1142 = vadd.f32 %v1071, 1.0
        %v1143 = vadd.f32 %v1073, 1.0
        %v1144 = vadd.f32 %v1075, 1.0
        %v1145 = vadd.f32 %v1077, 1.0
        %v1146 = vadd.f32 %v1079, 1.0
        %v1147 = vadd.f32 %v1081, 1.0
        %v1148 = vadd.f32 %v1083, 1.0
        %v1149 = vadd.f32 %v1085, 1.0
        %v1150 = vadd.f32 %v1087, 1.0
        %v1151 = vadd.f32 %v1089, 1.0
        %v1152 = vadd.f32 %v1091, 1.0
        %v1153 = vadd.f32 %v1093, 1.0
        %v1154 = vadd.f32 %v1095, 1.0
        %v1155 = vadd.f32 %v1097, 1.0
        %v1156 = vadd.f32 %v1099, 1.0
        %v1157 = vadd.f32 %v1101, 1.0
        %v1158 = vadd.f32 %v1103, 1.0
        %v1159 = vadd.f32 %v1105, 1.0
        %v1160 = vadd.f32 %v1107, 1.0
        %v1161 = vadd.f32 %v1109, 1.0
        %v1162 = vadd.f32 %v1111, 1.0
        %v1163 = vadd.f32 %v1113, 1.0
        %v1164 = vadd.f32 %v1115, 1.0
        %v1165 = vadd.f32 %v1117, 1.0
        %v1166 = vrcp.pop %v1118
        %v1167 = vmul.f32 %v1118, %v1166
        %v1168 = vsub.f32 1.0, %v1167
        %v1169 = vmul.f32 %v1166, %v1168
        %v1170 = vadd.f32 %v1166, %v1169
        %vm1171 = vweird.f32 %v1118
        %vm1172 = vweird.f32 %v1166
        %vm1173 = vmor %vm1171, %vm1172
        %v1174 = vsel %vm1173, %v1166, %v1170
        %v1175 = vand.u32 2147483647, %v1118
        %vm1176 = vcmp.eq.f32.partialorder %v1175, 8.507059e+37
        %v1177 = vand.u32 %v1118, 2147483648
        %v1178 = vor.u32 1.1754944e-38, %v1177
        %v1179 = vsel %vm1176, %v1178, %v1174
        %v1180 = vmul.f32 1.0, %v1179
        %v1181 = vrcp.pop %v1119
        %v1182 = vmul.f32 %v1119, %v1181
        %v1183 = vsub.f32 1.0, %v1182
        %v1184 = vmul.f32 %v1181, %v1183
        %v1185 = vadd.f32 %v1181, %v1184
        %vm1186 = vweird.f32 %v1119
        %vm1187 = vweird.f32 %v1181
        %vm1188 = vmor %vm1186, %vm1187
        %v1189 = vsel %vm1188, %v1181, %v1185
        %v1190 = vand.u32 2147483647, %v1119
        %vm1191 = vcmp.eq.f32.partialorder %v1190, 8.507059e+37
        %v1192 = vand.u32 %v1119, 2147483648
        %v1193 = vor.u32 1.1754944e-38, %v1192
        %v1194 = vsel %vm1191, %v1193, %v1189
        %v1195 = vmul.f32 1.0, %v1194
        %v1196 = vrcp.pop %v1120
        %v1197 = vmul.f32 %v1120, %v1196
        %v1198 = vsub.f32 1.0, %v1197
        %v1199 = vmul.f32 %v1196, %v1198
        %v1200 = vadd.f32 %v1196, %v1199
        %vm1201 = vweird.f32 %v1120
        %vm1202 = vweird.f32 %v1196
        %vm1203 = vmor %vm1201, %vm1202
        %v1204 = vsel %vm1203, %v1196, %v1200
        %v1205 = vand.u32 2147483647, %v1120
        %vm1206 = vcmp.eq.f32.partialorder %v1205, 8.507059e+37
        %v1207 = vand.u32 %v1120, 2147483648
        %v1208 = vor.u32 1.1754944e-38, %v1207
        %v1209 = vsel %vm1206, %v1208, %v1204
        %v1210 = vmul.f32 1.0, %v1209
        %v1211 = vrcp.pop %v1121
        %v1212 = vmul.f32 %v1121, %v1211
        %v1213 = vsub.f32 1.0, %v1212
        %v1214 = vmul.f32 %v1211, %v1213
        %v1215 = vadd.f32 %v1211, %v1214
        %vm1216 = vweird.f32 %v1121
        %vm1217 = vweird.f32 %v1211
        %vm1218 = vmor %vm1216, %vm1217
        %v1219 = vsel %vm1218, %v1211, %v1215
        %v1220 = vand.u32 2147483647, %v1121
        %vm1221 = vcmp.eq.f32.partialorder %v1220, 8.507059e+37
        %v1222 = vand.u32 %v1121, 2147483648
        %v1223 = vor.u32 1.1754944e-38, %v1222
        %v1224 = vsel %vm1221, %v1223, %v1219
        %v1225 = vmul.f32 1.0, %v1224
        %v1226 = vrcp.pop %v1122
        %v1227 = vmul.f32 %v1122, %v1226
        %v1228 = vsub.f32 1.0, %v1227
        %v1229 = vmul.f32 %v1226, %v1228
        %v1230 = vadd.f32 %v1226, %v1229
        %vm1231 = vweird.f32 %v1122
        %vm1232 = vweird.f32 %v1226
        %vm1233 = vmor %vm1231, %vm1232
        %v1234 = vsel %vm1233, %v1226, %v1230
        %v1235 = vand.u32 2147483647, %v1122
        %vm1236 = vcmp.eq.f32.partialorder %v1235, 8.507059e+37
        %v1237 = vand.u32 %v1122, 2147483648
        %v1238 = vor.u32 1.1754944e-38, %v1237
        %v1239 = vsel %vm1236, %v1238, %v1234
        %v1240 = vmul.f32 1.0, %v1239
        %v1241 = vrcp.pop %v1123
        %v1242 = vmul.f32 %v1123, %v1241
        %v1243 = vsub.f32 1.0, %v1242
        %v1244 = vmul.f32 %v1241, %v1243
        %v1245 = vadd.f32 %v1241, %v1244
        %vm1246 = vweird.f32 %v1123
        %vm1247 = vweird.f32 %v1241
        %vm1248 = vmor %vm1246, %vm1247
        %v1249 = vsel %vm1248, %v1241, %v1245
        %v1250 = vand.u32 2147483647, %v1123
        %vm1251 = vcmp.eq.f32.partialorder %v1250, 8.507059e+37
        %v1252 = vand.u32 %v1123, 2147483648
        %v1253 = vor.u32 1.1754944e-38, %v1252
        %v1254 = vsel %vm1251, %v1253, %v1249
        %v1255 = vmul.f32 1.0, %v1254
        %v1256 = vrcp.pop %v1124
        %v1257 = vmul.f32 %v1124, %v1256
        %v1258 = vsub.f32 1.0, %v1257
        %v1259 = vmul.f32 %v1256, %v1258
        %v1260 = vadd.f32 %v1256, %v1259
        %vm1261 = vweird.f32 %v1124
        %vm1262 = vweird.f32 %v1256
        %vm1263 = vmor %vm1261, %vm1262
        %v1264 = vsel %vm1263, %v1256, %v1260
        %v1265 = vand.u32 2147483647, %v1124
        %vm1266 = vcmp.eq.f32.partialorder %v1265, 8.507059e+37
        %v1267 = vand.u32 %v1124, 2147483648
        %v1268 = vor.u32 1.1754944e-38, %v1267
        %v1269 = vsel %vm1266, %v1268, %v1264
        %v1270 = vmul.f32 1.0, %v1269
        %v1271 = vrcp.pop %v1125
        %v1272 = vmul.f32 %v1125, %v1271
        %v1273 = vsub.f32 1.0, %v1272
        %v1274 = vmul.f32 %v1271, %v1273
        %v1275 = vadd.f32 %v1271, %v1274
        %vm1276 = vweird.f32 %v1125
        %vm1277 = vweird.f32 %v1271
        %vm1278 = vmor %vm1276, %vm1277
        %v1279 = vsel %vm1278, %v1271, %v1275
        %v1280 = vand.u32 2147483647, %v1125
        %vm1281 = vcmp.eq.f32.partialorder %v1280, 8.507059e+37
        %v1282 = vand.u32 %v1125, 2147483648
        %v1283 = vor.u32 1.1754944e-38, %v1282
        %v1284 = vsel %vm1281, %v1283, %v1279
        %v1285 = vmul.f32 1.0, %v1284
        %v1286 = vrcp.pop %v1126
        %v1287 = vmul.f32 %v1126, %v1286
        %v1288 = vsub.f32 1.0, %v1287
        %v1289 = vmul.f32 %v1286, %v1288
        %v1290 = vadd.f32 %v1286, %v1289
        %vm1291 = vweird.f32 %v1126
        %vm1292 = vweird.f32 %v1286
        %vm1293 = vmor %vm1291, %vm1292
        %v1294 = vsel %vm1293, %v1286, %v1290
        %v1295 = vand.u32 2147483647, %v1126
        %vm1296 = vcmp.eq.f32.partialorder %v1295, 8.507059e+37
        %v1297 = vand.u32 %v1126, 2147483648
        %v1298 = vor.u32 1.1754944e-38, %v1297
        %v1299 = vsel %vm1296, %v1298, %v1294
        %v1300 = vmul.f32 1.0, %v1299
        %v1301 = vrcp.pop %v1127
        %v1302 = vmul.f32 %v1127, %v1301
        %v1303 = vsub.f32 1.0, %v1302
        %v1304 = vmul.f32 %v1301, %v1303
        %v1305 = vadd.f32 %v1301, %v1304
        %vm1306 = vweird.f32 %v1127
        %vm1307 = vweird.f32 %v1301
        %vm1308 = vmor %vm1306, %vm1307
        %v1309 = vsel %vm1308, %v1301, %v1305
        %v1310 = vand.u32 2147483647, %v1127
        %vm1311 = vcmp.eq.f32.partialorder %v1310, 8.507059e+37
        %v1312 = vand.u32 %v1127, 2147483648
        %v1313 = vor.u32 1.1754944e-38, %v1312
        %v1314 = vsel %vm1311, %v1313, %v1309
        %v1315 = vmul.f32 1.0, %v1314
        %v1316 = vrcp.pop %v1128
        %v1317 = vmul.f32 %v1128, %v1316
        %v1318 = vsub.f32 1.0, %v1317
        %v1319 = vmul.f32 %v1316, %v1318
        %v1320 = vadd.f32 %v1316, %v1319
        %vm1321 = vweird.f32 %v1128
        %vm1322 = vweird.f32 %v1316
        %vm1323 = vmor %vm1321, %vm1322
        %v1324 = vsel %vm1323, %v1316, %v1320
        %v1325 = vand.u32 2147483647, %v1128
        %vm1326 = vcmp.eq.f32.partialorder %v1325, 8.507059e+37
        %v1327 = vand.u32 %v1128, 2147483648
        %v1328 = vor.u32 1.1754944e-38, %v1327
        %v1329 = vsel %vm1326, %v1328, %v1324
        %v1330 = vmul.f32 1.0, %v1329
        %v1331 = vrcp.pop %v1129
        %v1332 = vmul.f32 %v1129, %v1331
        %v1333 = vsub.f32 1.0, %v1332
        %v1334 = vmul.f32 %v1331, %v1333
        %v1335 = vadd.f32 %v1331, %v1334
        %vm1336 = vweird.f32 %v1129
        %vm1337 = vweird.f32 %v1331
        %vm1338 = vmor %vm1336, %vm1337
        %v1339 = vsel %vm1338, %v1331, %v1335
        %v1340 = vand.u32 2147483647, %v1129
        %vm1341 = vcmp.eq.f32.partialorder %v1340, 8.507059e+37
        %v1342 = vand.u32 %v1129, 2147483648
        %v1343 = vor.u32 1.1754944e-38, %v1342
        %v1344 = vsel %vm1341, %v1343, %v1339
        %v1345 = vmul.f32 1.0, %v1344
        %v1346 = vrcp.pop %v1130
        %v1347 = vmul.f32 %v1130, %v1346
        %v1348 = vsub.f32 1.0, %v1347
        %v1349 = vmul.f32 %v1346, %v1348
        %v1350 = vadd.f32 %v1346, %v1349
        %vm1351 = vweird.f32 %v1130
        %vm1352 = vweird.f32 %v1346
        %vm1353 = vmor %vm1351, %vm1352
        %v1354 = vsel %vm1353, %v1346, %v1350
        %v1355 = vand.u32 2147483647, %v1130
        %vm1356 = vcmp.eq.f32.partialorder %v1355, 8.507059e+37
        %v1357 = vand.u32 %v1130, 2147483648
        %v1358 = vor.u32 1.1754944e-38, %v1357
        %v1359 = vsel %vm1356, %v1358, %v1354
        %v1360 = vmul.f32 1.0, %v1359
        %v1361 = vrcp.pop %v1131
        %v1362 = vmul.f32 %v1131, %v1361
        %v1363 = vsub.f32 1.0, %v1362
        %v1364 = vmul.f32 %v1361, %v1363
        %v1365 = vadd.f32 %v1361, %v1364
        %vm1366 = vweird.f32 %v1131
        %vm1367 = vweird.f32 %v1361
        %vm1368 = vmor %vm1366, %vm1367
        %v1369 = vsel %vm1368, %v1361, %v1365
        %v1370 = vand.u32 2147483647, %v1131
        %vm1371 = vcmp.eq.f32.partialorder %v1370, 8.507059e+37
        %v1372 = vand.u32 %v1131, 2147483648
        %v1373 = vor.u32 1.1754944e-38, %v1372
        %v1374 = vsel %vm1371, %v1373, %v1369
        %v1375 = vmul.f32 1.0, %v1374
        %v1376 = vrcp.pop %v1132
        %v1377 = vmul.f32 %v1132, %v1376
        %v1378 = vsub.f32 1.0, %v1377
        %v1379 = vmul.f32 %v1376, %v1378
        %v1380 = vadd.f32 %v1376, %v1379
        %vm1381 = vweird.f32 %v1132
        %vm1382 = vweird.f32 %v1376
        %vm1383 = vmor %vm1381, %vm1382
        %v1384 = vsel %vm1383, %v1376, %v1380
        %v1385 = vand.u32 2147483647, %v1132
        %vm1386 = vcmp.eq.f32.partialorder %v1385, 8.507059e+37
        %v1387 = vand.u32 %v1132, 2147483648
        %v1388 = vor.u32 1.1754944e-38, %v1387
        %v1389 = vsel %vm1386, %v1388, %v1384
        %v1390 = vmul.f32 1.0, %v1389
        %v1391 = vrcp.pop %v1133
        %v1392 = vmul.f32 %v1133, %v1391
        %v1393 = vsub.f32 1.0, %v1392
        %v1394 = vmul.f32 %v1391, %v1393
        %v1395 = vadd.f32 %v1391, %v1394
        %vm1396 = vweird.f32 %v1133
        %vm1397 = vweird.f32 %v1391
        %vm1398 = vmor %vm1396, %vm1397
        %v1399 = vsel %vm1398, %v1391, %v1395
        %v1400 = vand.u32 2147483647, %v1133
        %vm1401 = vcmp.eq.f32.partialorder %v1400, 8.507059e+37
        %v1402 = vand.u32 %v1133, 2147483648
        %v1403 = vor.u32 1.1754944e-38, %v1402
        %v1404 = vsel %vm1401, %v1403, %v1399
        %v1405 = vmul.f32 1.0, %v1404
        %v1406 = vrcp.pop %v1134
        %v1407 = vmul.f32 %v1134, %v1406
        %v1408 = vsub.f32 1.0, %v1407
        %v1409 = vmul.f32 %v1406, %v1408
        %v1410 = vadd.f32 %v1406, %v1409
        %vm1411 = vweird.f32 %v1134
        %vm1412 = vweird.f32 %v1406
        %vm1413 = vmor %vm1411, %vm1412
        %v1414 = vsel %vm1413, %v1406, %v1410
        %v1415 = vand.u32 2147483647, %v1134
        %vm1416 = vcmp.eq.f32.partialorder %v1415, 8.507059e+37
        %v1417 = vand.u32 %v1134, 2147483648
        %v1418 = vor.u32 1.1754944e-38, %v1417
        %v1419 = vsel %vm1416, %v1418, %v1414
        %v1420 = vmul.f32 1.0, %v1419
        %v1421 = vrcp.pop %v1135
        %v1422 = vmul.f32 %v1135, %v1421
        %v1423 = vsub.f32 1.0, %v1422
        %v1424 = vmul.f32 %v1421, %v1423
        %v1425 = vadd.f32 %v1421, %v1424
        %vm1426 = vweird.f32 %v1135
        %vm1427 = vweird.f32 %v1421
        %vm1428 = vmor %vm1426, %vm1427
        %v1429 = vsel %vm1428, %v1421, %v1425
        %v1430 = vand.u32 2147483647, %v1135
        %vm1431 = vcmp.eq.f32.partialorder %v1430, 8.507059e+37
        %v1432 = vand.u32 %v1135, 2147483648
        %v1433 = vor.u32 1.1754944e-38, %v1432
        %v1434 = vsel %vm1431, %v1433, %v1429
        %v1435 = vmul.f32 1.0, %v1434
        %v1436 = vrcp.pop %v1136
        %v1437 = vmul.f32 %v1136, %v1436
        %v1438 = vsub.f32 1.0, %v1437
        %v1439 = vmul.f32 %v1436, %v1438
        %v1440 = vadd.f32 %v1436, %v1439
        %vm1441 = vweird.f32 %v1136
        %vm1442 = vweird.f32 %v1436
        %vm1443 = vmor %vm1441, %vm1442
        %v1444 = vsel %vm1443, %v1436, %v1440
        %v1445 = vand.u32 2147483647, %v1136
        %vm1446 = vcmp.eq.f32.partialorder %v1445, 8.507059e+37
        %v1447 = vand.u32 %v1136, 2147483648
        %v1448 = vor.u32 1.1754944e-38, %v1447
        %v1449 = vsel %vm1446, %v1448, %v1444
        %v1450 = vmul.f32 1.0, %v1449
        %v1451 = vrcp.pop %v1137
        %v1452 = vmul.f32 %v1137, %v1451
        %v1453 = vsub.f32 1.0, %v1452
        %v1454 = vmul.f32 %v1451, %v1453
        %v1455 = vadd.f32 %v1451, %v1454
        %vm1456 = vweird.f32 %v1137
        %vm1457 = vweird.f32 %v1451
        %vm1458 = vmor %vm1456, %vm1457
        %v1459 = vsel %vm1458, %v1451, %v1455
        %v1460 = vand.u32 2147483647, %v1137
        %vm1461 = vcmp.eq.f32.partialorder %v1460, 8.507059e+37
        %v1462 = vand.u32 %v1137, 2147483648
        %v1463 = vor.u32 1.1754944e-38, %v1462
        %v1464 = vsel %vm1461, %v1463, %v1459
        %v1465 = vmul.f32 1.0, %v1464
        %v1466 = vrcp.pop %v1138
        %v1467 = vmul.f32 %v1138, %v1466
        %v1468 = vsub.f32 1.0, %v1467
        %v1469 = vmul.f32 %v1466, %v1468
        %v1470 = vadd.f32 %v1466, %v1469
        %vm1471 = vweird.f32 %v1138
        %vm1472 = vweird.f32 %v1466
        %vm1473 = vmor %vm1471, %vm1472
        %v1474 = vsel %vm1473, %v1466, %v1470
        %v1475 = vand.u32 2147483647, %v1138
        %vm1476 = vcmp.eq.f32.partialorder %v1475, 8.507059e+37
        %v1477 = vand.u32 %v1138, 2147483648
        %v1478 = vor.u32 1.1754944e-38, %v1477
        %v1479 = vsel %vm1476, %v1478, %v1474
        %v1480 = vmul.f32 1.0, %v1479
        %v1481 = vrcp.pop %v1139
        %v1482 = vmul.f32 %v1139, %v1481
        %v1483 = vsub.f32 1.0, %v1482
        %v1484 = vmul.f32 %v1481, %v1483
        %v1485 = vadd.f32 %v1481, %v1484
        %vm1486 = vweird.f32 %v1139
        %vm1487 = vweird.f32 %v1481
        %vm1488 = vmor %vm1486, %vm1487
        %v1489 = vsel %vm1488, %v1481, %v1485
        %v1490 = vand.u32 2147483647, %v1139
        %vm1491 = vcmp.eq.f32.partialorder %v1490, 8.507059e+37
        %v1492 = vand.u32 %v1139, 2147483648
        %v1493 = vor.u32 1.1754944e-38, %v1492
        %v1494 = vsel %vm1491, %v1493, %v1489
        %v1495 = vmul.f32 1.0, %v1494
        %v1496 = vrcp.pop %v1140
        %v1497 = vmul.f32 %v1140, %v1496
        %v1498 = vsub.f32 1.0, %v1497
        %v1499 = vmul.f32 %v1496, %v1498
        %v1500 = vadd.f32 %v1496, %v1499
        %vm1501 = vweird.f32 %v1140
        %vm1502 = vweird.f32 %v1496
        %vm1503 = vmor %vm1501, %vm1502
        %v1504 = vsel %vm1503, %v1496, %v1500
        %v1505 = vand.u32 2147483647, %v1140
        %vm1506 = vcmp.eq.f32.partialorder %v1505, 8.507059e+37
        %v1507 = vand.u32 %v1140, 2147483648
        %v1508 = vor.u32 1.1754944e-38, %v1507
        %v1509 = vsel %vm1506, %v1508, %v1504
        %v1510 = vmul.f32 1.0, %v1509
        %v1511 = vrcp.pop %v1141
        %v1512 = vmul.f32 %v1141, %v1511
        %v1513 = vsub.f32 1.0, %v1512
        %v1514 = vmul.f32 %v1511, %v1513
        %v1515 = vadd.f32 %v1511, %v1514
        %vm1516 = vweird.f32 %v1141
        %vm1517 = vweird.f32 %v1511
        %vm1518 = vmor %vm1516, %vm1517
        %v1519 = vsel %vm1518, %v1511, %v1515
        %v1520 = vand.u32 2147483647, %v1141
        %vm1521 = vcmp.eq.f32.partialorder %v1520, 8.507059e+37
        %v1522 = vand.u32 %v1141, 2147483648
        %v1523 = vor.u32 1.1754944e-38, %v1522
        %v1524 = vsel %vm1521, %v1523, %v1519
        %v1525 = vmul.f32 1.0, %v1524
        %v1526 = vrcp.pop %v1142
        %v1527 = vmul.f32 %v1142, %v1526
        %v1528 = vsub.f32 1.0, %v1527
        %v1529 = vmul.f32 %v1526, %v1528
        %v1530 = vadd.f32 %v1526, %v1529
        %vm1531 = vweird.f32 %v1142
        %vm1532 = vweird.f32 %v1526
        %vm1533 = vmor %vm1531, %vm1532
        %v1534 = vsel %vm1533, %v1526, %v1530
        %v1535 = vand.u32 2147483647, %v1142
        %vm1536 = vcmp.eq.f32.partialorder %v1535, 8.507059e+37
        %v1537 = vand.u32 %v1142, 2147483648
        %v1538 = vor.u32 1.1754944e-38, %v1537
        %v1539 = vsel %vm1536, %v1538, %v1534
        %v1540 = vmul.f32 1.0, %v1539
        %v1541 = vrcp.pop %v1143
        %v1542 = vmul.f32 %v1143, %v1541
        %v1543 = vsub.f32 1.0, %v1542
        %v1544 = vmul.f32 %v1541, %v1543
        %v1545 = vadd.f32 %v1541, %v1544
        %vm1546 = vweird.f32 %v1143
        %vm1547 = vweird.f32 %v1541
        %vm1548 = vmor %vm1546, %vm1547
        %v1549 = vsel %vm1548, %v1541, %v1545
        %v1550 = vand.u32 2147483647, %v1143
        %vm1551 = vcmp.eq.f32.partialorder %v1550, 8.507059e+37
        %v1552 = vand.u32 %v1143, 2147483648
        %v1553 = vor.u32 1.1754944e-38, %v1552
        %v1554 = vsel %vm1551, %v1553, %v1549
        %v1555 = vmul.f32 1.0, %v1554
        %v1556 = vrcp.pop %v1144
        %v1557 = vmul.f32 %v1144, %v1556
        %v1558 = vsub.f32 1.0, %v1557
        %v1559 = vmul.f32 %v1556, %v1558
        %v1560 = vadd.f32 %v1556, %v1559
        %vm1561 = vweird.f32 %v1144
        %vm1562 = vweird.f32 %v1556
        %vm1563 = vmor %vm1561, %vm1562
        %v1564 = vsel %vm1563, %v1556, %v1560
        %v1565 = vand.u32 2147483647, %v1144
        %vm1566 = vcmp.eq.f32.partialorder %v1565, 8.507059e+37
        %v1567 = vand.u32 %v1144, 2147483648
        %v1568 = vor.u32 1.1754944e-38, %v1567
        %v1569 = vsel %vm1566, %v1568, %v1564
        %v1570 = vmul.f32 1.0, %v1569
        %v1571 = vrcp.pop %v1145
        %v1572 = vmul.f32 %v1145, %v1571
        %v1573 = vsub.f32 1.0, %v1572
        %v1574 = vmul.f32 %v1571, %v1573
        %v1575 = vadd.f32 %v1571, %v1574
        %vm1576 = vweird.f32 %v1145
        %vm1577 = vweird.f32 %v1571
        %vm1578 = vmor %vm1576, %vm1577
        %v1579 = vsel %vm1578, %v1571, %v1575
        %v1580 = vand.u32 2147483647, %v1145
        %vm1581 = vcmp.eq.f32.partialorder %v1580, 8.507059e+37
        %v1582 = vand.u32 %v1145, 2147483648
        %v1583 = vor.u32 1.1754944e-38, %v1582
        %v1584 = vsel %vm1581, %v1583, %v1579
        %v1585 = vmul.f32 1.0, %v1584
        %v1586 = vrcp.pop %v1146
        %v1587 = vmul.f32 %v1146, %v1586
        %v1588 = vsub.f32 1.0, %v1587
        %v1589 = vmul.f32 %v1586, %v1588
        %v1590 = vadd.f32 %v1586, %v1589
        %vm1591 = vweird.f32 %v1146
        %vm1592 = vweird.f32 %v1586
        %vm1593 = vmor %vm1591, %vm1592
        %v1594 = vsel %vm1593, %v1586, %v1590
        %v1595 = vand.u32 2147483647, %v1146
        %vm1596 = vcmp.eq.f32.partialorder %v1595, 8.507059e+37
        %v1597 = vand.u32 %v1146, 2147483648
        %v1598 = vor.u32 1.1754944e-38, %v1597
        %v1599 = vsel %vm1596, %v1598, %v1594
        %v1600 = vmul.f32 1.0, %v1599
        %v1601 = vrcp.pop %v1147
        %v1602 = vmul.f32 %v1147, %v1601
        %v1603 = vsub.f32 1.0, %v1602
        %v1604 = vmul.f32 %v1601, %v1603
        %v1605 = vadd.f32 %v1601, %v1604
        %vm1606 = vweird.f32 %v1147
        %vm1607 = vweird.f32 %v1601
        %vm1608 = vmor %vm1606, %vm1607
        %v1609 = vsel %vm1608, %v1601, %v1605
        %v1610 = vand.u32 2147483647, %v1147
        %vm1611 = vcmp.eq.f32.partialorder %v1610, 8.507059e+37
        %v1612 = vand.u32 %v1147, 2147483648
        %v1613 = vor.u32 1.1754944e-38, %v1612
        %v1614 = vsel %vm1611, %v1613, %v1609
        %v1615 = vmul.f32 1.0, %v1614
        %v1616 = vrcp.pop %v1148
        %v1617 = vmul.f32 %v1148, %v1616
        %v1618 = vsub.f32 1.0, %v1617
        %v1619 = vmul.f32 %v1616, %v1618
        %v1620 = vadd.f32 %v1616, %v1619
        %vm1621 = vweird.f32 %v1148
        %vm1622 = vweird.f32 %v1616
        %vm1623 = vmor %vm1621, %vm1622
        %v1624 = vsel %vm1623, %v1616, %v1620
        %v1625 = vand.u32 2147483647, %v1148
        %vm1626 = vcmp.eq.f32.partialorder %v1625, 8.507059e+37
        %v1627 = vand.u32 %v1148, 2147483648
        %v1628 = vor.u32 1.1754944e-38, %v1627
        %v1629 = vsel %vm1626, %v1628, %v1624
        %v1630 = vmul.f32 1.0, %v1629
        %v1631 = vrcp.pop %v1149
        %v1632 = vmul.f32 %v1149, %v1631
        %v1633 = vsub.f32 1.0, %v1632
        %v1634 = vmul.f32 %v1631, %v1633
        %v1635 = vadd.f32 %v1631, %v1634
        %vm1636 = vweird.f32 %v1149
        %vm1637 = vweird.f32 %v1631
        %vm1638 = vmor %vm1636, %vm1637
        %v1639 = vsel %vm1638, %v1631, %v1635
        %v1640 = vand.u32 2147483647, %v1149
        %vm1641 = vcmp.eq.f32.partialorder %v1640, 8.507059e+37
        %v1642 = vand.u32 %v1149, 2147483648
        %v1643 = vor.u32 1.1754944e-38, %v1642
        %v1644 = vsel %vm1641, %v1643, %v1639
        %v1645 = vmul.f32 1.0, %v1644
        %v1646 = vrcp.pop %v1150
        %v1647 = vmul.f32 %v1150, %v1646
        %v1648 = vsub.f32 1.0, %v1647
        %v1649 = vmul.f32 %v1646, %v1648
        %v1650 = vadd.f32 %v1646, %v1649
        %vm1651 = vweird.f32 %v1150
        %vm1652 = vweird.f32 %v1646
        %vm1653 = vmor %vm1651, %vm1652
        %v1654 = vsel %vm1653, %v1646, %v1650
        %v1655 = vand.u32 2147483647, %v1150
        %vm1656 = vcmp.eq.f32.partialorder %v1655, 8.507059e+37
        %v1657 = vand.u32 %v1150, 2147483648
        %v1658 = vor.u32 1.1754944e-38, %v1657
        %v1659 = vsel %vm1656, %v1658, %v1654
        %v1660 = vmul.f32 1.0, %v1659
        %v1661 = vrcp.pop %v1151
        %v1662 = vmul.f32 %v1151, %v1661
        %v1663 = vsub.f32 1.0, %v1662
        %v1664 = vmul.f32 %v1661, %v1663
        %v1665 = vadd.f32 %v1661, %v1664
        %vm1666 = vweird.f32 %v1151
        %vm1667 = vweird.f32 %v1661
        %vm1668 = vmor %vm1666, %vm1667
        %v1669 = vsel %vm1668, %v1661, %v1665
        %v1670 = vand.u32 2147483647, %v1151
        %vm1671 = vcmp.eq.f32.partialorder %v1670, 8.507059e+37
        %v1672 = vand.u32 %v1151, 2147483648
        %v1673 = vor.u32 1.1754944e-38, %v1672
        %v1674 = vsel %vm1671, %v1673, %v1669
        %v1675 = vmul.f32 1.0, %v1674
        %v1676 = vrcp.pop %v1152
        %v1677 = vmul.f32 %v1152, %v1676
        %v1678 = vsub.f32 1.0, %v1677
        %v1679 = vmul.f32 %v1676, %v1678
        %v1680 = vadd.f32 %v1676, %v1679
        %vm1681 = vweird.f32 %v1152
        %vm1682 = vweird.f32 %v1676
        %vm1683 = vmor %vm1681, %vm1682
        %v1684 = vsel %vm1683, %v1676, %v1680
        %v1685 = vand.u32 2147483647, %v1152
        %vm1686 = vcmp.eq.f32.partialorder %v1685, 8.507059e+37
        %v1687 = vand.u32 %v1152, 2147483648
        %v1688 = vor.u32 1.1754944e-38, %v1687
        %v1689 = vsel %vm1686, %v1688, %v1684
        %v1690 = vmul.f32 1.0, %v1689
        %v1691 = vrcp.pop %v1153
        %v1692 = vmul.f32 %v1153, %v1691
        %v1693 = vsub.f32 1.0, %v1692
        %v1694 = vmul.f32 %v1691, %v1693
        %v1695 = vadd.f32 %v1691, %v1694
        %vm1696 = vweird.f32 %v1153
        %vm1697 = vweird.f32 %v1691
        %vm1698 = vmor %vm1696, %vm1697
        %v1699 = vsel %vm1698, %v1691, %v1695
        %v1700 = vand.u32 2147483647, %v1153
        %vm1701 = vcmp.eq.f32.partialorder %v1700, 8.507059e+37
        %v1702 = vand.u32 %v1153, 2147483648
        %v1703 = vor.u32 1.1754944e-38, %v1702
        %v1704 = vsel %vm1701, %v1703, %v1699
        %v1705 = vmul.f32 1.0, %v1704
        %v1706 = vrcp.pop %v1154
        %v1707 = vmul.f32 %v1154, %v1706
        %v1708 = vsub.f32 1.0, %v1707
        %v1709 = vmul.f32 %v1706, %v1708
        %v1710 = vadd.f32 %v1706, %v1709
        %vm1711 = vweird.f32 %v1154
        %vm1712 = vweird.f32 %v1706
        %vm1713 = vmor %vm1711, %vm1712
        %v1714 = vsel %vm1713, %v1706, %v1710
        %v1715 = vand.u32 2147483647, %v1154
        %vm1716 = vcmp.eq.f32.partialorder %v1715, 8.507059e+37
        %v1717 = vand.u32 %v1154, 2147483648
        %v1718 = vor.u32 1.1754944e-38, %v1717
        %v1719 = vsel %vm1716, %v1718, %v1714
        %v1720 = vmul.f32 1.0, %v1719
        %v1721 = vrcp.pop %v1155
        %v1722 = vmul.f32 %v1155, %v1721
        %v1723 = vsub.f32 1.0, %v1722
        %v1724 = vmul.f32 %v1721, %v1723
        %v1725 = vadd.f32 %v1721, %v1724
        %vm1726 = vweird.f32 %v1155
        %vm1727 = vweird.f32 %v1721
        %vm1728 = vmor %vm1726, %vm1727
        %v1729 = vsel %vm1728, %v1721, %v1725
        %v1730 = vand.u32 2147483647, %v1155
        %vm1731 = vcmp.eq.f32.partialorder %v1730, 8.507059e+37
        %v1732 = vand.u32 %v1155, 2147483648
        %v1733 = vor.u32 1.1754944e-38, %v1732
        %v1734 = vsel %vm1731, %v1733, %v1729
        %v1735 = vmul.f32 1.0, %v1734
        %v1736 = vrcp.pop %v1156
        %v1737 = vmul.f32 %v1156, %v1736
        %v1738 = vsub.f32 1.0, %v1737
        %v1739 = vmul.f32 %v1736, %v1738
        %v1740 = vadd.f32 %v1736, %v1739
        %vm1741 = vweird.f32 %v1156
        %vm1742 = vweird.f32 %v1736
        %vm1743 = vmor %vm1741, %vm1742
        %v1744 = vsel %vm1743, %v1736, %v1740
        %v1745 = vand.u32 2147483647, %v1156
        %vm1746 = vcmp.eq.f32.partialorder %v1745, 8.507059e+37
        %v1747 = vand.u32 %v1156, 2147483648
        %v1748 = vor.u32 1.1754944e-38, %v1747
        %v1749 = vsel %vm1746, %v1748, %v1744
        %v1750 = vmul.f32 1.0, %v1749
        %v1751 = vrcp.pop %v1157
        %v1752 = vmul.f32 %v1157, %v1751
        %v1753 = vsub.f32 1.0, %v1752
        %v1754 = vmul.f32 %v1751, %v1753
        %v1755 = vadd.f32 %v1751, %v1754
        %vm1756 = vweird.f32 %v1157
        %vm1757 = vweird.f32 %v1751
        %vm1758 = vmor %vm1756, %vm1757
        %v1759 = vsel %vm1758, %v1751, %v1755
        %v1760 = vand.u32 2147483647, %v1157
        %vm1761 = vcmp.eq.f32.partialorder %v1760, 8.507059e+37
        %v1762 = vand.u32 %v1157, 2147483648
        %v1763 = vor.u32 1.1754944e-38, %v1762
        %v1764 = vsel %vm1761, %v1763, %v1759
        %v1765 = vmul.f32 1.0, %v1764
        %v1766 = vrcp.pop %v1158
        %v1767 = vmul.f32 %v1158, %v1766
        %v1768 = vsub.f32 1.0, %v1767
        %v1769 = vmul.f32 %v1766, %v1768
        %v1770 = vadd.f32 %v1766, %v1769
        %vm1771 = vweird.f32 %v1158
        %vm1772 = vweird.f32 %v1766
        %vm1773 = vmor %vm1771, %vm1772
        %v1774 = vsel %vm1773, %v1766, %v1770
        %v1775 = vand.u32 2147483647, %v1158
        %vm1776 = vcmp.eq.f32.partialorder %v1775, 8.507059e+37
        %v1777 = vand.u32 %v1158, 2147483648
        %v1778 = vor.u32 1.1754944e-38, %v1777
        %v1779 = vsel %vm1776, %v1778, %v1774
        %v1780 = vmul.f32 1.0, %v1779
        %v1781 = vrcp.pop %v1159
        %v1782 = vmul.f32 %v1159, %v1781
        %v1783 = vsub.f32 1.0, %v1782
        %v1784 = vmul.f32 %v1781, %v1783
        %v1785 = vadd.f32 %v1781, %v1784
        %vm1786 = vweird.f32 %v1159
        %vm1787 = vweird.f32 %v1781
        %vm1788 = vmor %vm1786, %vm1787
        %v1789 = vsel %vm1788, %v1781, %v1785
        %v1790 = vand.u32 2147483647, %v1159
        %vm1791 = vcmp.eq.f32.partialorder %v1790, 8.507059e+37
        %v1792 = vand.u32 %v1159, 2147483648
        %v1793 = vor.u32 1.1754944e-38, %v1792
        %v1794 = vsel %vm1791, %v1793, %v1789
        %v1795 = vmul.f32 1.0, %v1794
        %v1796 = vrcp.pop %v1160
        %v1797 = vmul.f32 %v1160, %v1796
        %v1798 = vsub.f32 1.0, %v1797
        %v1799 = vmul.f32 %v1796, %v1798
        %v1800 = vadd.f32 %v1796, %v1799
        %vm1801 = vweird.f32 %v1160
        %vm1802 = vweird.f32 %v1796
        %vm1803 = vmor %vm1801, %vm1802
        %v1804 = vsel %vm1803, %v1796, %v1800
        %v1805 = vand.u32 2147483647, %v1160
        %vm1806 = vcmp.eq.f32.partialorder %v1805, 8.507059e+37
        %v1807 = vand.u32 %v1160, 2147483648
        %v1808 = vor.u32 1.1754944e-38, %v1807
        %v1809 = vsel %vm1806, %v1808, %v1804
        %v1810 = vmul.f32 1.0, %v1809
        %v1811 = vrcp.pop %v1161
        %v1812 = vmul.f32 %v1161, %v1811
        %v1813 = vsub.f32 1.0, %v1812
        %v1814 = vmul.f32 %v1811, %v1813
        %v1815 = vadd.f32 %v1811, %v1814
        %vm1816 = vweird.f32 %v1161
        %vm1817 = vweird.f32 %v1811
        %vm1818 = vmor %vm1816, %vm1817
        %v1819 = vsel %vm1818, %v1811, %v1815
        %v1820 = vand.u32 2147483647, %v1161
        %vm1821 = vcmp.eq.f32.partialorder %v1820, 8.507059e+37
        %v1822 = vand.u32 %v1161, 2147483648
        %v1823 = vor.u32 1.1754944e-38, %v1822
        %v1824 = vsel %vm1821, %v1823, %v1819
        %v1825 = vmul.f32 1.0, %v1824
        %v1826 = vrcp.pop %v1162
        %v1827 = vmul.f32 %v1162, %v1826
        %v1828 = vsub.f32 1.0, %v1827
        %v1829 = vmul.f32 %v1826, %v1828
        %v1830 = vadd.f32 %v1826, %v1829
        %vm1831 = vweird.f32 %v1162
        %vm1832 = vweird.f32 %v1826
        %vm1833 = vmor %vm1831, %vm1832
        %v1834 = vsel %vm1833, %v1826, %v1830
        %v1835 = vand.u32 2147483647, %v1162
        %vm1836 = vcmp.eq.f32.partialorder %v1835, 8.507059e+37
        %v1837 = vand.u32 %v1162, 2147483648
        %v1838 = vor.u32 1.1754944e-38, %v1837
        %v1839 = vsel %vm1836, %v1838, %v1834
        %v1840 = vmul.f32 1.0, %v1839
        %v1841 = vrcp.pop %v1163
        %v1842 = vmul.f32 %v1163, %v1841
        %v1843 = vsub.f32 1.0, %v1842
        %v1844 = vmul.f32 %v1841, %v1843
        %v1845 = vadd.f32 %v1841, %v1844
        %vm1846 = vweird.f32 %v1163
        %vm1847 = vweird.f32 %v1841
        %vm1848 = vmor %vm1846, %vm1847
        %v1849 = vsel %vm1848, %v1841, %v1845
        %v1850 = vand.u32 2147483647, %v1163
        %vm1851 = vcmp.eq.f32.partialorder %v1850, 8.507059e+37
        %v1852 = vand.u32 %v1163, 2147483648
        %v1853 = vor.u32 1.1754944e-38, %v1852
        %v1854 = vsel %vm1851, %v1853, %v1849
        %v1855 = vmul.f32 1.0, %v1854
        %v1856 = vrcp.pop %v1164
        %v1857 = vmul.f32 %v1164, %v1856
        %v1858 = vsub.f32 1.0, %v1857
        %v1859 = vmul.f32 %v1856, %v1858
        %v1860 = vadd.f32 %v1856, %v1859
        %vm1861 = vweird.f32 %v1164
        %vm1862 = vweird.f32 %v1856
        %vm1863 = vmor %vm1861, %vm1862
        %v1864 = vsel %vm1863, %v1856, %v1860
        %v1865 = vand.u32 2147483647, %v1164
        %vm1866 = vcmp.eq.f32.partialorder %v1865, 8.507059e+37
        %v1867 = vand.u32 %v1164, 2147483648
        %v1868 = vor.u32 1.1754944e-38, %v1867
        %v1869 = vsel %vm1866, %v1868, %v1864
        %v1870 = vmul.f32 1.0, %v1869
        %v1871 = vrcp.pop %v1165
        %v1872 = vmul.f32 %v1165, %v1871
        %v1873 = vsub.f32 1.0, %v1872
        %v1874 = vmul.f32 %v1871, %v1873
        %v1875 = vadd.f32 %v1871, %v1874
        %vm1876 = vweird.f32 %v1165
        %vm1877 = vweird.f32 %v1871
        %vm1878 = vmor %vm1876, %vm1877
        %v1879 = vsel %vm1878, %v1871, %v1875
        %v1880 = vand.u32 2147483647, %v1165
        %vm1881 = vcmp.eq.f32.partialorder %v1880, 8.507059e+37
        %v1882 = vand.u32 %v1165, 2147483648
        %v1883 = vor.u32 1.1754944e-38, %v1882
        %v1884 = vsel %vm1881, %v1883, %v1879
        %v1885 = vmul.f32 1.0, %v1884
        %v1886 = vld [vmem:[%s6] sm:$0x1]
        %v1888 = vperm.slane %v1886, 0
        %v1890 = vmul.f32 %v1180, %v1888
        %v1891 = vmul.f32 %v1195, %v1888
        %v1892 = vmul.f32 %v1210, %v1888
        %v1893 = vmul.f32 %v1225, %v1888
        %v1894 = vmul.f32 %v1240, %v1888
        %v1895 = vmul.f32 %v1255, %v1888
        %v1896 = vmul.f32 %v1270, %v1888
        %v1897 = vmul.f32 %v1285, %v1888
        %v1898 = vmul.f32 %v1300, %v1888
        %v1899 = vmul.f32 %v1315, %v1888
        %v1900 = vmul.f32 %v1330, %v1888
        %v1901 = vmul.f32 %v1345, %v1888
        %v1902 = vmul.f32 %v1360, %v1888
        %v1903 = vmul.f32 %v1375, %v1888
        %v1904 = vmul.f32 %v1390, %v1888
        %v1905 = vmul.f32 %v1405, %v1888
        %v1906 = vmul.f32 %v1420, %v1888
        %v1907 = vmul.f32 %v1435, %v1888
        %v1908 = vmul.f32 %v1450, %v1888
        %v1909 = vmul.f32 %v1465, %v1888
        %v1910 = vmul.f32 %v1480, %v1888
        %v1911 = vmul.f32 %v1495, %v1888
        %v1912 = vmul.f32 %v1510, %v1888
        %v1913 = vmul.f32 %v1525, %v1888
        %v1914 = vmul.f32 %v1540, %v1888
        %v1915 = vmul.f32 %v1555, %v1888
        %v1916 = vmul.f32 %v1570, %v1888
        %v1917 = vmul.f32 %v1585, %v1888
        %v1918 = vmul.f32 %v1600, %v1888
        %v1919 = vmul.f32 %v1615, %v1888
        %v1920 = vmul.f32 %v1630, %v1888
        %v1921 = vmul.f32 %v1645, %v1888
        %v1922 = vmul.f32 %v1660, %v1888
        %v1923 = vmul.f32 %v1675, %v1888
        %v1924 = vmul.f32 %v1690, %v1888
        %v1925 = vmul.f32 %v1705, %v1888
        %v1926 = vmul.f32 %v1720, %v1888
        %v1927 = vmul.f32 %v1735, %v1888
        %v1928 = vmul.f32 %v1750, %v1888
        %v1929 = vmul.f32 %v1765, %v1888
        %v1930 = vmul.f32 %v1780, %v1888
        %v1931 = vmul.f32 %v1795, %v1888
        %v1932 = vmul.f32 %v1810, %v1888
        %v1933 = vmul.f32 %v1825, %v1888
        %v1934 = vmul.f32 %v1840, %v1888
        %v1935 = vmul.f32 %v1855, %v1888
        %v1936 = vmul.f32 %v1870, %v1888
        %v1937 = vmul.f32 %v1885, %v1888
        %v1938 = vsel %vm829, %v1890, 0.0
        %1939 = vadd.xlane.f32.xlu0 %v1938
        %v1940 = vpop.xlane.xlu0 %1939
        %v1941 = vsel %vm829, %v1891, 0.0
        %1942 = vadd.xlane.f32.xlu0 %v1941
        %v1943 = vpop.xlane.xlu0 %1942
        %v1944 = vsel %vm829, %v1892, 0.0
        %1945 = vadd.xlane.f32.xlu0 %v1944
        %v1946 = vpop.xlane.xlu0 %1945
        %v1947 = vsel %vm829, %v1893, 0.0
        %1948 = vadd.xlane.f32.xlu0 %v1947
        %v1949 = vpop.xlane.xlu0 %1948
        %v1950 = vsel %vm829, %v1894, 0.0
        %1951 = vadd.xlane.f32.xlu0 %v1950
        %v1952 = vpop.xlane.xlu0 %1951
        %v1953 = vsel %vm829, %v1895, 0.0
        %1954 = vadd.xlane.f32.xlu0 %v1953
        %v1955 = vpop.xlane.xlu0 %1954
        %v1956 = vsel %vm829, %v1896, 0.0
        %1957 = vadd.xlane.f32.xlu0 %v1956
        %v1958 = vpop.xlane.xlu0 %1957
        %v1959 = vsel %vm829, %v1897, 0.0
        %1960 = vadd.xlane.f32.xlu0 %v1959
        %v1961 = vpop.xlane.xlu0 %1960
        %v1962 = vsel %vm829, %v1898, 0.0
        %1963 = vadd.xlane.f32.xlu0 %v1962
        %v1964 = vpop.xlane.xlu0 %1963
        %v1965 = vsel %vm829, %v1899, 0.0
        %1966 = vadd.xlane.f32.xlu0 %v1965
        %v1967 = vpop.xlane.xlu0 %1966
        %v1968 = vsel %vm829, %v1900, 0.0
        %1969 = vadd.xlane.f32.xlu0 %v1968
        %v1970 = vpop.xlane.xlu0 %1969
        %v1971 = vsel %vm829, %v1901, 0.0
        %1972 = vadd.xlane.f32.xlu0 %v1971
        %v1973 = vpop.xlane.xlu0 %1972
        %v1974 = vsel %vm829, %v1902, 0.0
        %1975 = vadd.xlane.f32.xlu0 %v1974
        %v1976 = vpop.xlane.xlu0 %1975
        %v1977 = vsel %vm829, %v1903, 0.0
        %1978 = vadd.xlane.f32.xlu0 %v1977
        %v1979 = vpop.xlane.xlu0 %1978
        %v1980 = vsel %vm829, %v1904, 0.0
        %1981 = vadd.xlane.f32.xlu0 %v1980
        %v1982 = vpop.xlane.xlu0 %1981
        %v1983 = vsel %vm829, %v1905, 0.0
        %1984 = vadd.xlane.f32.xlu0 %v1983
        %v1985 = vpop.xlane.xlu0 %1984
        %v1986 = vsel %vm829, %v1906, 0.0
        %1987 = vadd.xlane.f32.xlu0 %v1986
        %v1988 = vpop.xlane.xlu0 %1987
        %v1989 = vsel %vm829, %v1907, 0.0
        %1990 = vadd.xlane.f32.xlu0 %v1989
        %v1991 = vpop.xlane.xlu0 %1990
        %v1992 = vsel %vm829, %v1908, 0.0
        %1993 = vadd.xlane.f32.xlu0 %v1992
        %v1994 = vpop.xlane.xlu0 %1993
        %v1995 = vsel %vm829, %v1909, 0.0
        %1996 = vadd.xlane.f32.xlu0 %v1995
        %v1997 = vpop.xlane.xlu0 %1996
        %v1998 = vsel %vm829, %v1910, 0.0
        %1999 = vadd.xlane.f32.xlu0 %v1998
        %v2000 = vpop.xlane.xlu0 %1999
        %v2001 = vsel %vm829, %v1911, 0.0
        %2002 = vadd.xlane.f32.xlu0 %v2001
        %v2003 = vpop.xlane.xlu0 %2002
        %v2004 = vsel %vm829, %v1912, 0.0
        %2005 = vadd.xlane.f32.xlu0 %v2004
        %v2006 = vpop.xlane.xlu0 %2005
        %v2007 = vsel %vm829, %v1913, 0.0
        %2008 = vadd.xlane.f32.xlu0 %v2007
        %v2009 = vpop.xlane.xlu0 %2008
        %v2010 = vsel %vm829, %v1914, 0.0
        %2011 = vadd.xlane.f32.xlu0 %v2010
        %v2012 = vpop.xlane.xlu0 %2011
        %v2013 = vsel %vm829, %v1915, 0.0
        %2014 = vadd.xlane.f32.xlu0 %v2013
        %v2015 = vpop.xlane.xlu0 %2014
        %v2016 = vsel %vm829, %v1916, 0.0
        %2017 = vadd.xlane.f32.xlu0 %v2016
        %v2018 = vpop.xlane.xlu0 %2017
        %v2019 = vsel %vm829, %v1917, 0.0
        %2020 = vadd.xlane.f32.xlu0 %v2019
        %v2021 = vpop.xlane.xlu0 %2020
        %v2022 = vsel %vm829, %v1918, 0.0
        %2023 = vadd.xlane.f32.xlu0 %v2022
        %v2024 = vpop.xlane.xlu0 %2023
        %v2025 = vsel %vm829, %v1919, 0.0
        %2026 = vadd.xlane.f32.xlu0 %v2025
        %v2027 = vpop.xlane.xlu0 %2026
        %v2028 = vsel %vm829, %v1920, 0.0
        %2029 = vadd.xlane.f32.xlu0 %v2028
        %v2030 = vpop.xlane.xlu0 %2029
        %v2031 = vsel %vm829, %v1921, 0.0
        %2032 = vadd.xlane.f32.xlu0 %v2031
        %v2033 = vpop.xlane.xlu0 %2032
        %v2034 = vsel %vm829, %v1922, 0.0
        %2035 = vadd.xlane.f32.xlu0 %v2034
        %v2036 = vpop.xlane.xlu0 %2035
        %v2037 = vsel %vm829, %v1923, 0.0
        %2038 = vadd.xlane.f32.xlu0 %v2037
        %v2039 = vpop.xlane.xlu0 %2038
        %v2040 = vsel %vm829, %v1924, 0.0
        %2041 = vadd.xlane.f32.xlu0 %v2040
        %v2042 = vpop.xlane.xlu0 %2041
        %v2043 = vsel %vm829, %v1925, 0.0
        %2044 = vadd.xlane.f32.xlu0 %v2043
        %v2045 = vpop.xlane.xlu0 %2044
        %v2046 = vsel %vm829, %v1926, 0.0
        %2047 = vadd.xlane.f32.xlu0 %v2046
        %v2048 = vpop.xlane.xlu0 %2047
        %v2049 = vsel %vm829, %v1927, 0.0
        %2050 = vadd.xlane.f32.xlu0 %v2049
        %v2051 = vpop.xlane.xlu0 %2050
        %v2052 = vsel %vm829, %v1928, 0.0
        %2053 = vadd.xlane.f32.xlu0 %v2052
        %v2054 = vpop.xlane.xlu0 %2053
        %v2055 = vsel %vm829, %v1929, 0.0
        %2056 = vadd.xlane.f32.xlu0 %v2055
        %v2057 = vpop.xlane.xlu0 %2056
        %v2058 = vsel %vm829, %v1930, 0.0
        %2059 = vadd.xlane.f32.xlu0 %v2058
        %v2060 = vpop.xlane.xlu0 %2059
        %v2061 = vsel %vm829, %v1931, 0.0
        %2062 = vadd.xlane.f32.xlu0 %v2061
        %v2063 = vpop.xlane.xlu0 %2062
        %v2064 = vsel %vm829, %v1932, 0.0
        %2065 = vadd.xlane.f32.xlu0 %v2064
        %v2066 = vpop.xlane.xlu0 %2065
        %v2067 = vsel %vm829, %v1933, 0.0
        %2068 = vadd.xlane.f32.xlu0 %v2067
        %v2069 = vpop.xlane.xlu0 %2068
        %v2070 = vsel %vm829, %v1934, 0.0
        %2071 = vadd.xlane.f32.xlu0 %v2070
        %v2072 = vpop.xlane.xlu0 %2071
        %v2073 = vsel %vm829, %v1935, 0.0
        %2074 = vadd.xlane.f32.xlu0 %v2073
        %v2075 = vpop.xlane.xlu0 %2074
        %v2076 = vsel %vm829, %v1936, 0.0
        %2077 = vadd.xlane.f32.xlu0 %v2076
        %v2078 = vpop.xlane.xlu0 %2077
        %v2079 = vsel %vm829, %v1937, 0.0
        %2080 = vadd.xlane.f32.xlu0 %v2079
        %v2081 = vpop.xlane.xlu0 %2080
        %vm2082 = vcmp.gt.f32.partialorder %v408, 0.0
        %vm2083 = vcmp.gt.f32.partialorder %v409, 0.0
        %vm2084 = vcmp.gt.f32.partialorder %v410, 0.0
        %vm2085 = vcmp.gt.f32.partialorder %v411, 0.0
        %vm2086 = vcmp.gt.f32.partialorder %v412, 0.0
        %vm2087 = vcmp.gt.f32.partialorder %v413, 0.0
        %vm2088 = vcmp.gt.f32.partialorder %v414, 0.0
        %vm2089 = vcmp.gt.f32.partialorder %v415, 0.0
        %vm2090 = vcmp.gt.f32.partialorder %v416, 0.0
        %vm2091 = vcmp.gt.f32.partialorder %v417, 0.0
        %vm2092 = vcmp.gt.f32.partialorder %v418, 0.0
        %vm2093 = vcmp.gt.f32.partialorder %v419, 0.0
        %vm2094 = vcmp.gt.f32.partialorder %v420, 0.0
        %vm2095 = vcmp.gt.f32.partialorder %v421, 0.0
        %vm2096 = vcmp.gt.f32.partialorder %v422, 0.0
        %vm2097 = vcmp.gt.f32.partialorder %v423, 0.0
        %vm2098 = vcmp.gt.f32.partialorder %v424, 0.0
        %vm2099 = vcmp.gt.f32.partialorder %v425, 0.0
        %vm2100 = vcmp.gt.f32.partialorder %v426, 0.0
        %vm2101 = vcmp.gt.f32.partialorder %v427, 0.0
        %vm2102 = vcmp.gt.f32.partialorder %v428, 0.0
        %vm2103 = vcmp.gt.f32.partialorder %v429, 0.0
        %vm2104 = vcmp.gt.f32.partialorder %v430, 0.0
        %vm2105 = vcmp.gt.f32.partialorder %v431, 0.0
        %vm2106 = vcmp.gt.f32.partialorder %v432, 0.0
        %vm2107 = vcmp.gt.f32.partialorder %v433, 0.0
        %vm2108 = vcmp.gt.f32.partialorder %v434, 0.0
        %vm2109 = vcmp.gt.f32.partialorder %v435, 0.0
        %vm2110 = vcmp.gt.f32.partialorder %v436, 0.0
        %vm2111 = vcmp.gt.f32.partialorder %v437, 0.0
        %vm2112 = vcmp.gt.f32.partialorder %v438, 0.0
        %vm2113 = vcmp.gt.f32.partialorder %v439, 0.0
        %vm2114 = vcmp.gt.f32.partialorder %v440, 0.0
        %vm2115 = vcmp.gt.f32.partialorder %v441, 0.0
        %vm2116 = vcmp.gt.f32.partialorder %v442, 0.0
        %vm2117 = vcmp.gt.f32.partialorder %v443, 0.0
        %vm2118 = vcmp.gt.f32.partialorder %v444, 0.0
        %vm2119 = vcmp.gt.f32.partialorder %v445, 0.0
        %vm2120 = vcmp.gt.f32.partialorder %v446, 0.0
        %vm2121 = vcmp.gt.f32.partialorder %v447, 0.0
        %vm2122 = vcmp.gt.f32.partialorder %v448, 0.0
        %vm2123 = vcmp.gt.f32.partialorder %v449, 0.0
        %vm2124 = vcmp.gt.f32.partialorder %v450, 0.0
        %vm2125 = vcmp.gt.f32.partialorder %v451, 0.0
        %vm2126 = vcmp.gt.f32.partialorder %v452, 0.0
        %vm2127 = vcmp.gt.f32.partialorder %v453, 0.0
        %vm2128 = vcmp.gt.f32.partialorder %v454, 0.0
        %vm2129 = vcmp.gt.f32.partialorder %v455, 0.0
        %v2130 = vsel %vm2082, %v1940, -1e+30
        %v2131 = vsel %vm2083, %v1943, -1e+30
        %v2132 = vsel %vm2084, %v1946, -1e+30
        %v2133 = vsel %vm2085, %v1949, -1e+30
        %v2134 = vsel %vm2086, %v1952, -1e+30
        %v2135 = vsel %vm2087, %v1955, -1e+30
        %v2136 = vsel %vm2088, %v1958, -1e+30
        %v2137 = vsel %vm2089, %v1961, -1e+30
        %v2138 = vsel %vm2090, %v1964, -1e+30
        %v2139 = vsel %vm2091, %v1967, -1e+30
        %v2140 = vsel %vm2092, %v1970, -1e+30
        %v2141 = vsel %vm2093, %v1973, -1e+30
        %v2142 = vsel %vm2094, %v1976, -1e+30
        %v2143 = vsel %vm2095, %v1979, -1e+30
        %v2144 = vsel %vm2096, %v1982, -1e+30
        %v2145 = vsel %vm2097, %v1985, -1e+30
        %v2146 = vsel %vm2098, %v1988, -1e+30
        %v2147 = vsel %vm2099, %v1991, -1e+30
        %v2148 = vsel %vm2100, %v1994, -1e+30
        %v2149 = vsel %vm2101, %v1997, -1e+30
        %v2150 = vsel %vm2102, %v2000, -1e+30
        %v2151 = vsel %vm2103, %v2003, -1e+30
        %v2152 = vsel %vm2104, %v2006, -1e+30
        %v2153 = vsel %vm2105, %v2009, -1e+30
        %v2154 = vsel %vm2106, %v2012, -1e+30
        %v2155 = vsel %vm2107, %v2015, -1e+30
        %v2156 = vsel %vm2108, %v2018, -1e+30
        %v2157 = vsel %vm2109, %v2021, -1e+30
        %v2158 = vsel %vm2110, %v2024, -1e+30
        %v2159 = vsel %vm2111, %v2027, -1e+30
        %v2160 = vsel %vm2112, %v2030, -1e+30
        %v2161 = vsel %vm2113, %v2033, -1e+30
        %v2162 = vsel %vm2114, %v2036, -1e+30
        %v2163 = vsel %vm2115, %v2039, -1e+30
        %v2164 = vsel %vm2116, %v2042, -1e+30
        %v2165 = vsel %vm2117, %v2045, -1e+30
        %v2166 = vsel %vm2118, %v2048, -1e+30
        %v2167 = vsel %vm2119, %v2051, -1e+30
        %v2168 = vsel %vm2120, %v2054, -1e+30
        %v2169 = vsel %vm2121, %v2057, -1e+30
        %v2170 = vsel %vm2122, %v2060, -1e+30
        %v2171 = vsel %vm2123, %v2063, -1e+30
        %v2172 = vsel %vm2124, %v2066, -1e+30
        %v2173 = vsel %vm2125, %v2069, -1e+30
        %v2174 = vsel %vm2126, %v2072, -1e+30
        %v2175 = vsel %vm2127, %v2075, -1e+30
        %v2176 = vsel %vm2128, %v2078, -1e+30
        %v2177 = vsel %vm2129, %v2081, -1e+30
        %vm2178 = vcmask 138368
        %v2179 = vsel %vm2178, %v2130, -inf
        %v2180 = vsel %vm2178, %v2131, -inf
        %v2181 = vmax.f32 %v2179, %v2180
        %v2182 = vrot.slane %v2181, 4
        %v2183 = vmax.f32 %v2181, %v2182
        %v2184 = vrot.slane %v2183, 2
        %v2185 = vmax.f32 %v2183, %v2184
        %v2186 = vrot.slane %v2185, 1
        %v2187 = vmax.f32 %v2185, %v2186
        %v2188 = vsel %vm2178, %v2132, -inf
        %v2189 = vsel %vm2178, %v2133, -inf
        %v2190 = vmax.f32 %v2188, %v2189
        %v2191 = vrot.slane %v2190, 4
        %v2192 = vmax.f32 %v2190, %v2191
        %v2193 = vrot.slane %v2192, 2
        %v2194 = vmax.f32 %v2192, %v2193
        %v2195 = vrot.slane %v2194, 1
        %v2196 = vmax.f32 %v2194, %v2195
        %v2197 = vsel %vm2178, %v2134, -inf
        %v2198 = vsel %vm2178, %v2135, -inf
        %v2199 = vmax.f32 %v2197, %v2198
        %v2200 = vrot.slane %v2199, 4
        %v2201 = vmax.f32 %v2199, %v2200
        %v2202 = vrot.slane %v2201, 2
        %v2203 = vmax.f32 %v2201, %v2202
        %v2204 = vrot.slane %v2203, 1
        %v2205 = vmax.f32 %v2203, %v2204
        %v2206 = vsel %vm2178, %v2136, -inf
        %v2207 = vsel %vm2178, %v2137, -inf
        %v2208 = vmax.f32 %v2206, %v2207
        %v2209 = vrot.slane %v2208, 4
        %v2210 = vmax.f32 %v2208, %v2209
        %v2211 = vrot.slane %v2210, 2
        %v2212 = vmax.f32 %v2210, %v2211
        %v2213 = vrot.slane %v2212, 1
        %v2214 = vmax.f32 %v2212, %v2213
        %v2215 = vsel %vm2178, %v2138, -inf
        %v2216 = vsel %vm2178, %v2139, -inf
        %v2217 = vmax.f32 %v2215, %v2216
        %v2218 = vrot.slane %v2217, 4
        %v2219 = vmax.f32 %v2217, %v2218
        %v2220 = vrot.slane %v2219, 2
        %v2221 = vmax.f32 %v2219, %v2220
        %v2222 = vrot.slane %v2221, 1
        %v2223 = vmax.f32 %v2221, %v2222
        %v2224 = vsel %vm2178, %v2140, -inf
        %v2225 = vsel %vm2178, %v2141, -inf
        %v2226 = vmax.f32 %v2224, %v2225
        %v2227 = vrot.slane %v2226, 4
        %v2228 = vmax.f32 %v2226, %v2227
        %v2229 = vrot.slane %v2228, 2
        %v2230 = vmax.f32 %v2228, %v2229
        %v2231 = vrot.slane %v2230, 1
        %v2232 = vmax.f32 %v2230, %v2231
        %v2233 = vsel %vm2178, %v2142, -inf
        %v2234 = vsel %vm2178, %v2143, -inf
        %v2235 = vmax.f32 %v2233, %v2234
        %v2236 = vrot.slane %v2235, 4
        %v2237 = vmax.f32 %v2235, %v2236
        %v2238 = vrot.slane %v2237, 2
        %v2239 = vmax.f32 %v2237, %v2238
        %v2240 = vrot.slane %v2239, 1
        %v2241 = vmax.f32 %v2239, %v2240
        %v2242 = vsel %vm2178, %v2144, -inf
        %v2243 = vsel %vm2178, %v2145, -inf
        %v2244 = vmax.f32 %v2242, %v2243
        %v2245 = vrot.slane %v2244, 4
        %v2246 = vmax.f32 %v2244, %v2245
        %v2247 = vrot.slane %v2246, 2
        %v2248 = vmax.f32 %v2246, %v2247
        %v2249 = vrot.slane %v2248, 1
        %v2250 = vmax.f32 %v2248, %v2249
        %v2251 = vsel %vm2178, %v2146, -inf
        %v2252 = vsel %vm2178, %v2147, -inf
        %v2253 = vmax.f32 %v2251, %v2252
        %v2254 = vrot.slane %v2253, 4
        %v2255 = vmax.f32 %v2253, %v2254
        %v2256 = vrot.slane %v2255, 2
        %v2257 = vmax.f32 %v2255, %v2256
        %v2258 = vrot.slane %v2257, 1
        %v2259 = vmax.f32 %v2257, %v2258
        %v2260 = vsel %vm2178, %v2148, -inf
        %v2261 = vsel %vm2178, %v2149, -inf
        %v2262 = vmax.f32 %v2260, %v2261
        %v2263 = vrot.slane %v2262, 4
        %v2264 = vmax.f32 %v2262, %v2263
        %v2265 = vrot.slane %v2264, 2
        %v2266 = vmax.f32 %v2264, %v2265
        %v2267 = vrot.slane %v2266, 1
        %v2268 = vmax.f32 %v2266, %v2267
        %v2269 = vsel %vm2178, %v2150, -inf
        %v2270 = vsel %vm2178, %v2151, -inf
        %v2271 = vmax.f32 %v2269, %v2270
        %v2272 = vrot.slane %v2271, 4
        %v2273 = vmax.f32 %v2271, %v2272
        %v2274 = vrot.slane %v2273, 2
        %v2275 = vmax.f32 %v2273, %v2274
        %v2276 = vrot.slane %v2275, 1
        %v2277 = vmax.f32 %v2275, %v2276
        %v2278 = vsel %vm2178, %v2152, -inf
        %v2279 = vsel %vm2178, %v2153, -inf
        %v2280 = vmax.f32 %v2278, %v2279
        %v2281 = vrot.slane %v2280, 4
        %v2282 = vmax.f32 %v2280, %v2281
        %v2283 = vrot.slane %v2282, 2
        %v2284 = vmax.f32 %v2282, %v2283
        %v2285 = vrot.slane %v2284, 1
        %v2286 = vmax.f32 %v2284, %v2285
        %v2287 = vsel %vm2178, %v2154, -inf
        %v2288 = vsel %vm2178, %v2155, -inf
        %v2289 = vmax.f32 %v2287, %v2288
        %v2290 = vrot.slane %v2289, 4
        %v2291 = vmax.f32 %v2289, %v2290
        %v2292 = vrot.slane %v2291, 2
        %v2293 = vmax.f32 %v2291, %v2292
        %v2294 = vrot.slane %v2293, 1
        %v2295 = vmax.f32 %v2293, %v2294
        %v2296 = vsel %vm2178, %v2156, -inf
        %v2297 = vsel %vm2178, %v2157, -inf
        %v2298 = vmax.f32 %v2296, %v2297
        %v2299 = vrot.slane %v2298, 4
        %v2300 = vmax.f32 %v2298, %v2299
        %v2301 = vrot.slane %v2300, 2
        %v2302 = vmax.f32 %v2300, %v2301
        %v2303 = vrot.slane %v2302, 1
        %v2304 = vmax.f32 %v2302, %v2303
        %v2305 = vsel %vm2178, %v2158, -inf
        %v2306 = vsel %vm2178, %v2159, -inf
        %v2307 = vmax.f32 %v2305, %v2306
        %v2308 = vrot.slane %v2307, 4
        %v2309 = vmax.f32 %v2307, %v2308
        %v2310 = vrot.slane %v2309, 2
        %v2311 = vmax.f32 %v2309, %v2310
        %v2312 = vrot.slane %v2311, 1
        %v2313 = vmax.f32 %v2311, %v2312
        %v2314 = vsel %vm2178, %v2160, -inf
        %v2315 = vsel %vm2178, %v2161, -inf
        %v2316 = vmax.f32 %v2314, %v2315
        %v2317 = vrot.slane %v2316, 4
        %v2318 = vmax.f32 %v2316, %v2317
        %v2319 = vrot.slane %v2318, 2
        %v2320 = vmax.f32 %v2318, %v2319
        %v2321 = vrot.slane %v2320, 1
        %v2322 = vmax.f32 %v2320, %v2321
        %v2323 = vsel %vm2178, %v2162, -inf
        %v2324 = vsel %vm2178, %v2163, -inf
        %v2325 = vmax.f32 %v2323, %v2324
        %v2326 = vrot.slane %v2325, 4
        %v2327 = vmax.f32 %v2325, %v2326
        %v2328 = vrot.slane %v2327, 2
        %v2329 = vmax.f32 %v2327, %v2328
        %v2330 = vrot.slane %v2329, 1
        %v2331 = vmax.f32 %v2329, %v2330
        %v2332 = vsel %vm2178, %v2164, -inf
        %v2333 = vsel %vm2178, %v2165, -inf
        %v2334 = vmax.f32 %v2332, %v2333
        %v2335 = vrot.slane %v2334, 4
        %v2336 = vmax.f32 %v2334, %v2335
        %v2337 = vrot.slane %v2336, 2
        %v2338 = vmax.f32 %v2336, %v2337
        %v2339 = vrot.slane %v2338, 1
        %v2340 = vmax.f32 %v2338, %v2339
        %v2341 = vsel %vm2178, %v2166, -inf
        %v2342 = vsel %vm2178, %v2167, -inf
        %v2343 = vmax.f32 %v2341, %v2342
        %v2344 = vrot.slane %v2343, 4
        %v2345 = vmax.f32 %v2343, %v2344
        %v2346 = vrot.slane %v2345, 2
        %v2347 = vmax.f32 %v2345, %v2346
        %v2348 = vrot.slane %v2347, 1
        %v2349 = vmax.f32 %v2347, %v2348
        %v2350 = vsel %vm2178, %v2168, -inf
        %v2351 = vsel %vm2178, %v2169, -inf
        %v2352 = vmax.f32 %v2350, %v2351
        %v2353 = vrot.slane %v2352, 4
        %v2354 = vmax.f32 %v2352, %v2353
        %v2355 = vrot.slane %v2354, 2
        %v2356 = vmax.f32 %v2354, %v2355
        %v2357 = vrot.slane %v2356, 1
        %v2358 = vmax.f32 %v2356, %v2357
        %v2359 = vsel %vm2178, %v2170, -inf
        %v2360 = vsel %vm2178, %v2171, -inf
        %v2361 = vmax.f32 %v2359, %v2360
        %v2362 = vrot.slane %v2361, 4
        %v2363 = vmax.f32 %v2361, %v2362
        %v2364 = vrot.slane %v2363, 2
        %v2365 = vmax.f32 %v2363, %v2364
        %v2366 = vrot.slane %v2365, 1
        %v2367 = vmax.f32 %v2365, %v2366
        %v2368 = vsel %vm2178, %v2172, -inf
        %v2369 = vsel %vm2178, %v2173, -inf
        %v2370 = vmax.f32 %v2368, %v2369
        %v2371 = vrot.slane %v2370, 4
        %v2372 = vmax.f32 %v2370, %v2371
        %v2373 = vrot.slane %v2372, 2
        %v2374 = vmax.f32 %v2372, %v2373
        %v2375 = vrot.slane %v2374, 1
        %v2376 = vmax.f32 %v2374, %v2375
        %v2377 = vsel %vm2178, %v2174, -inf
        %v2378 = vsel %vm2178, %v2175, -inf
        %v2379 = vmax.f32 %v2377, %v2378
        %v2380 = vrot.slane %v2379, 4
        %v2381 = vmax.f32 %v2379, %v2380
        %v2382 = vrot.slane %v2381, 2
        %v2383 = vmax.f32 %v2381, %v2382
        %v2384 = vrot.slane %v2383, 1
        %v2385 = vmax.f32 %v2383, %v2384
        %v2386 = vsel %vm2178, %v2176, -inf
        %v2387 = vsel %vm2178, %v2177, -inf
        %v2388 = vmax.f32 %v2386, %v2387
        %v2389 = vrot.slane %v2388, 4
        %v2390 = vmax.f32 %v2388, %v2389
        %v2391 = vrot.slane %v2390, 2
        %v2392 = vmax.f32 %v2390, %v2391
        %v2393 = vrot.slane %v2392, 1
        %v2394 = vmax.f32 %v2392, %v2393
        %v2395 = vsub.f32 %v2130, %v2187
        %v2396 = vsub.f32 %v2131, %v2187
        %v2397 = vsub.f32 %v2132, %v2196
        %v2398 = vsub.f32 %v2133, %v2196
        %v2399 = vsub.f32 %v2134, %v2205
        %v2400 = vsub.f32 %v2135, %v2205
        %v2401 = vsub.f32 %v2136, %v2214
        %v2402 = vsub.f32 %v2137, %v2214
        %v2403 = vsub.f32 %v2138, %v2223
        %v2404 = vsub.f32 %v2139, %v2223
        %v2405 = vsub.f32 %v2140, %v2232
        %v2406 = vsub.f32 %v2141, %v2232
        %v2407 = vsub.f32 %v2142, %v2241
        %v2408 = vsub.f32 %v2143, %v2241
        %v2409 = vsub.f32 %v2144, %v2250
        %v2410 = vsub.f32 %v2145, %v2250
        %v2411 = vsub.f32 %v2146, %v2259
        %v2412 = vsub.f32 %v2147, %v2259
        %v2413 = vsub.f32 %v2148, %v2268
        %v2414 = vsub.f32 %v2149, %v2268
        %v2415 = vsub.f32 %v2150, %v2277
        %v2416 = vsub.f32 %v2151, %v2277
        %v2417 = vsub.f32 %v2152, %v2286
        %v2418 = vsub.f32 %v2153, %v2286
        %v2419 = vsub.f32 %v2154, %v2295
        %v2420 = vsub.f32 %v2155, %v2295
        %v2421 = vsub.f32 %v2156, %v2304
        %v2422 = vsub.f32 %v2157, %v2304
        %v2423 = vsub.f32 %v2158, %v2313
        %v2424 = vsub.f32 %v2159, %v2313
        %v2425 = vsub.f32 %v2160, %v2322
        %v2426 = vsub.f32 %v2161, %v2322
        %v2427 = vsub.f32 %v2162, %v2331
        %v2428 = vsub.f32 %v2163, %v2331
        %v2429 = vsub.f32 %v2164, %v2340
        %v2430 = vsub.f32 %v2165, %v2340
        %v2431 = vsub.f32 %v2166, %v2349
        %v2432 = vsub.f32 %v2167, %v2349
        %v2433 = vsub.f32 %v2168, %v2358
        %v2434 = vsub.f32 %v2169, %v2358
        %v2435 = vsub.f32 %v2170, %v2367
        %v2436 = vsub.f32 %v2171, %v2367
        %v2437 = vsub.f32 %v2172, %v2376
        %v2438 = vsub.f32 %v2173, %v2376
        %v2439 = vsub.f32 %v2174, %v2385
        %v2440 = vsub.f32 %v2175, %v2385
        %v2441 = vsub.f32 %v2176, %v2394
        %v2442 = vsub.f32 %v2177, %v2394
        %v2443 = vmul.f32 %v2395, 1.442695
        %v2444 = vpow.pop %v2443
        %v2445 = vmul.f32 %v2396, 1.442695
        %v2446 = vpow.pop %v2445
        %v2447 = vmul.f32 %v2397, 1.442695
        %v2448 = vpow.pop %v2447
        %v2449 = vmul.f32 %v2398, 1.442695
        %v2450 = vpow.pop %v2449
        %v2451 = vmul.f32 %v2399, 1.442695
        %v2452 = vpow.pop %v2451
        %v2453 = vmul.f32 %v2400, 1.442695
        %v2454 = vpow.pop %v2453
        %v2455 = vmul.f32 %v2401, 1.442695
        %v2456 = vpow.pop %v2455
        %v2457 = vmul.f32 %v2402, 1.442695
        %v2458 = vpow.pop %v2457
        %v2459 = vmul.f32 %v2403, 1.442695
        %v2460 = vpow.pop %v2459
        %v2461 = vmul.f32 %v2404, 1.442695
        %v2462 = vpow.pop %v2461
        %v2463 = vmul.f32 %v2405, 1.442695
        %v2464 = vpow.pop %v2463
        %v2465 = vmul.f32 %v2406, 1.442695
        %v2466 = vpow.pop %v2465
        %v2467 = vmul.f32 %v2407, 1.442695
        %v2468 = vpow.pop %v2467
        %v2469 = vmul.f32 %v2408, 1.442695
        %v2470 = vpow.pop %v2469
        %v2471 = vmul.f32 %v2409, 1.442695
        %v2472 = vpow.pop %v2471
        %v2473 = vmul.f32 %v2410, 1.442695
        %v2474 = vpow.pop %v2473
        %v2475 = vmul.f32 %v2411, 1.442695
        %v2476 = vpow.pop %v2475
        %v2477 = vmul.f32 %v2412, 1.442695
        %v2478 = vpow.pop %v2477
        %v2479 = vmul.f32 %v2413, 1.442695
        %v2480 = vpow.pop %v2479
        %v2481 = vmul.f32 %v2414, 1.442695
        %v2482 = vpow.pop %v2481
        %v2483 = vmul.f32 %v2415, 1.442695
        %v2484 = vpow.pop %v2483
        %v2485 = vmul.f32 %v2416, 1.442695
        %v2486 = vpow.pop %v2485
        %v2487 = vmul.f32 %v2417, 1.442695
        %v2488 = vpow.pop %v2487
        %v2489 = vmul.f32 %v2418, 1.442695
        %v2490 = vpow.pop %v2489
        %v2491 = vmul.f32 %v2419, 1.442695
        %v2492 = vpow.pop %v2491
        %v2493 = vmul.f32 %v2420, 1.442695
        %v2494 = vpow.pop %v2493
        %v2495 = vmul.f32 %v2421, 1.442695
        %v2496 = vpow.pop %v2495
        %v2497 = vmul.f32 %v2422, 1.442695
        %v2498 = vpow.pop %v2497
        %v2499 = vmul.f32 %v2423, 1.442695
        %v2500 = vpow.pop %v2499
        %v2501 = vmul.f32 %v2424, 1.442695
        %v2502 = vpow.pop %v2501
        %v2503 = vmul.f32 %v2425, 1.442695
        %v2504 = vpow.pop %v2503
        %v2505 = vmul.f32 %v2426, 1.442695
        %v2506 = vpow.pop %v2505
        %v2507 = vmul.f32 %v2427, 1.442695
        %v2508 = vpow.pop %v2507
        %v2509 = vmul.f32 %v2428, 1.442695
        %v2510 = vpow.pop %v2509
        %v2511 = vmul.f32 %v2429, 1.442695
        %v2512 = vpow.pop %v2511
        %v2513 = vmul.f32 %v2430, 1.442695
        %v2514 = vpow.pop %v2513
        %v2515 = vmul.f32 %v2431, 1.442695
        %v2516 = vpow.pop %v2515
        %v2517 = vmul.f32 %v2432, 1.442695
        %v2518 = vpow.pop %v2517
        %v2519 = vmul.f32 %v2433, 1.442695
        %v2520 = vpow.pop %v2519
        %v2521 = vmul.f32 %v2434, 1.442695
        %v2522 = vpow.pop %v2521
        %v2523 = vmul.f32 %v2435, 1.442695
        %v2524 = vpow.pop %v2523
        %v2525 = vmul.f32 %v2436, 1.442695
        %v2526 = vpow.pop %v2525
        %v2527 = vmul.f32 %v2437, 1.442695
        %v2528 = vpow.pop %v2527
        %v2529 = vmul.f32 %v2438, 1.442695
        %v2530 = vpow.pop %v2529
        %v2531 = vmul.f32 %v2439, 1.442695
        %v2532 = vpow.pop %v2531
        %v2533 = vmul.f32 %v2440, 1.442695
        %v2534 = vpow.pop %v2533
        %v2535 = vmul.f32 %v2441, 1.442695
        %v2536 = vpow.pop %v2535
        %v2537 = vmul.f32 %v2442, 1.442695
        %v2538 = vpow.pop %v2537
        %v2539 = vmul.f32 %v2444, %v408
        %v2540 = vmul.f32 %v2446, %v409
        %v2541 = vmul.f32 %v2448, %v410
        %v2542 = vmul.f32 %v2450, %v411
        %v2543 = vmul.f32 %v2452, %v412
        %v2544 = vmul.f32 %v2454, %v413
        %v2545 = vmul.f32 %v2456, %v414
        %v2546 = vmul.f32 %v2458, %v415
        %v2547 = vmul.f32 %v2460, %v416
        %v2548 = vmul.f32 %v2462, %v417
        %v2549 = vmul.f32 %v2464, %v418
        %v2550 = vmul.f32 %v2466, %v419
        %v2551 = vmul.f32 %v2468, %v420
        %v2552 = vmul.f32 %v2470, %v421
        %v2553 = vmul.f32 %v2472, %v422
        %v2554 = vmul.f32 %v2474, %v423
        %v2555 = vmul.f32 %v2476, %v424
        %v2556 = vmul.f32 %v2478, %v425
        %v2557 = vmul.f32 %v2480, %v426
        %v2558 = vmul.f32 %v2482, %v427
        %v2559 = vmul.f32 %v2484, %v428
        %v2560 = vmul.f32 %v2486, %v429
        %v2561 = vmul.f32 %v2488, %v430
        %v2562 = vmul.f32 %v2490, %v431
        %v2563 = vmul.f32 %v2492, %v432
        %v2564 = vmul.f32 %v2494, %v433
        %v2565 = vmul.f32 %v2496, %v434
        %v2566 = vmul.f32 %v2498, %v435
        %v2567 = vmul.f32 %v2500, %v436
        %v2568 = vmul.f32 %v2502, %v437
        %v2569 = vmul.f32 %v2504, %v438
        %v2570 = vmul.f32 %v2506, %v439
        %v2571 = vmul.f32 %v2508, %v440
        %v2572 = vmul.f32 %v2510, %v441
        %v2573 = vmul.f32 %v2512, %v442
        %v2574 = vmul.f32 %v2514, %v443
        %v2575 = vmul.f32 %v2516, %v444
        %v2576 = vmul.f32 %v2518, %v445
        %v2577 = vmul.f32 %v2520, %v446
        %v2578 = vmul.f32 %v2522, %v447
        %v2579 = vmul.f32 %v2524, %v448
        %v2580 = vmul.f32 %v2526, %v449
        %v2581 = vmul.f32 %v2528, %v450
        %v2582 = vmul.f32 %v2530, %v451
        %v2583 = vmul.f32 %v2532, %v452
        %v2584 = vmul.f32 %v2534, %v453
        %v2585 = vmul.f32 %v2536, %v454
        %v2586 = vmul.f32 %v2538, %v455
        %v2587 = vsel %vm2178, %v2539, 0.0
        %v2588 = vsel %vm2178, %v2540, 0.0
        %v2589 = vadd.f32 %v2587, %v2588
        %v2590 = vrot.slane %v2589, 4
        %v2591 = vadd.f32 %v2589, %v2590
        %v2592 = vrot.slane %v2591, 2
        %v2593 = vadd.f32 %v2591, %v2592
        %v2594 = vrot.slane %v2593, 1
        %v2595 = vadd.f32 %v2593, %v2594
        %v2596 = vsel %vm2178, %v2541, 0.0
        %v2597 = vsel %vm2178, %v2542, 0.0
        %v2598 = vadd.f32 %v2596, %v2597
        %v2599 = vrot.slane %v2598, 4
        %v2600 = vadd.f32 %v2598, %v2599
        %v2601 = vrot.slane %v2600, 2
        %v2602 = vadd.f32 %v2600, %v2601
        %v2603 = vrot.slane %v2602, 1
        %v2604 = vadd.f32 %v2602, %v2603
        %v2605 = vsel %vm2178, %v2543, 0.0
        %v2606 = vsel %vm2178, %v2544, 0.0
        %v2607 = vadd.f32 %v2605, %v2606
        %v2608 = vrot.slane %v2607, 4
        %v2609 = vadd.f32 %v2607, %v2608
        %v2610 = vrot.slane %v2609, 2
        %v2611 = vadd.f32 %v2609, %v2610
        %v2612 = vrot.slane %v2611, 1
        %v2613 = vadd.f32 %v2611, %v2612
        %v2614 = vsel %vm2178, %v2545, 0.0
        %v2615 = vsel %vm2178, %v2546, 0.0
        %v2616 = vadd.f32 %v2614, %v2615
        %v2617 = vrot.slane %v2616, 4
        %v2618 = vadd.f32 %v2616, %v2617
        %v2619 = vrot.slane %v2618, 2
        %v2620 = vadd.f32 %v2618, %v2619
        %v2621 = vrot.slane %v2620, 1
        %v2622 = vadd.f32 %v2620, %v2621
        %v2623 = vsel %vm2178, %v2547, 0.0
        %v2624 = vsel %vm2178, %v2548, 0.0
        %v2625 = vadd.f32 %v2623, %v2624
        %v2626 = vrot.slane %v2625, 4
        %v2627 = vadd.f32 %v2625, %v2626
        %v2628 = vrot.slane %v2627, 2
        %v2629 = vadd.f32 %v2627, %v2628
        %v2630 = vrot.slane %v2629, 1
        %v2631 = vadd.f32 %v2629, %v2630
        %v2632 = vsel %vm2178, %v2549, 0.0
        %v2633 = vsel %vm2178, %v2550, 0.0
        %v2634 = vadd.f32 %v2632, %v2633
        %v2635 = vrot.slane %v2634, 4
        %v2636 = vadd.f32 %v2634, %v2635
        %v2637 = vrot.slane %v2636, 2
        %v2638 = vadd.f32 %v2636, %v2637
        %v2639 = vrot.slane %v2638, 1
        %v2640 = vadd.f32 %v2638, %v2639
        %v2641 = vsel %vm2178, %v2551, 0.0
        %v2642 = vsel %vm2178, %v2552, 0.0
        %v2643 = vadd.f32 %v2641, %v2642
        %v2644 = vrot.slane %v2643, 4
        %v2645 = vadd.f32 %v2643, %v2644
        %v2646 = vrot.slane %v2645, 2
        %v2647 = vadd.f32 %v2645, %v2646
        %v2648 = vrot.slane %v2647, 1
        %v2649 = vadd.f32 %v2647, %v2648
        %v2650 = vsel %vm2178, %v2553, 0.0
        %v2651 = vsel %vm2178, %v2554, 0.0
        %v2652 = vadd.f32 %v2650, %v2651
        %v2653 = vrot.slane %v2652, 4
        %v2654 = vadd.f32 %v2652, %v2653
        %v2655 = vrot.slane %v2654, 2
        %v2656 = vadd.f32 %v2654, %v2655
        %v2657 = vrot.slane %v2656, 1
        %v2658 = vadd.f32 %v2656, %v2657
        %v2659 = vsel %vm2178, %v2555, 0.0
        %v2660 = vsel %vm2178, %v2556, 0.0
        %v2661 = vadd.f32 %v2659, %v2660
        %v2662 = vrot.slane %v2661, 4
        %v2663 = vadd.f32 %v2661, %v2662
        %v2664 = vrot.slane %v2663, 2
        %v2665 = vadd.f32 %v2663, %v2664
        %v2666 = vrot.slane %v2665, 1
        %v2667 = vadd.f32 %v2665, %v2666
        %v2668 = vsel %vm2178, %v2557, 0.0
        %v2669 = vsel %vm2178, %v2558, 0.0
        %v2670 = vadd.f32 %v2668, %v2669
        %v2671 = vrot.slane %v2670, 4
        %v2672 = vadd.f32 %v2670, %v2671
        %v2673 = vrot.slane %v2672, 2
        %v2674 = vadd.f32 %v2672, %v2673
        %v2675 = vrot.slane %v2674, 1
        %v2676 = vadd.f32 %v2674, %v2675
        %v2677 = vsel %vm2178, %v2559, 0.0
        %v2678 = vsel %vm2178, %v2560, 0.0
        %v2679 = vadd.f32 %v2677, %v2678
        %v2680 = vrot.slane %v2679, 4
        %v2681 = vadd.f32 %v2679, %v2680
        %v2682 = vrot.slane %v2681, 2
        %v2683 = vadd.f32 %v2681, %v2682
        %v2684 = vrot.slane %v2683, 1
        %v2685 = vadd.f32 %v2683, %v2684
        %v2686 = vsel %vm2178, %v2561, 0.0
        %v2687 = vsel %vm2178, %v2562, 0.0
        %v2688 = vadd.f32 %v2686, %v2687
        %v2689 = vrot.slane %v2688, 4
        %v2690 = vadd.f32 %v2688, %v2689
        %v2691 = vrot.slane %v2690, 2
        %v2692 = vadd.f32 %v2690, %v2691
        %v2693 = vrot.slane %v2692, 1
        %v2694 = vadd.f32 %v2692, %v2693
        %v2695 = vsel %vm2178, %v2563, 0.0
        %v2696 = vsel %vm2178, %v2564, 0.0
        %v2697 = vadd.f32 %v2695, %v2696
        %v2698 = vrot.slane %v2697, 4
        %v2699 = vadd.f32 %v2697, %v2698
        %v2700 = vrot.slane %v2699, 2
        %v2701 = vadd.f32 %v2699, %v2700
        %v2702 = vrot.slane %v2701, 1
        %v2703 = vadd.f32 %v2701, %v2702
        %v2704 = vsel %vm2178, %v2565, 0.0
        %v2705 = vsel %vm2178, %v2566, 0.0
        %v2706 = vadd.f32 %v2704, %v2705
        %v2707 = vrot.slane %v2706, 4
        %v2708 = vadd.f32 %v2706, %v2707
        %v2709 = vrot.slane %v2708, 2
        %v2710 = vadd.f32 %v2708, %v2709
        %v2711 = vrot.slane %v2710, 1
        %v2712 = vadd.f32 %v2710, %v2711
        %v2713 = vsel %vm2178, %v2567, 0.0
        %v2714 = vsel %vm2178, %v2568, 0.0
        %v2715 = vadd.f32 %v2713, %v2714
        %v2716 = vrot.slane %v2715, 4
        %v2717 = vadd.f32 %v2715, %v2716
        %v2718 = vrot.slane %v2717, 2
        %v2719 = vadd.f32 %v2717, %v2718
        %v2720 = vrot.slane %v2719, 1
        %v2721 = vadd.f32 %v2719, %v2720
        %v2722 = vsel %vm2178, %v2569, 0.0
        %v2723 = vsel %vm2178, %v2570, 0.0
        %v2724 = vadd.f32 %v2722, %v2723
        %v2725 = vrot.slane %v2724, 4
        %v2726 = vadd.f32 %v2724, %v2725
        %v2727 = vrot.slane %v2726, 2
        %v2728 = vadd.f32 %v2726, %v2727
        %v2729 = vrot.slane %v2728, 1
        %v2730 = vadd.f32 %v2728, %v2729
        %v2731 = vsel %vm2178, %v2571, 0.0
        %v2732 = vsel %vm2178, %v2572, 0.0
        %v2733 = vadd.f32 %v2731, %v2732
        %v2734 = vrot.slane %v2733, 4
        %v2735 = vadd.f32 %v2733, %v2734
        %v2736 = vrot.slane %v2735, 2
        %v2737 = vadd.f32 %v2735, %v2736
        %v2738 = vrot.slane %v2737, 1
        %v2739 = vadd.f32 %v2737, %v2738
        %v2740 = vsel %vm2178, %v2573, 0.0
        %v2741 = vsel %vm2178, %v2574, 0.0
        %v2742 = vadd.f32 %v2740, %v2741
        %v2743 = vrot.slane %v2742, 4
        %v2744 = vadd.f32 %v2742, %v2743
        %v2745 = vrot.slane %v2744, 2
        %v2746 = vadd.f32 %v2744, %v2745
        %v2747 = vrot.slane %v2746, 1
        %v2748 = vadd.f32 %v2746, %v2747
        %v2749 = vsel %vm2178, %v2575, 0.0
        %v2750 = vsel %vm2178, %v2576, 0.0
        %v2751 = vadd.f32 %v2749, %v2750
        %v2752 = vrot.slane %v2751, 4
        %v2753 = vadd.f32 %v2751, %v2752
        %v2754 = vrot.slane %v2753, 2
        %v2755 = vadd.f32 %v2753, %v2754
        %v2756 = vrot.slane %v2755, 1
        %v2757 = vadd.f32 %v2755, %v2756
        %v2758 = vsel %vm2178, %v2577, 0.0
        %v2759 = vsel %vm2178, %v2578, 0.0
        %v2760 = vadd.f32 %v2758, %v2759
        %v2761 = vrot.slane %v2760, 4
        %v2762 = vadd.f32 %v2760, %v2761
        %v2763 = vrot.slane %v2762, 2
        %v2764 = vadd.f32 %v2762, %v2763
        %v2765 = vrot.slane %v2764, 1
        %v2766 = vadd.f32 %v2764, %v2765
        %v2767 = vsel %vm2178, %v2579, 0.0
        %v2768 = vsel %vm2178, %v2580, 0.0
        %v2769 = vadd.f32 %v2767, %v2768
        %v2770 = vrot.slane %v2769, 4
        %v2771 = vadd.f32 %v2769, %v2770
        %v2772 = vrot.slane %v2771, 2
        %v2773 = vadd.f32 %v2771, %v2772
        %v2774 = vrot.slane %v2773, 1
        %v2775 = vadd.f32 %v2773, %v2774
        %v2776 = vsel %vm2178, %v2581, 0.0
        %v2777 = vsel %vm2178, %v2582, 0.0
        %v2778 = vadd.f32 %v2776, %v2777
        %v2779 = vrot.slane %v2778, 4
        %v2780 = vadd.f32 %v2778, %v2779
        %v2781 = vrot.slane %v2780, 2
        %v2782 = vadd.f32 %v2780, %v2781
        %v2783 = vrot.slane %v2782, 1
        %v2784 = vadd.f32 %v2782, %v2783
        %v2785 = vsel %vm2178, %v2583, 0.0
        %v2786 = vsel %vm2178, %v2584, 0.0
        %v2787 = vadd.f32 %v2785, %v2786
        %v2788 = vrot.slane %v2787, 4
        %v2789 = vadd.f32 %v2787, %v2788
        %v2790 = vrot.slane %v2789, 2
        %v2791 = vadd.f32 %v2789, %v2790
        %v2792 = vrot.slane %v2791, 1
        %v2793 = vadd.f32 %v2791, %v2792
        %v2794 = vsel %vm2178, %v2585, 0.0
        %v2795 = vsel %vm2178, %v2586, 0.0
        %v2796 = vadd.f32 %v2794, %v2795
        %v2797 = vrot.slane %v2796, 4
        %v2798 = vadd.f32 %v2796, %v2797
        %v2799 = vrot.slane %v2798, 2
        %v2800 = vadd.f32 %v2798, %v2799
        %v2801 = vrot.slane %v2800, 1
        %v2802 = vadd.f32 %v2800, %v2801
        %v2803 = vmax.f32 %v2595, 1.0
        %v2804 = vmax.f32 %v2604, 1.0
        %v2805 = vmax.f32 %v2613, 1.0
        %v2806 = vmax.f32 %v2622, 1.0
        %v2807 = vmax.f32 %v2631, 1.0
        %v2808 = vmax.f32 %v2640, 1.0
        %v2809 = vmax.f32 %v2649, 1.0
        %v2810 = vmax.f32 %v2658, 1.0
        %v2811 = vmax.f32 %v2667, 1.0
        %v2812 = vmax.f32 %v2676, 1.0
        %v2813 = vmax.f32 %v2685, 1.0
        %v2814 = vmax.f32 %v2694, 1.0
        %v2815 = vmax.f32 %v2703, 1.0
        %v2816 = vmax.f32 %v2712, 1.0
        %v2817 = vmax.f32 %v2721, 1.0
        %v2818 = vmax.f32 %v2730, 1.0
        %v2819 = vmax.f32 %v2739, 1.0
        %v2820 = vmax.f32 %v2748, 1.0
        %v2821 = vmax.f32 %v2757, 1.0
        %v2822 = vmax.f32 %v2766, 1.0
        %v2823 = vmax.f32 %v2775, 1.0
        %v2824 = vmax.f32 %v2784, 1.0
        %v2825 = vmax.f32 %v2793, 1.0
        %v2826 = vmax.f32 %v2802, 1.0
        %v2827 = vrcp.pop %v2803
        %v2828 = vmul.f32 %v2803, %v2827
        %v2829 = vsub.f32 1.0, %v2828
        %v2830 = vmul.f32 %v2827, %v2829
        %v2831 = vadd.f32 %v2827, %v2830
        %vm2832 = vweird.f32 %v2803
        %vm2833 = vweird.f32 %v2827
        %vm2834 = vmor %vm2832, %vm2833
        %v2835 = vsel %vm2834, %v2827, %v2831
        %v2836 = vand.u32 2147483647, %v2803
        %vm2837 = vcmp.eq.f32.partialorder %v2836, 8.507059e+37
        %v2838 = vand.u32 %v2803, 2147483648
        %v2839 = vor.u32 1.1754944e-38, %v2838
        %v2840 = vsel %vm2837, %v2839, %v2835
        %v2841 = vmul.f32 1.0, %v2840
        %v2842 = vrcp.pop %v2804
        %v2843 = vmul.f32 %v2804, %v2842
        %v2844 = vsub.f32 1.0, %v2843
        %v2845 = vmul.f32 %v2842, %v2844
        %v2846 = vadd.f32 %v2842, %v2845
        %vm2847 = vweird.f32 %v2804
        %vm2848 = vweird.f32 %v2842
        %vm2849 = vmor %vm2847, %vm2848
        %v2850 = vsel %vm2849, %v2842, %v2846
        %v2851 = vand.u32 2147483647, %v2804
        %vm2852 = vcmp.eq.f32.partialorder %v2851, 8.507059e+37
        %v2853 = vand.u32 %v2804, 2147483648
        %v2854 = vor.u32 1.1754944e-38, %v2853
        %v2855 = vsel %vm2852, %v2854, %v2850
        %v2856 = vmul.f32 1.0, %v2855
        %v2857 = vrcp.pop %v2805
        %v2858 = vmul.f32 %v2805, %v2857
        %v2859 = vsub.f32 1.0, %v2858
        %v2860 = vmul.f32 %v2857, %v2859
        %v2861 = vadd.f32 %v2857, %v2860
        %vm2862 = vweird.f32 %v2805
        %vm2863 = vweird.f32 %v2857
        %vm2864 = vmor %vm2862, %vm2863
        %v2865 = vsel %vm2864, %v2857, %v2861
        %v2866 = vand.u32 2147483647, %v2805
        %vm2867 = vcmp.eq.f32.partialorder %v2866, 8.507059e+37
        %v2868 = vand.u32 %v2805, 2147483648
        %v2869 = vor.u32 1.1754944e-38, %v2868
        %v2870 = vsel %vm2867, %v2869, %v2865
        %v2871 = vmul.f32 1.0, %v2870
        %v2872 = vrcp.pop %v2806
        %v2873 = vmul.f32 %v2806, %v2872
        %v2874 = vsub.f32 1.0, %v2873
        %v2875 = vmul.f32 %v2872, %v2874
        %v2876 = vadd.f32 %v2872, %v2875
        %vm2877 = vweird.f32 %v2806
        %vm2878 = vweird.f32 %v2872
        %vm2879 = vmor %vm2877, %vm2878
        %v2880 = vsel %vm2879, %v2872, %v2876
        %v2881 = vand.u32 2147483647, %v2806
        %vm2882 = vcmp.eq.f32.partialorder %v2881, 8.507059e+37
        %v2883 = vand.u32 %v2806, 2147483648
        %v2884 = vor.u32 1.1754944e-38, %v2883
        %v2885 = vsel %vm2882, %v2884, %v2880
        %v2886 = vmul.f32 1.0, %v2885
        %v2887 = vrcp.pop %v2807
        %v2888 = vmul.f32 %v2807, %v2887
        %v2889 = vsub.f32 1.0, %v2888
        %v2890 = vmul.f32 %v2887, %v2889
        %v2891 = vadd.f32 %v2887, %v2890
        %vm2892 = vweird.f32 %v2807
        %vm2893 = vweird.f32 %v2887
        %vm2894 = vmor %vm2892, %vm2893
        %v2895 = vsel %vm2894, %v2887, %v2891
        %v2896 = vand.u32 2147483647, %v2807
        %vm2897 = vcmp.eq.f32.partialorder %v2896, 8.507059e+37
        %v2898 = vand.u32 %v2807, 2147483648
        %v2899 = vor.u32 1.1754944e-38, %v2898
        %v2900 = vsel %vm2897, %v2899, %v2895
        %v2901 = vmul.f32 1.0, %v2900
        %v2902 = vrcp.pop %v2808
        %v2903 = vmul.f32 %v2808, %v2902
        %v2904 = vsub.f32 1.0, %v2903
        %v2905 = vmul.f32 %v2902, %v2904
        %v2906 = vadd.f32 %v2902, %v2905
        %vm2907 = vweird.f32 %v2808
        %vm2908 = vweird.f32 %v2902
        %vm2909 = vmor %vm2907, %vm2908
        %v2910 = vsel %vm2909, %v2902, %v2906
        %v2911 = vand.u32 2147483647, %v2808
        %vm2912 = vcmp.eq.f32.partialorder %v2911, 8.507059e+37
        %v2913 = vand.u32 %v2808, 2147483648
        %v2914 = vor.u32 1.1754944e-38, %v2913
        %v2915 = vsel %vm2912, %v2914, %v2910
        %v2916 = vmul.f32 1.0, %v2915
        %v2917 = vrcp.pop %v2809
        %v2918 = vmul.f32 %v2809, %v2917
        %v2919 = vsub.f32 1.0, %v2918
        %v2920 = vmul.f32 %v2917, %v2919
        %v2921 = vadd.f32 %v2917, %v2920
        %vm2922 = vweird.f32 %v2809
        %vm2923 = vweird.f32 %v2917
        %vm2924 = vmor %vm2922, %vm2923
        %v2925 = vsel %vm2924, %v2917, %v2921
        %v2926 = vand.u32 2147483647, %v2809
        %vm2927 = vcmp.eq.f32.partialorder %v2926, 8.507059e+37
        %v2928 = vand.u32 %v2809, 2147483648
        %v2929 = vor.u32 1.1754944e-38, %v2928
        %v2930 = vsel %vm2927, %v2929, %v2925
        %v2931 = vmul.f32 1.0, %v2930
        %v2932 = vrcp.pop %v2810
        %v2933 = vmul.f32 %v2810, %v2932
        %v2934 = vsub.f32 1.0, %v2933
        %v2935 = vmul.f32 %v2932, %v2934
        %v2936 = vadd.f32 %v2932, %v2935
        %vm2937 = vweird.f32 %v2810
        %vm2938 = vweird.f32 %v2932
        %vm2939 = vmor %vm2937, %vm2938
        %v2940 = vsel %vm2939, %v2932, %v2936
        %v2941 = vand.u32 2147483647, %v2810
        %vm2942 = vcmp.eq.f32.partialorder %v2941, 8.507059e+37
        %v2943 = vand.u32 %v2810, 2147483648
        %v2944 = vor.u32 1.1754944e-38, %v2943
        %v2945 = vsel %vm2942, %v2944, %v2940
        %v2946 = vmul.f32 1.0, %v2945
        %v2947 = vrcp.pop %v2811
        %v2948 = vmul.f32 %v2811, %v2947
        %v2949 = vsub.f32 1.0, %v2948
        %v2950 = vmul.f32 %v2947, %v2949
        %v2951 = vadd.f32 %v2947, %v2950
        %vm2952 = vweird.f32 %v2811
        %vm2953 = vweird.f32 %v2947
        %vm2954 = vmor %vm2952, %vm2953
        %v2955 = vsel %vm2954, %v2947, %v2951
        %v2956 = vand.u32 2147483647, %v2811
        %vm2957 = vcmp.eq.f32.partialorder %v2956, 8.507059e+37
        %v2958 = vand.u32 %v2811, 2147483648
        %v2959 = vor.u32 1.1754944e-38, %v2958
        %v2960 = vsel %vm2957, %v2959, %v2955
        %v2961 = vmul.f32 1.0, %v2960
        %v2962 = vrcp.pop %v2812
        %v2963 = vmul.f32 %v2812, %v2962
        %v2964 = vsub.f32 1.0, %v2963
        %v2965 = vmul.f32 %v2962, %v2964
        %v2966 = vadd.f32 %v2962, %v2965
        %vm2967 = vweird.f32 %v2812
        %vm2968 = vweird.f32 %v2962
        %vm2969 = vmor %vm2967, %vm2968
        %v2970 = vsel %vm2969, %v2962, %v2966
        %v2971 = vand.u32 2147483647, %v2812
        %vm2972 = vcmp.eq.f32.partialorder %v2971, 8.507059e+37
        %v2973 = vand.u32 %v2812, 2147483648
        %v2974 = vor.u32 1.1754944e-38, %v2973
        %v2975 = vsel %vm2972, %v2974, %v2970
        %v2976 = vmul.f32 1.0, %v2975
        %v2977 = vrcp.pop %v2813
        %v2978 = vmul.f32 %v2813, %v2977
        %v2979 = vsub.f32 1.0, %v2978
        %v2980 = vmul.f32 %v2977, %v2979
        %v2981 = vadd.f32 %v2977, %v2980
        %vm2982 = vweird.f32 %v2813
        %vm2983 = vweird.f32 %v2977
        %vm2984 = vmor %vm2982, %vm2983
        %v2985 = vsel %vm2984, %v2977, %v2981
        %v2986 = vand.u32 2147483647, %v2813
        %vm2987 = vcmp.eq.f32.partialorder %v2986, 8.507059e+37
        %v2988 = vand.u32 %v2813, 2147483648
        %v2989 = vor.u32 1.1754944e-38, %v2988
        %v2990 = vsel %vm2987, %v2989, %v2985
        %v2991 = vmul.f32 1.0, %v2990
        %v2992 = vrcp.pop %v2814
        %v2993 = vmul.f32 %v2814, %v2992
        %v2994 = vsub.f32 1.0, %v2993
        %v2995 = vmul.f32 %v2992, %v2994
        %v2996 = vadd.f32 %v2992, %v2995
        %vm2997 = vweird.f32 %v2814
        %vm2998 = vweird.f32 %v2992
        %vm2999 = vmor %vm2997, %vm2998
        %v3000 = vsel %vm2999, %v2992, %v2996
        %v3001 = vand.u32 2147483647, %v2814
        %vm3002 = vcmp.eq.f32.partialorder %v3001, 8.507059e+37
        %v3003 = vand.u32 %v2814, 2147483648
        %v3004 = vor.u32 1.1754944e-38, %v3003
        %v3005 = vsel %vm3002, %v3004, %v3000
        %v3006 = vmul.f32 1.0, %v3005
        %v3007 = vrcp.pop %v2815
        %v3008 = vmul.f32 %v2815, %v3007
        %v3009 = vsub.f32 1.0, %v3008
        %v3010 = vmul.f32 %v3007, %v3009
        %v3011 = vadd.f32 %v3007, %v3010
        %vm3012 = vweird.f32 %v2815
        %vm3013 = vweird.f32 %v3007
        %vm3014 = vmor %vm3012, %vm3013
        %v3015 = vsel %vm3014, %v3007, %v3011
        %v3016 = vand.u32 2147483647, %v2815
        %vm3017 = vcmp.eq.f32.partialorder %v3016, 8.507059e+37
        %v3018 = vand.u32 %v2815, 2147483648
        %v3019 = vor.u32 1.1754944e-38, %v3018
        %v3020 = vsel %vm3017, %v3019, %v3015
        %v3021 = vmul.f32 1.0, %v3020
        %v3022 = vrcp.pop %v2816
        %v3023 = vmul.f32 %v2816, %v3022
        %v3024 = vsub.f32 1.0, %v3023
        %v3025 = vmul.f32 %v3022, %v3024
        %v3026 = vadd.f32 %v3022, %v3025
        %vm3027 = vweird.f32 %v2816
        %vm3028 = vweird.f32 %v3022
        %vm3029 = vmor %vm3027, %vm3028
        %v3030 = vsel %vm3029, %v3022, %v3026
        %v3031 = vand.u32 2147483647, %v2816
        %vm3032 = vcmp.eq.f32.partialorder %v3031, 8.507059e+37
        %v3033 = vand.u32 %v2816, 2147483648
        %v3034 = vor.u32 1.1754944e-38, %v3033
        %v3035 = vsel %vm3032, %v3034, %v3030
        %v3036 = vmul.f32 1.0, %v3035
        %v3037 = vrcp.pop %v2817
        %v3038 = vmul.f32 %v2817, %v3037
        %v3039 = vsub.f32 1.0, %v3038
        %v3040 = vmul.f32 %v3037, %v3039
        %v3041 = vadd.f32 %v3037, %v3040
        %vm3042 = vweird.f32 %v2817
        %vm3043 = vweird.f32 %v3037
        %vm3044 = vmor %vm3042, %vm3043
        %v3045 = vsel %vm3044, %v3037, %v3041
        %v3046 = vand.u32 2147483647, %v2817
        %vm3047 = vcmp.eq.f32.partialorder %v3046, 8.507059e+37
        %v3048 = vand.u32 %v2817, 2147483648
        %v3049 = vor.u32 1.1754944e-38, %v3048
        %v3050 = vsel %vm3047, %v3049, %v3045
        %v3051 = vmul.f32 1.0, %v3050
        %v3052 = vrcp.pop %v2818
        %v3053 = vmul.f32 %v2818, %v3052
        %v3054 = vsub.f32 1.0, %v3053
        %v3055 = vmul.f32 %v3052, %v3054
        %v3056 = vadd.f32 %v3052, %v3055
        %vm3057 = vweird.f32 %v2818
        %vm3058 = vweird.f32 %v3052
        %vm3059 = vmor %vm3057, %vm3058
        %v3060 = vsel %vm3059, %v3052, %v3056
        %v3061 = vand.u32 2147483647, %v2818
        %vm3062 = vcmp.eq.f32.partialorder %v3061, 8.507059e+37
        %v3063 = vand.u32 %v2818, 2147483648
        %v3064 = vor.u32 1.1754944e-38, %v3063
        %v3065 = vsel %vm3062, %v3064, %v3060
        %v3066 = vmul.f32 1.0, %v3065
        %v3067 = vrcp.pop %v2819
        %v3068 = vmul.f32 %v2819, %v3067
        %v3069 = vsub.f32 1.0, %v3068
        %v3070 = vmul.f32 %v3067, %v3069
        %v3071 = vadd.f32 %v3067, %v3070
        %vm3072 = vweird.f32 %v2819
        %vm3073 = vweird.f32 %v3067
        %vm3074 = vmor %vm3072, %vm3073
        %v3075 = vsel %vm3074, %v3067, %v3071
        %v3076 = vand.u32 2147483647, %v2819
        %vm3077 = vcmp.eq.f32.partialorder %v3076, 8.507059e+37
        %v3078 = vand.u32 %v2819, 2147483648
        %v3079 = vor.u32 1.1754944e-38, %v3078
        %v3080 = vsel %vm3077, %v3079, %v3075
        %v3081 = vmul.f32 1.0, %v3080
        %v3082 = vrcp.pop %v2820
        %v3083 = vmul.f32 %v2820, %v3082
        %v3084 = vsub.f32 1.0, %v3083
        %v3085 = vmul.f32 %v3082, %v3084
        %v3086 = vadd.f32 %v3082, %v3085
        %vm3087 = vweird.f32 %v2820
        %vm3088 = vweird.f32 %v3082
        %vm3089 = vmor %vm3087, %vm3088
        %v3090 = vsel %vm3089, %v3082, %v3086
        %v3091 = vand.u32 2147483647, %v2820
        %vm3092 = vcmp.eq.f32.partialorder %v3091, 8.507059e+37
        %v3093 = vand.u32 %v2820, 2147483648
        %v3094 = vor.u32 1.1754944e-38, %v3093
        %v3095 = vsel %vm3092, %v3094, %v3090
        %v3096 = vmul.f32 1.0, %v3095
        %v3097 = vrcp.pop %v2821
        %v3098 = vmul.f32 %v2821, %v3097
        %v3099 = vsub.f32 1.0, %v3098
        %v3100 = vmul.f32 %v3097, %v3099
        %v3101 = vadd.f32 %v3097, %v3100
        %vm3102 = vweird.f32 %v2821
        %vm3103 = vweird.f32 %v3097
        %vm3104 = vmor %vm3102, %vm3103
        %v3105 = vsel %vm3104, %v3097, %v3101
        %v3106 = vand.u32 2147483647, %v2821
        %vm3107 = vcmp.eq.f32.partialorder %v3106, 8.507059e+37
        %v3108 = vand.u32 %v2821, 2147483648
        %v3109 = vor.u32 1.1754944e-38, %v3108
        %v3110 = vsel %vm3107, %v3109, %v3105
        %v3111 = vmul.f32 1.0, %v3110
        %v3112 = vrcp.pop %v2822
        %v3113 = vmul.f32 %v2822, %v3112
        %v3114 = vsub.f32 1.0, %v3113
        %v3115 = vmul.f32 %v3112, %v3114
        %v3116 = vadd.f32 %v3112, %v3115
        %vm3117 = vweird.f32 %v2822
        %vm3118 = vweird.f32 %v3112
        %vm3119 = vmor %vm3117, %vm3118
        %v3120 = vsel %vm3119, %v3112, %v3116
        %v3121 = vand.u32 2147483647, %v2822
        %vm3122 = vcmp.eq.f32.partialorder %v3121, 8.507059e+37
        %v3123 = vand.u32 %v2822, 2147483648
        %v3124 = vor.u32 1.1754944e-38, %v3123
        %v3125 = vsel %vm3122, %v3124, %v3120
        %v3126 = vmul.f32 1.0, %v3125
        %v3127 = vrcp.pop %v2823
        %v3128 = vmul.f32 %v2823, %v3127
        %v3129 = vsub.f32 1.0, %v3128
        %v3130 = vmul.f32 %v3127, %v3129
        %v3131 = vadd.f32 %v3127, %v3130
        %vm3132 = vweird.f32 %v2823
        %vm3133 = vweird.f32 %v3127
        %vm3134 = vmor %vm3132, %vm3133
        %v3135 = vsel %vm3134, %v3127, %v3131
        %v3136 = vand.u32 2147483647, %v2823
        %vm3137 = vcmp.eq.f32.partialorder %v3136, 8.507059e+37
        %v3138 = vand.u32 %v2823, 2147483648
        %v3139 = vor.u32 1.1754944e-38, %v3138
        %v3140 = vsel %vm3137, %v3139, %v3135
        %v3141 = vmul.f32 1.0, %v3140
        %v3142 = vrcp.pop %v2824
        %v3143 = vmul.f32 %v2824, %v3142
        %v3144 = vsub.f32 1.0, %v3143
        %v3145 = vmul.f32 %v3142, %v3144
        %v3146 = vadd.f32 %v3142, %v3145
        %vm3147 = vweird.f32 %v2824
        %vm3148 = vweird.f32 %v3142
        %vm3149 = vmor %vm3147, %vm3148
        %v3150 = vsel %vm3149, %v3142, %v3146
        %v3151 = vand.u32 2147483647, %v2824
        %vm3152 = vcmp.eq.f32.partialorder %v3151, 8.507059e+37
        %v3153 = vand.u32 %v2824, 2147483648
        %v3154 = vor.u32 1.1754944e-38, %v3153
        %v3155 = vsel %vm3152, %v3154, %v3150
        %v3156 = vmul.f32 1.0, %v3155
        %v3157 = vrcp.pop %v2825
        %v3158 = vmul.f32 %v2825, %v3157
        %v3159 = vsub.f32 1.0, %v3158
        %v3160 = vmul.f32 %v3157, %v3159
        %v3161 = vadd.f32 %v3157, %v3160
        %vm3162 = vweird.f32 %v2825
        %vm3163 = vweird.f32 %v3157
        %vm3164 = vmor %vm3162, %vm3163
        %v3165 = vsel %vm3164, %v3157, %v3161
        %v3166 = vand.u32 2147483647, %v2825
        %vm3167 = vcmp.eq.f32.partialorder %v3166, 8.507059e+37
        %v3168 = vand.u32 %v2825, 2147483648
        %v3169 = vor.u32 1.1754944e-38, %v3168
        %v3170 = vsel %vm3167, %v3169, %v3165
        %v3171 = vmul.f32 1.0, %v3170
        %v3172 = vrcp.pop %v2826
        %v3173 = vmul.f32 %v2826, %v3172
        %v3174 = vsub.f32 1.0, %v3173
        %v3175 = vmul.f32 %v3172, %v3174
        %v3176 = vadd.f32 %v3172, %v3175
        %vm3177 = vweird.f32 %v2826
        %vm3178 = vweird.f32 %v3172
        %vm3179 = vmor %vm3177, %vm3178
        %v3180 = vsel %vm3179, %v3172, %v3176
        %v3181 = vand.u32 2147483647, %v2826
        %vm3182 = vcmp.eq.f32.partialorder %v3181, 8.507059e+37
        %v3183 = vand.u32 %v2826, 2147483648
        %v3184 = vor.u32 1.1754944e-38, %v3183
        %v3185 = vsel %vm3182, %v3184, %v3180
        %v3186 = vmul.f32 1.0, %v3185
        %v3187 = vmul.f32 %v2539, %v2841
        %v3188 = vmul.f32 %v2540, %v2841
        %v3189 = vmul.f32 %v2541, %v2856
        %v3190 = vmul.f32 %v2542, %v2856
        %v3191 = vmul.f32 %v2543, %v2871
        %v3192 = vmul.f32 %v2544, %v2871
        %v3193 = vmul.f32 %v2545, %v2886
        %v3194 = vmul.f32 %v2546, %v2886
        %v3195 = vmul.f32 %v2547, %v2901
        %v3196 = vmul.f32 %v2548, %v2901
        %v3197 = vmul.f32 %v2549, %v2916
        %v3198 = vmul.f32 %v2550, %v2916
        %v3199 = vmul.f32 %v2551, %v2931
        %v3200 = vmul.f32 %v2552, %v2931
        %v3201 = vmul.f32 %v2553, %v2946
        %v3202 = vmul.f32 %v2554, %v2946
        %v3203 = vmul.f32 %v2555, %v2961
        %v3204 = vmul.f32 %v2556, %v2961
        %v3205 = vmul.f32 %v2557, %v2976
        %v3206 = vmul.f32 %v2558, %v2976
        %v3207 = vmul.f32 %v2559, %v2991
        %v3208 = vmul.f32 %v2560, %v2991
        %v3209 = vmul.f32 %v2561, %v3006
        %v3210 = vmul.f32 %v2562, %v3006
        %v3211 = vmul.f32 %v2563, %v3021
        %v3212 = vmul.f32 %v2564, %v3021
        %v3213 = vmul.f32 %v2565, %v3036
        %v3214 = vmul.f32 %v2566, %v3036
        %v3215 = vmul.f32 %v2567, %v3051
        %v3216 = vmul.f32 %v2568, %v3051
        %v3217 = vmul.f32 %v2569, %v3066
        %v3218 = vmul.f32 %v2570, %v3066
        %v3219 = vmul.f32 %v2571, %v3081
        %v3220 = vmul.f32 %v2572, %v3081
        %v3221 = vmul.f32 %v2573, %v3096
        %v3222 = vmul.f32 %v2574, %v3096
        %v3223 = vmul.f32 %v2575, %v3111
        %v3224 = vmul.f32 %v2576, %v3111
        %v3225 = vmul.f32 %v2577, %v3126
        %v3226 = vmul.f32 %v2578, %v3126
        %v3227 = vmul.f32 %v2579, %v3141
        %v3228 = vmul.f32 %v2580, %v3141
        %v3229 = vmul.f32 %v2581, %v3156
        %v3230 = vmul.f32 %v2582, %v3156
        %v3231 = vmul.f32 %v2583, %v3171
        %v3232 = vmul.f32 %v2584, %v3171
        %v3233 = vmul.f32 %v2585, %v3186
        %v3234 = vmul.f32 %v2586, %v3186
        %3236 = vset.pattern.permute.xlu0 16
        %3237 = vperm.xlu0 %3236, %v3187
        %v3238 = vpop.permute.xlu0 %3237
        %3241 = vset.pattern.permute.xlu0 16
        %3242 = vperm.xlu0 %3241, %v3188
        %v3243 = vpop.permute.xlu0 %3242
        %3246 = vset.pattern.permute.xlu0 16
        %3247 = vperm.xlu0 %3246, %v3189
        %v3248 = vpop.permute.xlu0 %3247
        %3251 = vset.pattern.permute.xlu0 16
        %3252 = vperm.xlu0 %3251, %v3190
        %v3253 = vpop.permute.xlu0 %3252
        %3256 = vset.pattern.permute.xlu0 16
        %3257 = vperm.xlu0 %3256, %v3191
        %v3258 = vpop.permute.xlu0 %3257
        %3261 = vset.pattern.permute.xlu0 16
        %3262 = vperm.xlu0 %3261, %v3192
        %v3263 = vpop.permute.xlu0 %3262
        %3266 = vset.pattern.permute.xlu0 16
        %3267 = vperm.xlu0 %3266, %v3193
        %v3268 = vpop.permute.xlu0 %3267
        %3271 = vset.pattern.permute.xlu0 16
        %3272 = vperm.xlu0 %3271, %v3194
        %v3273 = vpop.permute.xlu0 %3272
        %3276 = vset.pattern.permute.xlu0 16
        %3277 = vperm.xlu0 %3276, %v3195
        %v3278 = vpop.permute.xlu0 %3277
        %3281 = vset.pattern.permute.xlu0 16
        %3282 = vperm.xlu0 %3281, %v3196
        %v3283 = vpop.permute.xlu0 %3282
        %3286 = vset.pattern.permute.xlu0 16
        %3287 = vperm.xlu0 %3286, %v3197
        %v3288 = vpop.permute.xlu0 %3287
        %3291 = vset.pattern.permute.xlu0 16
        %3292 = vperm.xlu0 %3291, %v3198
        %v3293 = vpop.permute.xlu0 %3292
        %3296 = vset.pattern.permute.xlu0 16
        %3297 = vperm.xlu0 %3296, %v3199
        %v3298 = vpop.permute.xlu0 %3297
        %3301 = vset.pattern.permute.xlu0 16
        %3302 = vperm.xlu0 %3301, %v3200
        %v3303 = vpop.permute.xlu0 %3302
        %3306 = vset.pattern.permute.xlu0 16
        %3307 = vperm.xlu0 %3306, %v3201
        %v3308 = vpop.permute.xlu0 %3307
        %3311 = vset.pattern.permute.xlu0 16
        %3312 = vperm.xlu0 %3311, %v3202
        %v3313 = vpop.permute.xlu0 %3312
        %3316 = vset.pattern.permute.xlu0 16
        %3317 = vperm.xlu0 %3316, %v3203
        %v3318 = vpop.permute.xlu0 %3317
        %3321 = vset.pattern.permute.xlu0 16
        %3322 = vperm.xlu0 %3321, %v3204
        %v3323 = vpop.permute.xlu0 %3322
        %3326 = vset.pattern.permute.xlu0 16
        %3327 = vperm.xlu0 %3326, %v3205
        %v3328 = vpop.permute.xlu0 %3327
        %3331 = vset.pattern.permute.xlu0 16
        %3332 = vperm.xlu0 %3331, %v3206
        %v3333 = vpop.permute.xlu0 %3332
        %3336 = vset.pattern.permute.xlu0 16
        %3337 = vperm.xlu0 %3336, %v3207
        %v3338 = vpop.permute.xlu0 %3337
        %3341 = vset.pattern.permute.xlu0 16
        %3342 = vperm.xlu0 %3341, %v3208
        %v3343 = vpop.permute.xlu0 %3342
        %3346 = vset.pattern.permute.xlu0 16
        %3347 = vperm.xlu0 %3346, %v3209
        %v3348 = vpop.permute.xlu0 %3347
        %3351 = vset.pattern.permute.xlu0 16
        %3352 = vperm.xlu0 %3351, %v3210
        %v3353 = vpop.permute.xlu0 %3352
        %3356 = vset.pattern.permute.xlu0 16
        %3357 = vperm.xlu0 %3356, %v3211
        %v3358 = vpop.permute.xlu0 %3357
        %3361 = vset.pattern.permute.xlu0 16
        %3362 = vperm.xlu0 %3361, %v3212
        %v3363 = vpop.permute.xlu0 %3362
        %3366 = vset.pattern.permute.xlu0 16
        %3367 = vperm.xlu0 %3366, %v3213
        %v3368 = vpop.permute.xlu0 %3367
        %3371 = vset.pattern.permute.xlu0 16
        %3372 = vperm.xlu0 %3371, %v3214
        %v3373 = vpop.permute.xlu0 %3372
        %3376 = vset.pattern.permute.xlu0 16
        %3377 = vperm.xlu0 %3376, %v3215
        %v3378 = vpop.permute.xlu0 %3377
        %3381 = vset.pattern.permute.xlu0 16
        %3382 = vperm.xlu0 %3381, %v3216
        %v3383 = vpop.permute.xlu0 %3382
        %3386 = vset.pattern.permute.xlu0 16
        %3387 = vperm.xlu0 %3386, %v3217
        %v3388 = vpop.permute.xlu0 %3387
        %3391 = vset.pattern.permute.xlu0 16
        %3392 = vperm.xlu0 %3391, %v3218
        %v3393 = vpop.permute.xlu0 %3392
        %3396 = vset.pattern.permute.xlu0 16
        %3397 = vperm.xlu0 %3396, %v3219
        %v3398 = vpop.permute.xlu0 %3397
        %3401 = vset.pattern.permute.xlu0 16
        %3402 = vperm.xlu0 %3401, %v3220
        %v3403 = vpop.permute.xlu0 %3402
        %3406 = vset.pattern.permute.xlu0 16
        %3407 = vperm.xlu0 %3406, %v3221
        %v3408 = vpop.permute.xlu0 %3407
        %3411 = vset.pattern.permute.xlu0 16
        %3412 = vperm.xlu0 %3411, %v3222
        %v3413 = vpop.permute.xlu0 %3412
        %3416 = vset.pattern.permute.xlu0 16
        %3417 = vperm.xlu0 %3416, %v3223
        %v3418 = vpop.permute.xlu0 %3417
        %3421 = vset.pattern.permute.xlu0 16
        %3422 = vperm.xlu0 %3421, %v3224
        %v3423 = vpop.permute.xlu0 %3422
        %3426 = vset.pattern.permute.xlu0 16
        %3427 = vperm.xlu0 %3426, %v3225
        %v3428 = vpop.permute.xlu0 %3427
        %3431 = vset.pattern.permute.xlu0 16
        %3432 = vperm.xlu0 %3431, %v3226
        %v3433 = vpop.permute.xlu0 %3432
        %3436 = vset.pattern.permute.xlu0 16
        %3437 = vperm.xlu0 %3436, %v3227
        %v3438 = vpop.permute.xlu0 %3437
        %3441 = vset.pattern.permute.xlu0 16
        %3442 = vperm.xlu0 %3441, %v3228
        %v3443 = vpop.permute.xlu0 %3442
        %3446 = vset.pattern.permute.xlu0 16
        %3447 = vperm.xlu0 %3446, %v3229
        %v3448 = vpop.permute.xlu0 %3447
        %3451 = vset.pattern.permute.xlu0 16
        %3452 = vperm.xlu0 %3451, %v3230
        %v3453 = vpop.permute.xlu0 %3452
        %3456 = vset.pattern.permute.xlu0 16
        %3457 = vperm.xlu0 %3456, %v3231
        %v3458 = vpop.permute.xlu0 %3457
        %3461 = vset.pattern.permute.xlu0 16
        %3462 = vperm.xlu0 %3461, %v3232
        %v3463 = vpop.permute.xlu0 %3462
        %3466 = vset.pattern.permute.xlu0 16
        %3467 = vperm.xlu0 %3466, %v3233
        %v3468 = vpop.permute.xlu0 %3467
        %3471 = vset.pattern.permute.xlu0 16
        %3472 = vperm.xlu0 %3471, %v3234
        %v3473 = vpop.permute.xlu0 %3472
        %v3475 = vmul.f32 %v3238, %v408
        %v3476 = vmul.f32 %v3243, %v409
        %v3477 = vmul.f32 %v3248, %v410
        %v3478 = vmul.f32 %v3253, %v411
        %v3479 = vmul.f32 %v3258, %v412
        %v3480 = vmul.f32 %v3263, %v413
        %v3481 = vmul.f32 %v3268, %v414
        %v3482 = vmul.f32 %v3273, %v415
        %v3483 = vmul.f32 %v3278, %v416
        %v3484 = vmul.f32 %v3283, %v417
        %v3485 = vmul.f32 %v3288, %v418
        %v3486 = vmul.f32 %v3293, %v419
        %v3487 = vmul.f32 %v3298, %v420
        %v3488 = vmul.f32 %v3303, %v421
        %v3489 = vmul.f32 %v3308, %v422
        %v3490 = vmul.f32 %v3313, %v423
        %v3491 = vmul.f32 %v3318, %v424
        %v3492 = vmul.f32 %v3323, %v425
        %v3493 = vmul.f32 %v3328, %v426
        %v3494 = vmul.f32 %v3333, %v427
        %v3495 = vmul.f32 %v3338, %v428
        %v3496 = vmul.f32 %v3343, %v429
        %v3497 = vmul.f32 %v3348, %v430
        %v3498 = vmul.f32 %v3353, %v431
        %v3499 = vmul.f32 %v3358, %v432
        %v3500 = vmul.f32 %v3363, %v433
        %v3501 = vmul.f32 %v3368, %v434
        %v3502 = vmul.f32 %v3373, %v435
        %v3503 = vmul.f32 %v3378, %v436
        %v3504 = vmul.f32 %v3383, %v437
        %v3505 = vmul.f32 %v3388, %v438
        %v3506 = vmul.f32 %v3393, %v439
        %v3507 = vmul.f32 %v3398, %v440
        %v3508 = vmul.f32 %v3403, %v441
        %v3509 = vmul.f32 %v3408, %v442
        %v3510 = vmul.f32 %v3413, %v443
        %v3511 = vmul.f32 %v3418, %v444
        %v3512 = vmul.f32 %v3423, %v445
        %v3513 = vmul.f32 %v3428, %v446
        %v3514 = vmul.f32 %v3433, %v447
        %v3515 = vmul.f32 %v3438, %v448
        %v3516 = vmul.f32 %v3443, %v449
        %v3517 = vmul.f32 %v3448, %v450
        %v3518 = vmul.f32 %v3453, %v451
        %v3519 = vmul.f32 %v3458, %v452
        %v3520 = vmul.f32 %v3463, %v453
        %v3521 = vmul.f32 %v3468, %v454
        %v3522 = vmul.f32 %v3473, %v455
        %v3523 = vsel %vm592, %v3475, 0.0
        %v3524 = vsel %vm592, %v3476, 0.0
        %v3525 = vadd.f32 %v3523, %v3524
        %v3526 = vrot.slane %v3525, 4
        %v3527 = vadd.f32 %v3525, %v3526
        %v3528 = vrot.slane %v3527, 2
        %v3529 = vadd.f32 %v3527, %v3528
        %v3530 = vrot.slane %v3529, 1
        %v3531 = vadd.f32 %v3529, %v3530
        %v3532 = vsel %vm592, %v3477, 0.0
        %v3533 = vsel %vm592, %v3478, 0.0
        %v3534 = vadd.f32 %v3532, %v3533
        %v3535 = vrot.slane %v3534, 4
        %v3536 = vadd.f32 %v3534, %v3535
        %v3537 = vrot.slane %v3536, 2
        %v3538 = vadd.f32 %v3536, %v3537
        %v3539 = vrot.slane %v3538, 1
        %v3540 = vadd.f32 %v3538, %v3539
        %v3541 = vsel %vm592, %v3479, 0.0
        %v3542 = vsel %vm592, %v3480, 0.0
        %v3543 = vadd.f32 %v3541, %v3542
        %v3544 = vrot.slane %v3543, 4
        %v3545 = vadd.f32 %v3543, %v3544
        %v3546 = vrot.slane %v3545, 2
        %v3547 = vadd.f32 %v3545, %v3546
        %v3548 = vrot.slane %v3547, 1
        %v3549 = vadd.f32 %v3547, %v3548
        %v3550 = vsel %vm592, %v3481, 0.0
        %v3551 = vsel %vm592, %v3482, 0.0
        %v3552 = vadd.f32 %v3550, %v3551
        %v3553 = vrot.slane %v3552, 4
        %v3554 = vadd.f32 %v3552, %v3553
        %v3555 = vrot.slane %v3554, 2
        %v3556 = vadd.f32 %v3554, %v3555
        %v3557 = vrot.slane %v3556, 1
        %v3558 = vadd.f32 %v3556, %v3557
        %v3559 = vsel %vm592, %v3483, 0.0
        %v3560 = vsel %vm592, %v3484, 0.0
        %v3561 = vadd.f32 %v3559, %v3560
        %v3562 = vrot.slane %v3561, 4
        %v3563 = vadd.f32 %v3561, %v3562
        %v3564 = vrot.slane %v3563, 2
        %v3565 = vadd.f32 %v3563, %v3564
        %v3566 = vrot.slane %v3565, 1
        %v3567 = vadd.f32 %v3565, %v3566
        %v3568 = vsel %vm592, %v3485, 0.0
        %v3569 = vsel %vm592, %v3486, 0.0
        %v3570 = vadd.f32 %v3568, %v3569
        %v3571 = vrot.slane %v3570, 4
        %v3572 = vadd.f32 %v3570, %v3571
        %v3573 = vrot.slane %v3572, 2
        %v3574 = vadd.f32 %v3572, %v3573
        %v3575 = vrot.slane %v3574, 1
        %v3576 = vadd.f32 %v3574, %v3575
        %v3577 = vsel %vm592, %v3487, 0.0
        %v3578 = vsel %vm592, %v3488, 0.0
        %v3579 = vadd.f32 %v3577, %v3578
        %v3580 = vrot.slane %v3579, 4
        %v3581 = vadd.f32 %v3579, %v3580
        %v3582 = vrot.slane %v3581, 2
        %v3583 = vadd.f32 %v3581, %v3582
        %v3584 = vrot.slane %v3583, 1
        %v3585 = vadd.f32 %v3583, %v3584
        %v3586 = vsel %vm592, %v3489, 0.0
        %v3587 = vsel %vm592, %v3490, 0.0
        %v3588 = vadd.f32 %v3586, %v3587
        %v3589 = vrot.slane %v3588, 4
        %v3590 = vadd.f32 %v3588, %v3589
        %v3591 = vrot.slane %v3590, 2
        %v3592 = vadd.f32 %v3590, %v3591
        %v3593 = vrot.slane %v3592, 1
        %v3594 = vadd.f32 %v3592, %v3593
        %v3595 = vsel %vm592, %v3491, 0.0
        %v3596 = vsel %vm592, %v3492, 0.0
        %v3597 = vadd.f32 %v3595, %v3596
        %v3598 = vrot.slane %v3597, 4
        %v3599 = vadd.f32 %v3597, %v3598
        %v3600 = vrot.slane %v3599, 2
        %v3601 = vadd.f32 %v3599, %v3600
        %v3602 = vrot.slane %v3601, 1
        %v3603 = vadd.f32 %v3601, %v3602
        %v3604 = vsel %vm592, %v3493, 0.0
        %v3605 = vsel %vm592, %v3494, 0.0
        %v3606 = vadd.f32 %v3604, %v3605
        %v3607 = vrot.slane %v3606, 4
        %v3608 = vadd.f32 %v3606, %v3607
        %v3609 = vrot.slane %v3608, 2
        %v3610 = vadd.f32 %v3608, %v3609
        %v3611 = vrot.slane %v3610, 1
        %v3612 = vadd.f32 %v3610, %v3611
        %v3613 = vsel %vm592, %v3495, 0.0
        %v3614 = vsel %vm592, %v3496, 0.0
        %v3615 = vadd.f32 %v3613, %v3614
        %v3616 = vrot.slane %v3615, 4
        %v3617 = vadd.f32 %v3615, %v3616
        %v3618 = vrot.slane %v3617, 2
        %v3619 = vadd.f32 %v3617, %v3618
        %v3620 = vrot.slane %v3619, 1
        %v3621 = vadd.f32 %v3619, %v3620
        %v3622 = vsel %vm592, %v3497, 0.0
        %v3623 = vsel %vm592, %v3498, 0.0
        %v3624 = vadd.f32 %v3622, %v3623
        %v3625 = vrot.slane %v3624, 4
        %v3626 = vadd.f32 %v3624, %v3625
        %v3627 = vrot.slane %v3626, 2
        %v3628 = vadd.f32 %v3626, %v3627
        %v3629 = vrot.slane %v3628, 1
        %v3630 = vadd.f32 %v3628, %v3629
        %v3631 = vsel %vm592, %v3499, 0.0
        %v3632 = vsel %vm592, %v3500, 0.0
        %v3633 = vadd.f32 %v3631, %v3632
        %v3634 = vrot.slane %v3633, 4
        %v3635 = vadd.f32 %v3633, %v3634
        %v3636 = vrot.slane %v3635, 2
        %v3637 = vadd.f32 %v3635, %v3636
        %v3638 = vrot.slane %v3637, 1
        %v3639 = vadd.f32 %v3637, %v3638
        %v3640 = vsel %vm592, %v3501, 0.0
        %v3641 = vsel %vm592, %v3502, 0.0
        %v3642 = vadd.f32 %v3640, %v3641
        %v3643 = vrot.slane %v3642, 4
        %v3644 = vadd.f32 %v3642, %v3643
        %v3645 = vrot.slane %v3644, 2
        %v3646 = vadd.f32 %v3644, %v3645
        %v3647 = vrot.slane %v3646, 1
        %v3648 = vadd.f32 %v3646, %v3647
        %v3649 = vsel %vm592, %v3503, 0.0
        %v3650 = vsel %vm592, %v3504, 0.0
        %v3651 = vadd.f32 %v3649, %v3650
        %v3652 = vrot.slane %v3651, 4
        %v3653 = vadd.f32 %v3651, %v3652
        %v3654 = vrot.slane %v3653, 2
        %v3655 = vadd.f32 %v3653, %v3654
        %v3656 = vrot.slane %v3655, 1
        %v3657 = vadd.f32 %v3655, %v3656
        %v3658 = vsel %vm592, %v3505, 0.0
        %v3659 = vsel %vm592, %v3506, 0.0
        %v3660 = vadd.f32 %v3658, %v3659
        %v3661 = vrot.slane %v3660, 4
        %v3662 = vadd.f32 %v3660, %v3661
        %v3663 = vrot.slane %v3662, 2
        %v3664 = vadd.f32 %v3662, %v3663
        %v3665 = vrot.slane %v3664, 1
        %v3666 = vadd.f32 %v3664, %v3665
        %v3667 = vsel %vm592, %v3507, 0.0
        %v3668 = vsel %vm592, %v3508, 0.0
        %v3669 = vadd.f32 %v3667, %v3668
        %v3670 = vrot.slane %v3669, 4
        %v3671 = vadd.f32 %v3669, %v3670
        %v3672 = vrot.slane %v3671, 2
        %v3673 = vadd.f32 %v3671, %v3672
        %v3674 = vrot.slane %v3673, 1
        %v3675 = vadd.f32 %v3673, %v3674
        %v3676 = vsel %vm592, %v3509, 0.0
        %v3677 = vsel %vm592, %v3510, 0.0
        %v3678 = vadd.f32 %v3676, %v3677
        %v3679 = vrot.slane %v3678, 4
        %v3680 = vadd.f32 %v3678, %v3679
        %v3681 = vrot.slane %v3680, 2
        %v3682 = vadd.f32 %v3680, %v3681
        %v3683 = vrot.slane %v3682, 1
        %v3684 = vadd.f32 %v3682, %v3683
        %v3685 = vsel %vm592, %v3511, 0.0
        %v3686 = vsel %vm592, %v3512, 0.0
        %v3687 = vadd.f32 %v3685, %v3686
        %v3688 = vrot.slane %v3687, 4
        %v3689 = vadd.f32 %v3687, %v3688
        %v3690 = vrot.slane %v3689, 2
        %v3691 = vadd.f32 %v3689, %v3690
        %v3692 = vrot.slane %v3691, 1
        %v3693 = vadd.f32 %v3691, %v3692
        %v3694 = vsel %vm592, %v3513, 0.0
        %v3695 = vsel %vm592, %v3514, 0.0
        %v3696 = vadd.f32 %v3694, %v3695
        %v3697 = vrot.slane %v3696, 4
        %v3698 = vadd.f32 %v3696, %v3697
        %v3699 = vrot.slane %v3698, 2
        %v3700 = vadd.f32 %v3698, %v3699
        %v3701 = vrot.slane %v3700, 1
        %v3702 = vadd.f32 %v3700, %v3701
        %v3703 = vsel %vm592, %v3515, 0.0
        %v3704 = vsel %vm592, %v3516, 0.0
        %v3705 = vadd.f32 %v3703, %v3704
        %v3706 = vrot.slane %v3705, 4
        %v3707 = vadd.f32 %v3705, %v3706
        %v3708 = vrot.slane %v3707, 2
        %v3709 = vadd.f32 %v3707, %v3708
        %v3710 = vrot.slane %v3709, 1
        %v3711 = vadd.f32 %v3709, %v3710
        %v3712 = vsel %vm592, %v3517, 0.0
        %v3713 = vsel %vm592, %v3518, 0.0
        %v3714 = vadd.f32 %v3712, %v3713
        %v3715 = vrot.slane %v3714, 4
        %v3716 = vadd.f32 %v3714, %v3715
        %v3717 = vrot.slane %v3716, 2
        %v3718 = vadd.f32 %v3716, %v3717
        %v3719 = vrot.slane %v3718, 1
        %v3720 = vadd.f32 %v3718, %v3719
        %v3721 = vsel %vm592, %v3519, 0.0
        %v3722 = vsel %vm592, %v3520, 0.0
        %v3723 = vadd.f32 %v3721, %v3722
        %v3724 = vrot.slane %v3723, 4
        %v3725 = vadd.f32 %v3723, %v3724
        %v3726 = vrot.slane %v3725, 2
        %v3727 = vadd.f32 %v3725, %v3726
        %v3728 = vrot.slane %v3727, 1
        %v3729 = vadd.f32 %v3727, %v3728
        %v3730 = vsel %vm592, %v3521, 0.0
        %v3731 = vsel %vm592, %v3522, 0.0
        %v3732 = vadd.f32 %v3730, %v3731
        %v3733 = vrot.slane %v3732, 4
        %v3734 = vadd.f32 %v3732, %v3733
        %v3735 = vrot.slane %v3734, 2
        %v3736 = vadd.f32 %v3734, %v3735
        %v3737 = vrot.slane %v3736, 1
        %v3738 = vadd.f32 %v3736, %v3737
        %3740 = vset.pattern.permute.xlu0 17
        %3741 = vperm.xlu0 %3740, %v408
        %v3742 = vpop.permute.xlu0 %3741
        %3745 = vset.pattern.permute.xlu0 17
        %3746 = vperm.xlu0 %3745, %v409
        %v3747 = vpop.permute.xlu0 %3746
        %3750 = vset.pattern.permute.xlu0 17
        %3751 = vperm.xlu0 %3750, %v410
        %v3752 = vpop.permute.xlu0 %3751
        %3755 = vset.pattern.permute.xlu0 17
        %3756 = vperm.xlu0 %3755, %v411
        %v3757 = vpop.permute.xlu0 %3756
        %3760 = vset.pattern.permute.xlu0 17
        %3761 = vperm.xlu0 %3760, %v412
        %v3762 = vpop.permute.xlu0 %3761
        %3765 = vset.pattern.permute.xlu0 17
        %3766 = vperm.xlu0 %3765, %v413
        %v3767 = vpop.permute.xlu0 %3766
        %3770 = vset.pattern.permute.xlu0 17
        %3771 = vperm.xlu0 %3770, %v414
        %v3772 = vpop.permute.xlu0 %3771
        %3775 = vset.pattern.permute.xlu0 17
        %3776 = vperm.xlu0 %3775, %v415
        %v3777 = vpop.permute.xlu0 %3776
        %3780 = vset.pattern.permute.xlu0 17
        %3781 = vperm.xlu0 %3780, %v416
        %v3782 = vpop.permute.xlu0 %3781
        %3785 = vset.pattern.permute.xlu0 17
        %3786 = vperm.xlu0 %3785, %v417
        %v3787 = vpop.permute.xlu0 %3786
        %3790 = vset.pattern.permute.xlu0 17
        %3791 = vperm.xlu0 %3790, %v418
        %v3792 = vpop.permute.xlu0 %3791
        %3795 = vset.pattern.permute.xlu0 17
        %3796 = vperm.xlu0 %3795, %v419
        %v3797 = vpop.permute.xlu0 %3796
        %3800 = vset.pattern.permute.xlu0 17
        %3801 = vperm.xlu0 %3800, %v420
        %v3802 = vpop.permute.xlu0 %3801
        %3805 = vset.pattern.permute.xlu0 17
        %3806 = vperm.xlu0 %3805, %v421
        %v3807 = vpop.permute.xlu0 %3806
        %3810 = vset.pattern.permute.xlu0 17
        %3811 = vperm.xlu0 %3810, %v422
        %v3812 = vpop.permute.xlu0 %3811
        %3815 = vset.pattern.permute.xlu0 17
        %3816 = vperm.xlu0 %3815, %v423
        %v3817 = vpop.permute.xlu0 %3816
        %3820 = vset.pattern.permute.xlu0 17
        %3821 = vperm.xlu0 %3820, %v424
        %v3822 = vpop.permute.xlu0 %3821
        %3825 = vset.pattern.permute.xlu0 17
        %3826 = vperm.xlu0 %3825, %v425
        %v3827 = vpop.permute.xlu0 %3826
        %3830 = vset.pattern.permute.xlu0 17
        %3831 = vperm.xlu0 %3830, %v426
        %v3832 = vpop.permute.xlu0 %3831
        %3835 = vset.pattern.permute.xlu0 17
        %3836 = vperm.xlu0 %3835, %v427
        %v3837 = vpop.permute.xlu0 %3836
        %3840 = vset.pattern.permute.xlu0 17
        %3841 = vperm.xlu0 %3840, %v428
        %v3842 = vpop.permute.xlu0 %3841
        %3845 = vset.pattern.permute.xlu0 17
        %3846 = vperm.xlu0 %3845, %v429
        %v3847 = vpop.permute.xlu0 %3846
        %3850 = vset.pattern.permute.xlu0 17
        %3851 = vperm.xlu0 %3850, %v430
        %v3852 = vpop.permute.xlu0 %3851
        %3855 = vset.pattern.permute.xlu0 17
        %3856 = vperm.xlu0 %3855, %v431
        %v3857 = vpop.permute.xlu0 %3856
        %3860 = vset.pattern.permute.xlu0 17
        %3861 = vperm.xlu0 %3860, %v432
        %v3862 = vpop.permute.xlu0 %3861
        %3865 = vset.pattern.permute.xlu0 17
        %3866 = vperm.xlu0 %3865, %v433
        %v3867 = vpop.permute.xlu0 %3866
        %3870 = vset.pattern.permute.xlu0 17
        %3871 = vperm.xlu0 %3870, %v434
        %v3872 = vpop.permute.xlu0 %3871
        %3875 = vset.pattern.permute.xlu0 17
        %3876 = vperm.xlu0 %3875, %v435
        %v3877 = vpop.permute.xlu0 %3876
        %3880 = vset.pattern.permute.xlu0 17
        %3881 = vperm.xlu0 %3880, %v436
        %v3882 = vpop.permute.xlu0 %3881
        %3885 = vset.pattern.permute.xlu0 17
        %3886 = vperm.xlu0 %3885, %v437
        %v3887 = vpop.permute.xlu0 %3886
        %3890 = vset.pattern.permute.xlu0 17
        %3891 = vperm.xlu0 %3890, %v438
        %v3892 = vpop.permute.xlu0 %3891
        %3895 = vset.pattern.permute.xlu0 17
        %3896 = vperm.xlu0 %3895, %v439
        %v3897 = vpop.permute.xlu0 %3896
        %3900 = vset.pattern.permute.xlu0 17
        %3901 = vperm.xlu0 %3900, %v440
        %v3902 = vpop.permute.xlu0 %3901
        %3905 = vset.pattern.permute.xlu0 17
        %3906 = vperm.xlu0 %3905, %v441
        %v3907 = vpop.permute.xlu0 %3906
        %3910 = vset.pattern.permute.xlu0 17
        %3911 = vperm.xlu0 %3910, %v442
        %v3912 = vpop.permute.xlu0 %3911
        %3915 = vset.pattern.permute.xlu0 17
        %3916 = vperm.xlu0 %3915, %v443
        %v3917 = vpop.permute.xlu0 %3916
        %3920 = vset.pattern.permute.xlu0 17
        %3921 = vperm.xlu0 %3920, %v444
        %v3922 = vpop.permute.xlu0 %3921
        %3925 = vset.pattern.permute.xlu0 17
        %3926 = vperm.xlu0 %3925, %v445
        %v3927 = vpop.permute.xlu0 %3926
        %3930 = vset.pattern.permute.xlu0 17
        %3931 = vperm.xlu0 %3930, %v446
        %v3932 = vpop.permute.xlu0 %3931
        %3935 = vset.pattern.permute.xlu0 17
        %3936 = vperm.xlu0 %3935, %v447
        %v3937 = vpop.permute.xlu0 %3936
        %3940 = vset.pattern.permute.xlu0 17
        %3941 = vperm.xlu0 %3940, %v448
        %v3942 = vpop.permute.xlu0 %3941
        %3945 = vset.pattern.permute.xlu0 17
        %3946 = vperm.xlu0 %3945, %v449
        %v3947 = vpop.permute.xlu0 %3946
        %3950 = vset.pattern.permute.xlu0 17
        %3951 = vperm.xlu0 %3950, %v450
        %v3952 = vpop.permute.xlu0 %3951
        %3955 = vset.pattern.permute.xlu0 17
        %3956 = vperm.xlu0 %3955, %v451
        %v3957 = vpop.permute.xlu0 %3956
        %3960 = vset.pattern.permute.xlu0 17
        %3961 = vperm.xlu0 %3960, %v452
        %v3962 = vpop.permute.xlu0 %3961
        %3965 = vset.pattern.permute.xlu0 17
        %3966 = vperm.xlu0 %3965, %v453
        %v3967 = vpop.permute.xlu0 %3966
        %3970 = vset.pattern.permute.xlu0 17
        %3971 = vperm.xlu0 %3970, %v454
        %v3972 = vpop.permute.xlu0 %3971
        %3975 = vset.pattern.permute.xlu0 17
        %3976 = vperm.xlu0 %3975, %v455
        %v3977 = vpop.permute.xlu0 %3976
        %v3979 = vmul.f32 %v3742, %v408
        %v3980 = vmul.f32 %v3747, %v409
        %v3981 = vmul.f32 %v3752, %v410
        %v3982 = vmul.f32 %v3757, %v411
        %v3983 = vmul.f32 %v3762, %v412
        %v3984 = vmul.f32 %v3767, %v413
        %v3985 = vmul.f32 %v3772, %v414
        %v3986 = vmul.f32 %v3777, %v415
        %v3987 = vmul.f32 %v3782, %v416
        %v3988 = vmul.f32 %v3787, %v417
        %v3989 = vmul.f32 %v3792, %v418
        %v3990 = vmul.f32 %v3797, %v419
        %v3991 = vmul.f32 %v3802, %v420
        %v3992 = vmul.f32 %v3807, %v421
        %v3993 = vmul.f32 %v3812, %v422
        %v3994 = vmul.f32 %v3817, %v423
        %v3995 = vmul.f32 %v3822, %v424
        %v3996 = vmul.f32 %v3827, %v425
        %v3997 = vmul.f32 %v3832, %v426
        %v3998 = vmul.f32 %v3837, %v427
        %v3999 = vmul.f32 %v3842, %v428
        %v4000 = vmul.f32 %v3847, %v429
        %v4001 = vmul.f32 %v3852, %v430
        %v4002 = vmul.f32 %v3857, %v431
        %v4003 = vmul.f32 %v3862, %v432
        %v4004 = vmul.f32 %v3867, %v433
        %v4005 = vmul.f32 %v3872, %v434
        %v4006 = vmul.f32 %v3877, %v435
        %v4007 = vmul.f32 %v3882, %v436
        %v4008 = vmul.f32 %v3887, %v437
        %v4009 = vmul.f32 %v3892, %v438
        %v4010 = vmul.f32 %v3897, %v439
        %v4011 = vmul.f32 %v3902, %v440
        %v4012 = vmul.f32 %v3907, %v441
        %v4013 = vmul.f32 %v3912, %v442
        %v4014 = vmul.f32 %v3917, %v443
        %v4015 = vmul.f32 %v3922, %v444
        %v4016 = vmul.f32 %v3927, %v445
        %v4017 = vmul.f32 %v3932, %v446
        %v4018 = vmul.f32 %v3937, %v447
        %v4019 = vmul.f32 %v3942, %v448
        %v4020 = vmul.f32 %v3947, %v449
        %v4021 = vmul.f32 %v3952, %v450
        %v4022 = vmul.f32 %v3957, %v451
        %v4023 = vmul.f32 %v3962, %v452
        %v4024 = vmul.f32 %v3967, %v453
        %v4025 = vmul.f32 %v3972, %v454
        %v4026 = vmul.f32 %v3977, %v455
        %v4027 = vsel %vm592, %v3979, 0.0
        %v4028 = vsel %vm592, %v3980, 0.0
        %v4029 = vadd.f32 %v4027, %v4028
        %v4030 = vrot.slane %v4029, 4
        %v4031 = vadd.f32 %v4029, %v4030
        %v4032 = vrot.slane %v4031, 2
        %v4033 = vadd.f32 %v4031, %v4032
        %v4034 = vrot.slane %v4033, 1
        %v4035 = vadd.f32 %v4033, %v4034
        %v4036 = vsel %vm592, %v3981, 0.0
        %v4037 = vsel %vm592, %v3982, 0.0
        %v4038 = vadd.f32 %v4036, %v4037
        %v4039 = vrot.slane %v4038, 4
        %v4040 = vadd.f32 %v4038, %v4039
        %v4041 = vrot.slane %v4040, 2
        %v4042 = vadd.f32 %v4040, %v4041
        %v4043 = vrot.slane %v4042, 1
        %v4044 = vadd.f32 %v4042, %v4043
        %v4045 = vsel %vm592, %v3983, 0.0
        %v4046 = vsel %vm592, %v3984, 0.0
        %v4047 = vadd.f32 %v4045, %v4046
        %v4048 = vrot.slane %v4047, 4
        %v4049 = vadd.f32 %v4047, %v4048
        %v4050 = vrot.slane %v4049, 2
        %v4051 = vadd.f32 %v4049, %v4050
        %v4052 = vrot.slane %v4051, 1
        %v4053 = vadd.f32 %v4051, %v4052
        %v4054 = vsel %vm592, %v3985, 0.0
        %v4055 = vsel %vm592, %v3986, 0.0
        %v4056 = vadd.f32 %v4054, %v4055
        %v4057 = vrot.slane %v4056, 4
        %v4058 = vadd.f32 %v4056, %v4057
        %v4059 = vrot.slane %v4058, 2
        %v4060 = vadd.f32 %v4058, %v4059
        %v4061 = vrot.slane %v4060, 1
        %v4062 = vadd.f32 %v4060, %v4061
        %v4063 = vsel %vm592, %v3987, 0.0
        %v4064 = vsel %vm592, %v3988, 0.0
        %v4065 = vadd.f32 %v4063, %v4064
        %v4066 = vrot.slane %v4065, 4
        %v4067 = vadd.f32 %v4065, %v4066
        %v4068 = vrot.slane %v4067, 2
        %v4069 = vadd.f32 %v4067, %v4068
        %v4070 = vrot.slane %v4069, 1
        %v4071 = vadd.f32 %v4069, %v4070
        %v4072 = vsel %vm592, %v3989, 0.0
        %v4073 = vsel %vm592, %v3990, 0.0
        %v4074 = vadd.f32 %v4072, %v4073
        %v4075 = vrot.slane %v4074, 4
        %v4076 = vadd.f32 %v4074, %v4075
        %v4077 = vrot.slane %v4076, 2
        %v4078 = vadd.f32 %v4076, %v4077
        %v4079 = vrot.slane %v4078, 1
        %v4080 = vadd.f32 %v4078, %v4079
        %v4081 = vsel %vm592, %v3991, 0.0
        %v4082 = vsel %vm592, %v3992, 0.0
        %v4083 = vadd.f32 %v4081, %v4082
        %v4084 = vrot.slane %v4083, 4
        %v4085 = vadd.f32 %v4083, %v4084
        %v4086 = vrot.slane %v4085, 2
        %v4087 = vadd.f32 %v4085, %v4086
        %v4088 = vrot.slane %v4087, 1
        %v4089 = vadd.f32 %v4087, %v4088
        %v4090 = vsel %vm592, %v3993, 0.0
        %v4091 = vsel %vm592, %v3994, 0.0
        %v4092 = vadd.f32 %v4090, %v4091
        %v4093 = vrot.slane %v4092, 4
        %v4094 = vadd.f32 %v4092, %v4093
        %v4095 = vrot.slane %v4094, 2
        %v4096 = vadd.f32 %v4094, %v4095
        %v4097 = vrot.slane %v4096, 1
        %v4098 = vadd.f32 %v4096, %v4097
        %v4099 = vsel %vm592, %v3995, 0.0
        %v4100 = vsel %vm592, %v3996, 0.0
        %v4101 = vadd.f32 %v4099, %v4100
        %v4102 = vrot.slane %v4101, 4
        %v4103 = vadd.f32 %v4101, %v4102
        %v4104 = vrot.slane %v4103, 2
        %v4105 = vadd.f32 %v4103, %v4104
        %v4106 = vrot.slane %v4105, 1
        %v4107 = vadd.f32 %v4105, %v4106
        %v4108 = vsel %vm592, %v3997, 0.0
        %v4109 = vsel %vm592, %v3998, 0.0
        %v4110 = vadd.f32 %v4108, %v4109
        %v4111 = vrot.slane %v4110, 4
        %v4112 = vadd.f32 %v4110, %v4111
        %v4113 = vrot.slane %v4112, 2
        %v4114 = vadd.f32 %v4112, %v4113
        %v4115 = vrot.slane %v4114, 1
        %v4116 = vadd.f32 %v4114, %v4115
        %v4117 = vsel %vm592, %v3999, 0.0
        %v4118 = vsel %vm592, %v4000, 0.0
        %v4119 = vadd.f32 %v4117, %v4118
        %v4120 = vrot.slane %v4119, 4
        %v4121 = vadd.f32 %v4119, %v4120
        %v4122 = vrot.slane %v4121, 2
        %v4123 = vadd.f32 %v4121, %v4122
        %v4124 = vrot.slane %v4123, 1
        %v4125 = vadd.f32 %v4123, %v4124
        %v4126 = vsel %vm592, %v4001, 0.0
        %v4127 = vsel %vm592, %v4002, 0.0
        %v4128 = vadd.f32 %v4126, %v4127
        %v4129 = vrot.slane %v4128, 4
        %v4130 = vadd.f32 %v4128, %v4129
        %v4131 = vrot.slane %v4130, 2
        %v4132 = vadd.f32 %v4130, %v4131
        %v4133 = vrot.slane %v4132, 1
        %v4134 = vadd.f32 %v4132, %v4133
        %v4135 = vsel %vm592, %v4003, 0.0
        %v4136 = vsel %vm592, %v4004, 0.0
        %v4137 = vadd.f32 %v4135, %v4136
        %v4138 = vrot.slane %v4137, 4
        %v4139 = vadd.f32 %v4137, %v4138
        %v4140 = vrot.slane %v4139, 2
        %v4141 = vadd.f32 %v4139, %v4140
        %v4142 = vrot.slane %v4141, 1
        %v4143 = vadd.f32 %v4141, %v4142
        %v4144 = vsel %vm592, %v4005, 0.0
        %v4145 = vsel %vm592, %v4006, 0.0
        %v4146 = vadd.f32 %v4144, %v4145
        %v4147 = vrot.slane %v4146, 4
        %v4148 = vadd.f32 %v4146, %v4147
        %v4149 = vrot.slane %v4148, 2
        %v4150 = vadd.f32 %v4148, %v4149
        %v4151 = vrot.slane %v4150, 1
        %v4152 = vadd.f32 %v4150, %v4151
        %v4153 = vsel %vm592, %v4007, 0.0
        %v4154 = vsel %vm592, %v4008, 0.0
        %v4155 = vadd.f32 %v4153, %v4154
        %v4156 = vrot.slane %v4155, 4
        %v4157 = vadd.f32 %v4155, %v4156
        %v4158 = vrot.slane %v4157, 2
        %v4159 = vadd.f32 %v4157, %v4158
        %v4160 = vrot.slane %v4159, 1
        %v4161 = vadd.f32 %v4159, %v4160
        %v4162 = vsel %vm592, %v4009, 0.0
        %v4163 = vsel %vm592, %v4010, 0.0
        %v4164 = vadd.f32 %v4162, %v4163
        %v4165 = vrot.slane %v4164, 4
        %v4166 = vadd.f32 %v4164, %v4165
        %v4167 = vrot.slane %v4166, 2
        %v4168 = vadd.f32 %v4166, %v4167
        %v4169 = vrot.slane %v4168, 1
        %v4170 = vadd.f32 %v4168, %v4169
        %v4171 = vsel %vm592, %v4011, 0.0
        %v4172 = vsel %vm592, %v4012, 0.0
        %v4173 = vadd.f32 %v4171, %v4172
        %v4174 = vrot.slane %v4173, 4
        %v4175 = vadd.f32 %v4173, %v4174
        %v4176 = vrot.slane %v4175, 2
        %v4177 = vadd.f32 %v4175, %v4176
        %v4178 = vrot.slane %v4177, 1
        %v4179 = vadd.f32 %v4177, %v4178
        %v4180 = vsel %vm592, %v4013, 0.0
        %v4181 = vsel %vm592, %v4014, 0.0
        %v4182 = vadd.f32 %v4180, %v4181
        %v4183 = vrot.slane %v4182, 4
        %v4184 = vadd.f32 %v4182, %v4183
        %v4185 = vrot.slane %v4184, 2
        %v4186 = vadd.f32 %v4184, %v4185
        %v4187 = vrot.slane %v4186, 1
        %v4188 = vadd.f32 %v4186, %v4187
        %v4189 = vsel %vm592, %v4015, 0.0
        %v4190 = vsel %vm592, %v4016, 0.0
        %v4191 = vadd.f32 %v4189, %v4190
        %v4192 = vrot.slane %v4191, 4
        %v4193 = vadd.f32 %v4191, %v4192
        %v4194 = vrot.slane %v4193, 2
        %v4195 = vadd.f32 %v4193, %v4194
        %v4196 = vrot.slane %v4195, 1
        %v4197 = vadd.f32 %v4195, %v4196
        %v4198 = vsel %vm592, %v4017, 0.0
        %v4199 = vsel %vm592, %v4018, 0.0
        %v4200 = vadd.f32 %v4198, %v4199
        %v4201 = vrot.slane %v4200, 4
        %v4202 = vadd.f32 %v4200, %v4201
        %v4203 = vrot.slane %v4202, 2
        %v4204 = vadd.f32 %v4202, %v4203
        %v4205 = vrot.slane %v4204, 1
        %v4206 = vadd.f32 %v4204, %v4205
        %v4207 = vsel %vm592, %v4019, 0.0
        %v4208 = vsel %vm592, %v4020, 0.0
        %v4209 = vadd.f32 %v4207, %v4208
        %v4210 = vrot.slane %v4209, 4
        %v4211 = vadd.f32 %v4209, %v4210
        %v4212 = vrot.slane %v4211, 2
        %v4213 = vadd.f32 %v4211, %v4212
        %v4214 = vrot.slane %v4213, 1
        %v4215 = vadd.f32 %v4213, %v4214
        %v4216 = vsel %vm592, %v4021, 0.0
        %v4217 = vsel %vm592, %v4022, 0.0
        %v4218 = vadd.f32 %v4216, %v4217
        %v4219 = vrot.slane %v4218, 4
        %v4220 = vadd.f32 %v4218, %v4219
        %v4221 = vrot.slane %v4220, 2
        %v4222 = vadd.f32 %v4220, %v4221
        %v4223 = vrot.slane %v4222, 1
        %v4224 = vadd.f32 %v4222, %v4223
        %v4225 = vsel %vm592, %v4023, 0.0
        %v4226 = vsel %vm592, %v4024, 0.0
        %v4227 = vadd.f32 %v4225, %v4226
        %v4228 = vrot.slane %v4227, 4
        %v4229 = vadd.f32 %v4227, %v4228
        %v4230 = vrot.slane %v4229, 2
        %v4231 = vadd.f32 %v4229, %v4230
        %v4232 = vrot.slane %v4231, 1
        %v4233 = vadd.f32 %v4231, %v4232
        %v4234 = vsel %vm592, %v4025, 0.0
        %v4235 = vsel %vm592, %v4026, 0.0
        %v4236 = vadd.f32 %v4234, %v4235
        %v4237 = vrot.slane %v4236, 4
        %v4238 = vadd.f32 %v4236, %v4237
        %v4239 = vrot.slane %v4238, 2
        %v4240 = vadd.f32 %v4238, %v4239
        %v4241 = vrot.slane %v4240, 1
        %v4242 = vadd.f32 %v4240, %v4241
        %vm4267 = vcmask 1041409
        %v4268 = vsel %vm4267, %v3540, %v3531
        %vm4269 = vcmask 1042434
        %v4270 = vsel %vm4269, %v3549, %v4268
        %vm4271 = vcmask 1043459
        %v4272 = vsel %vm4271, %v3558, %v4270
        %vm4273 = vcmask 1044484
        %v4274 = vsel %vm4273, %v3567, %v4272
        %vm4275 = vcmask 1045509
        %v4276 = vsel %vm4275, %v3576, %v4274
        %vm4277 = vcmask 1046534
        %v4278 = vsel %vm4277, %v3585, %v4276
        %vm4279 = vcmask 1047559
        %v4280 = vsel %vm4279, %v3594, %v4278
        %v4281 = vsel %vm4267, %v3612, %v3603
        %v4282 = vsel %vm4269, %v3621, %v4281
        %v4283 = vsel %vm4271, %v3630, %v4282
        %v4284 = vsel %vm4273, %v3639, %v4283
        %v4285 = vsel %vm4275, %v3648, %v4284
        %v4286 = vsel %vm4277, %v3657, %v4285
        %v4287 = vsel %vm4279, %v3666, %v4286
        %v4288 = vsel %vm4267, %v3684, %v3675
        %v4289 = vsel %vm4269, %v3693, %v4288
        %v4290 = vsel %vm4271, %v3702, %v4289
        %v4291 = vsel %vm4273, %v3711, %v4290
        %v4292 = vsel %vm4275, %v3720, %v4291
        %v4293 = vsel %vm4277, %v3729, %v4292
        %v4294 = vsel %vm4279, %v3738, %v4293
        %v4319 = vsel %vm4267, %v4044, %v4035
        %v4320 = vsel %vm4269, %v4053, %v4319
        %v4321 = vsel %vm4271, %v4062, %v4320
        %v4322 = vsel %vm4273, %v4071, %v4321
        %v4323 = vsel %vm4275, %v4080, %v4322
        %v4324 = vsel %vm4277, %v4089, %v4323
        %v4325 = vsel %vm4279, %v4098, %v4324
        %v4326 = vsel %vm4267, %v4116, %v4107
        %v4327 = vsel %vm4269, %v4125, %v4326
        %v4328 = vsel %vm4271, %v4134, %v4327
        %v4329 = vsel %vm4273, %v4143, %v4328
        %v4330 = vsel %vm4275, %v4152, %v4329
        %v4331 = vsel %vm4277, %v4161, %v4330
        %v4332 = vsel %vm4279, %v4170, %v4331
        %v4333 = vsel %vm4267, %v4188, %v4179
        %v4334 = vsel %vm4269, %v4197, %v4333
        %v4335 = vsel %vm4271, %v4206, %v4334
        %v4336 = vsel %vm4273, %v4215, %v4335
        %v4337 = vsel %vm4275, %v4224, %v4336
        %v4338 = vsel %vm4277, %v4233, %v4337
        %v4339 = vsel %vm4279, %v4242, %v4338
        %v4340 = vsel %vm2178, %v3187, 0.0
        %v4341 = vsel %vm2178, %v3188, 0.0
        %v4342 = vadd.f32 %v4340, %v4341
        %v4343 = vrot.slane %v4342, 4
        %v4344 = vadd.f32 %v4342, %v4343
        %v4345 = vrot.slane %v4344, 2
        %v4346 = vadd.f32 %v4344, %v4345
        %v4347 = vrot.slane %v4346, 1
        %v4348 = vadd.f32 %v4346, %v4347
        %v4349 = vsel %vm2178, %v3189, 0.0
        %v4350 = vsel %vm2178, %v3190, 0.0
        %v4351 = vadd.f32 %v4349, %v4350
        %v4352 = vrot.slane %v4351, 4
        %v4353 = vadd.f32 %v4351, %v4352
        %v4354 = vrot.slane %v4353, 2
        %v4355 = vadd.f32 %v4353, %v4354
        %v4356 = vrot.slane %v4355, 1
        %v4357 = vadd.f32 %v4355, %v4356
        %v4358 = vsel %vm2178, %v3191, 0.0
        %v4359 = vsel %vm2178, %v3192, 0.0
        %v4360 = vadd.f32 %v4358, %v4359
        %v4361 = vrot.slane %v4360, 4
        %v4362 = vadd.f32 %v4360, %v4361
        %v4363 = vrot.slane %v4362, 2
        %v4364 = vadd.f32 %v4362, %v4363
        %v4365 = vrot.slane %v4364, 1
        %v4366 = vadd.f32 %v4364, %v4365
        %v4367 = vsel %vm2178, %v3193, 0.0
        %v4368 = vsel %vm2178, %v3194, 0.0
        %v4369 = vadd.f32 %v4367, %v4368
        %v4370 = vrot.slane %v4369, 4
        %v4371 = vadd.f32 %v4369, %v4370
        %v4372 = vrot.slane %v4371, 2
        %v4373 = vadd.f32 %v4371, %v4372
        %v4374 = vrot.slane %v4373, 1
        %v4375 = vadd.f32 %v4373, %v4374
        %v4376 = vsel %vm2178, %v3195, 0.0
        %v4377 = vsel %vm2178, %v3196, 0.0
        %v4378 = vadd.f32 %v4376, %v4377
        %v4379 = vrot.slane %v4378, 4
        %v4380 = vadd.f32 %v4378, %v4379
        %v4381 = vrot.slane %v4380, 2
        %v4382 = vadd.f32 %v4380, %v4381
        %v4383 = vrot.slane %v4382, 1
        %v4384 = vadd.f32 %v4382, %v4383
        %v4385 = vsel %vm2178, %v3197, 0.0
        %v4386 = vsel %vm2178, %v3198, 0.0
        %v4387 = vadd.f32 %v4385, %v4386
        %v4388 = vrot.slane %v4387, 4
        %v4389 = vadd.f32 %v4387, %v4388
        %v4390 = vrot.slane %v4389, 2
        %v4391 = vadd.f32 %v4389, %v4390
        %v4392 = vrot.slane %v4391, 1
        %v4393 = vadd.f32 %v4391, %v4392
        %v4394 = vsel %vm2178, %v3199, 0.0
        %v4395 = vsel %vm2178, %v3200, 0.0
        %v4396 = vadd.f32 %v4394, %v4395
        %v4397 = vrot.slane %v4396, 4
        %v4398 = vadd.f32 %v4396, %v4397
        %v4399 = vrot.slane %v4398, 2
        %v4400 = vadd.f32 %v4398, %v4399
        %v4401 = vrot.slane %v4400, 1
        %v4402 = vadd.f32 %v4400, %v4401
        %v4403 = vsel %vm2178, %v3201, 0.0
        %v4404 = vsel %vm2178, %v3202, 0.0
        %v4405 = vadd.f32 %v4403, %v4404
        %v4406 = vrot.slane %v4405, 4
        %v4407 = vadd.f32 %v4405, %v4406
        %v4408 = vrot.slane %v4407, 2
        %v4409 = vadd.f32 %v4407, %v4408
        %v4410 = vrot.slane %v4409, 1
        %v4411 = vadd.f32 %v4409, %v4410
        %v4412 = vsel %vm2178, %v3203, 0.0
        %v4413 = vsel %vm2178, %v3204, 0.0
        %v4414 = vadd.f32 %v4412, %v4413
        %v4415 = vrot.slane %v4414, 4
        %v4416 = vadd.f32 %v4414, %v4415
        %v4417 = vrot.slane %v4416, 2
        %v4418 = vadd.f32 %v4416, %v4417
        %v4419 = vrot.slane %v4418, 1
        %v4420 = vadd.f32 %v4418, %v4419
        %v4421 = vsel %vm2178, %v3205, 0.0
        %v4422 = vsel %vm2178, %v3206, 0.0
        %v4423 = vadd.f32 %v4421, %v4422
        %v4424 = vrot.slane %v4423, 4
        %v4425 = vadd.f32 %v4423, %v4424
        %v4426 = vrot.slane %v4425, 2
        %v4427 = vadd.f32 %v4425, %v4426
        %v4428 = vrot.slane %v4427, 1
        %v4429 = vadd.f32 %v4427, %v4428
        %v4430 = vsel %vm2178, %v3207, 0.0
        %v4431 = vsel %vm2178, %v3208, 0.0
        %v4432 = vadd.f32 %v4430, %v4431
        %v4433 = vrot.slane %v4432, 4
        %v4434 = vadd.f32 %v4432, %v4433
        %v4435 = vrot.slane %v4434, 2
        %v4436 = vadd.f32 %v4434, %v4435
        %v4437 = vrot.slane %v4436, 1
        %v4438 = vadd.f32 %v4436, %v4437
        %v4439 = vsel %vm2178, %v3209, 0.0
        %v4440 = vsel %vm2178, %v3210, 0.0
        %v4441 = vadd.f32 %v4439, %v4440
        %v4442 = vrot.slane %v4441, 4
        %v4443 = vadd.f32 %v4441, %v4442
        %v4444 = vrot.slane %v4443, 2
        %v4445 = vadd.f32 %v4443, %v4444
        %v4446 = vrot.slane %v4445, 1
        %v4447 = vadd.f32 %v4445, %v4446
        %v4448 = vsel %vm2178, %v3211, 0.0
        %v4449 = vsel %vm2178, %v3212, 0.0
        %v4450 = vadd.f32 %v4448, %v4449
        %v4451 = vrot.slane %v4450, 4
        %v4452 = vadd.f32 %v4450, %v4451
        %v4453 = vrot.slane %v4452, 2
        %v4454 = vadd.f32 %v4452, %v4453
        %v4455 = vrot.slane %v4454, 1
        %v4456 = vadd.f32 %v4454, %v4455
        %v4457 = vsel %vm2178, %v3213, 0.0
        %v4458 = vsel %vm2178, %v3214, 0.0
        %v4459 = vadd.f32 %v4457, %v4458
        %v4460 = vrot.slane %v4459, 4
        %v4461 = vadd.f32 %v4459, %v4460
        %v4462 = vrot.slane %v4461, 2
        %v4463 = vadd.f32 %v4461, %v4462
        %v4464 = vrot.slane %v4463, 1
        %v4465 = vadd.f32 %v4463, %v4464
        %v4466 = vsel %vm2178, %v3215, 0.0
        %v4467 = vsel %vm2178, %v3216, 0.0
        %v4468 = vadd.f32 %v4466, %v4467
        %v4469 = vrot.slane %v4468, 4
        %v4470 = vadd.f32 %v4468, %v4469
        %v4471 = vrot.slane %v4470, 2
        %v4472 = vadd.f32 %v4470, %v4471
        %v4473 = vrot.slane %v4472, 1
        %v4474 = vadd.f32 %v4472, %v4473
        %v4475 = vsel %vm2178, %v3217, 0.0
        %v4476 = vsel %vm2178, %v3218, 0.0
        %v4477 = vadd.f32 %v4475, %v4476
        %v4478 = vrot.slane %v4477, 4
        %v4479 = vadd.f32 %v4477, %v4478
        %v4480 = vrot.slane %v4479, 2
        %v4481 = vadd.f32 %v4479, %v4480
        %v4482 = vrot.slane %v4481, 1
        %v4483 = vadd.f32 %v4481, %v4482
        %v4484 = vsel %vm2178, %v3219, 0.0
        %v4485 = vsel %vm2178, %v3220, 0.0
        %v4486 = vadd.f32 %v4484, %v4485
        %v4487 = vrot.slane %v4486, 4
        %v4488 = vadd.f32 %v4486, %v4487
        %v4489 = vrot.slane %v4488, 2
        %v4490 = vadd.f32 %v4488, %v4489
        %v4491 = vrot.slane %v4490, 1
        %v4492 = vadd.f32 %v4490, %v4491
        %v4493 = vsel %vm2178, %v3221, 0.0
        %v4494 = vsel %vm2178, %v3222, 0.0
        %v4495 = vadd.f32 %v4493, %v4494
        %v4496 = vrot.slane %v4495, 4
        %v4497 = vadd.f32 %v4495, %v4496
        %v4498 = vrot.slane %v4497, 2
        %v4499 = vadd.f32 %v4497, %v4498
        %v4500 = vrot.slane %v4499, 1
        %v4501 = vadd.f32 %v4499, %v4500
        %v4502 = vsel %vm2178, %v3223, 0.0
        %v4503 = vsel %vm2178, %v3224, 0.0
        %v4504 = vadd.f32 %v4502, %v4503
        %v4505 = vrot.slane %v4504, 4
        %v4506 = vadd.f32 %v4504, %v4505
        %v4507 = vrot.slane %v4506, 2
        %v4508 = vadd.f32 %v4506, %v4507
        %v4509 = vrot.slane %v4508, 1
        %v4510 = vadd.f32 %v4508, %v4509
        %v4511 = vsel %vm2178, %v3225, 0.0
        %v4512 = vsel %vm2178, %v3226, 0.0
        %v4513 = vadd.f32 %v4511, %v4512
        %v4514 = vrot.slane %v4513, 4
        %v4515 = vadd.f32 %v4513, %v4514
        %v4516 = vrot.slane %v4515, 2
        %v4517 = vadd.f32 %v4515, %v4516
        %v4518 = vrot.slane %v4517, 1
        %v4519 = vadd.f32 %v4517, %v4518
        %v4520 = vsel %vm2178, %v3227, 0.0
        %v4521 = vsel %vm2178, %v3228, 0.0
        %v4522 = vadd.f32 %v4520, %v4521
        %v4523 = vrot.slane %v4522, 4
        %v4524 = vadd.f32 %v4522, %v4523
        %v4525 = vrot.slane %v4524, 2
        %v4526 = vadd.f32 %v4524, %v4525
        %v4527 = vrot.slane %v4526, 1
        %v4528 = vadd.f32 %v4526, %v4527
        %v4529 = vsel %vm2178, %v3229, 0.0
        %v4530 = vsel %vm2178, %v3230, 0.0
        %v4531 = vadd.f32 %v4529, %v4530
        %v4532 = vrot.slane %v4531, 4
        %v4533 = vadd.f32 %v4531, %v4532
        %v4534 = vrot.slane %v4533, 2
        %v4535 = vadd.f32 %v4533, %v4534
        %v4536 = vrot.slane %v4535, 1
        %v4537 = vadd.f32 %v4535, %v4536
        %v4538 = vsel %vm2178, %v3231, 0.0
        %v4539 = vsel %vm2178, %v3232, 0.0
        %v4540 = vadd.f32 %v4538, %v4539
        %v4541 = vrot.slane %v4540, 4
        %v4542 = vadd.f32 %v4540, %v4541
        %v4543 = vrot.slane %v4542, 2
        %v4544 = vadd.f32 %v4542, %v4543
        %v4545 = vrot.slane %v4544, 1
        %v4546 = vadd.f32 %v4544, %v4545
        %v4547 = vsel %vm2178, %v3233, 0.0
        %v4548 = vsel %vm2178, %v3234, 0.0
        %v4549 = vadd.f32 %v4547, %v4548
        %v4550 = vrot.slane %v4549, 4
        %v4551 = vadd.f32 %v4549, %v4550
        %v4552 = vrot.slane %v4551, 2
        %v4553 = vadd.f32 %v4551, %v4552
        %v4554 = vrot.slane %v4553, 1
        %v4555 = vadd.f32 %v4553, %v4554
        %vm4556 = vcmask 146568
        %v4557 = vsel %vm4556, %v408, 0.0
        %v4558 = vsel %vm4556, %v409, 0.0
        %v4559 = vadd.f32 %v4557, %v4558
        %v4560 = vrot.slane %v4559, 4
        %v4561 = vadd.f32 %v4559, %v4560
        %v4562 = vrot.slane %v4561, 2
        %v4563 = vadd.f32 %v4561, %v4562
        %v4564 = vrot.slane %v4563, 1
        %v4565 = vadd.f32 %v4563, %v4564
        %v4566 = vsel %vm4556, %v410, 0.0
        %v4567 = vsel %vm4556, %v411, 0.0
        %v4568 = vadd.f32 %v4566, %v4567
        %v4569 = vrot.slane %v4568, 4
        %v4570 = vadd.f32 %v4568, %v4569
        %v4571 = vrot.slane %v4570, 2
        %v4572 = vadd.f32 %v4570, %v4571
        %v4573 = vrot.slane %v4572, 1
        %v4574 = vadd.f32 %v4572, %v4573
        %v4575 = vsel %vm4556, %v412, 0.0
        %v4576 = vsel %vm4556, %v413, 0.0
        %v4577 = vadd.f32 %v4575, %v4576
        %v4578 = vrot.slane %v4577, 4
        %v4579 = vadd.f32 %v4577, %v4578
        %v4580 = vrot.slane %v4579, 2
        %v4581 = vadd.f32 %v4579, %v4580
        %v4582 = vrot.slane %v4581, 1
        %v4583 = vadd.f32 %v4581, %v4582
        %v4584 = vsel %vm4556, %v414, 0.0
        %v4585 = vsel %vm4556, %v415, 0.0
        %v4586 = vadd.f32 %v4584, %v4585
        %v4587 = vrot.slane %v4586, 4
        %v4588 = vadd.f32 %v4586, %v4587
        %v4589 = vrot.slane %v4588, 2
        %v4590 = vadd.f32 %v4588, %v4589
        %v4591 = vrot.slane %v4590, 1
        %v4592 = vadd.f32 %v4590, %v4591
        %v4593 = vsel %vm4556, %v416, 0.0
        %v4594 = vsel %vm4556, %v417, 0.0
        %v4595 = vadd.f32 %v4593, %v4594
        %v4596 = vrot.slane %v4595, 4
        %v4597 = vadd.f32 %v4595, %v4596
        %v4598 = vrot.slane %v4597, 2
        %v4599 = vadd.f32 %v4597, %v4598
        %v4600 = vrot.slane %v4599, 1
        %v4601 = vadd.f32 %v4599, %v4600
        %v4602 = vsel %vm4556, %v418, 0.0
        %v4603 = vsel %vm4556, %v419, 0.0
        %v4604 = vadd.f32 %v4602, %v4603
        %v4605 = vrot.slane %v4604, 4
        %v4606 = vadd.f32 %v4604, %v4605
        %v4607 = vrot.slane %v4606, 2
        %v4608 = vadd.f32 %v4606, %v4607
        %v4609 = vrot.slane %v4608, 1
        %v4610 = vadd.f32 %v4608, %v4609
        %v4611 = vsel %vm4556, %v420, 0.0
        %v4612 = vsel %vm4556, %v421, 0.0
        %v4613 = vadd.f32 %v4611, %v4612
        %v4614 = vrot.slane %v4613, 4
        %v4615 = vadd.f32 %v4613, %v4614
        %v4616 = vrot.slane %v4615, 2
        %v4617 = vadd.f32 %v4615, %v4616
        %v4618 = vrot.slane %v4617, 1
        %v4619 = vadd.f32 %v4617, %v4618
        %v4620 = vsel %vm4556, %v422, 0.0
        %v4621 = vsel %vm4556, %v423, 0.0
        %v4622 = vadd.f32 %v4620, %v4621
        %v4623 = vrot.slane %v4622, 4
        %v4624 = vadd.f32 %v4622, %v4623
        %v4625 = vrot.slane %v4624, 2
        %v4626 = vadd.f32 %v4624, %v4625
        %v4627 = vrot.slane %v4626, 1
        %v4628 = vadd.f32 %v4626, %v4627
        %v4629 = vsel %vm4556, %v424, 0.0
        %v4630 = vsel %vm4556, %v425, 0.0
        %v4631 = vadd.f32 %v4629, %v4630
        %v4632 = vrot.slane %v4631, 4
        %v4633 = vadd.f32 %v4631, %v4632
        %v4634 = vrot.slane %v4633, 2
        %v4635 = vadd.f32 %v4633, %v4634
        %v4636 = vrot.slane %v4635, 1
        %v4637 = vadd.f32 %v4635, %v4636
        %v4638 = vsel %vm4556, %v426, 0.0
        %v4639 = vsel %vm4556, %v427, 0.0
        %v4640 = vadd.f32 %v4638, %v4639
        %v4641 = vrot.slane %v4640, 4
        %v4642 = vadd.f32 %v4640, %v4641
        %v4643 = vrot.slane %v4642, 2
        %v4644 = vadd.f32 %v4642, %v4643
        %v4645 = vrot.slane %v4644, 1
        %v4646 = vadd.f32 %v4644, %v4645
        %v4647 = vsel %vm4556, %v428, 0.0
        %v4648 = vsel %vm4556, %v429, 0.0
        %v4649 = vadd.f32 %v4647, %v4648
        %v4650 = vrot.slane %v4649, 4
        %v4651 = vadd.f32 %v4649, %v4650
        %v4652 = vrot.slane %v4651, 2
        %v4653 = vadd.f32 %v4651, %v4652
        %v4654 = vrot.slane %v4653, 1
        %v4655 = vadd.f32 %v4653, %v4654
        %v4656 = vsel %vm4556, %v430, 0.0
        %v4657 = vsel %vm4556, %v431, 0.0
        %v4658 = vadd.f32 %v4656, %v4657
        %v4659 = vrot.slane %v4658, 4
        %v4660 = vadd.f32 %v4658, %v4659
        %v4661 = vrot.slane %v4660, 2
        %v4662 = vadd.f32 %v4660, %v4661
        %v4663 = vrot.slane %v4662, 1
        %v4664 = vadd.f32 %v4662, %v4663
        %v4665 = vsel %vm4556, %v432, 0.0
        %v4666 = vsel %vm4556, %v433, 0.0
        %v4667 = vadd.f32 %v4665, %v4666
        %v4668 = vrot.slane %v4667, 4
        %v4669 = vadd.f32 %v4667, %v4668
        %v4670 = vrot.slane %v4669, 2
        %v4671 = vadd.f32 %v4669, %v4670
        %v4672 = vrot.slane %v4671, 1
        %v4673 = vadd.f32 %v4671, %v4672
        %v4674 = vsel %vm4556, %v434, 0.0
        %v4675 = vsel %vm4556, %v435, 0.0
        %v4676 = vadd.f32 %v4674, %v4675
        %v4677 = vrot.slane %v4676, 4
        %v4678 = vadd.f32 %v4676, %v4677
        %v4679 = vrot.slane %v4678, 2
        %v4680 = vadd.f32 %v4678, %v4679
        %v4681 = vrot.slane %v4680, 1
        %v4682 = vadd.f32 %v4680, %v4681
        %v4683 = vsel %vm4556, %v436, 0.0
        %v4684 = vsel %vm4556, %v437, 0.0
        %v4685 = vadd.f32 %v4683, %v4684
        %v4686 = vrot.slane %v4685, 4
        %v4687 = vadd.f32 %v4685, %v4686
        %v4688 = vrot.slane %v4687, 2
        %v4689 = vadd.f32 %v4687, %v4688
        %v4690 = vrot.slane %v4689, 1
        %v4691 = vadd.f32 %v4689, %v4690
        %v4692 = vsel %vm4556, %v438, 0.0
        %v4693 = vsel %vm4556, %v439, 0.0
        %v4694 = vadd.f32 %v4692, %v4693
        %v4695 = vrot.slane %v4694, 4
        %v4696 = vadd.f32 %v4694, %v4695
        %v4697 = vrot.slane %v4696, 2
        %v4698 = vadd.f32 %v4696, %v4697
        %v4699 = vrot.slane %v4698, 1
        %v4700 = vadd.f32 %v4698, %v4699
        %v4701 = vsel %vm4556, %v440, 0.0
        %v4702 = vsel %vm4556, %v441, 0.0
        %v4703 = vadd.f32 %v4701, %v4702
        %v4704 = vrot.slane %v4703, 4
        %v4705 = vadd.f32 %v4703, %v4704
        %v4706 = vrot.slane %v4705, 2
        %v4707 = vadd.f32 %v4705, %v4706
        %v4708 = vrot.slane %v4707, 1
        %v4709 = vadd.f32 %v4707, %v4708
        %v4710 = vsel %vm4556, %v442, 0.0
        %v4711 = vsel %vm4556, %v443, 0.0
        %v4712 = vadd.f32 %v4710, %v4711
        %v4713 = vrot.slane %v4712, 4
        %v4714 = vadd.f32 %v4712, %v4713
        %v4715 = vrot.slane %v4714, 2
        %v4716 = vadd.f32 %v4714, %v4715
        %v4717 = vrot.slane %v4716, 1
        %v4718 = vadd.f32 %v4716, %v4717
        %v4719 = vsel %vm4556, %v444, 0.0
        %v4720 = vsel %vm4556, %v445, 0.0
        %v4721 = vadd.f32 %v4719, %v4720
        %v4722 = vrot.slane %v4721, 4
        %v4723 = vadd.f32 %v4721, %v4722
        %v4724 = vrot.slane %v4723, 2
        %v4725 = vadd.f32 %v4723, %v4724
        %v4726 = vrot.slane %v4725, 1
        %v4727 = vadd.f32 %v4725, %v4726
        %v4728 = vsel %vm4556, %v446, 0.0
        %v4729 = vsel %vm4556, %v447, 0.0
        %v4730 = vadd.f32 %v4728, %v4729
        %v4731 = vrot.slane %v4730, 4
        %v4732 = vadd.f32 %v4730, %v4731
        %v4733 = vrot.slane %v4732, 2
        %v4734 = vadd.f32 %v4732, %v4733
        %v4735 = vrot.slane %v4734, 1
        %v4736 = vadd.f32 %v4734, %v4735
        %v4737 = vsel %vm4556, %v448, 0.0
        %v4738 = vsel %vm4556, %v449, 0.0
        %v4739 = vadd.f32 %v4737, %v4738
        %v4740 = vrot.slane %v4739, 4
        %v4741 = vadd.f32 %v4739, %v4740
        %v4742 = vrot.slane %v4741, 2
        %v4743 = vadd.f32 %v4741, %v4742
        %v4744 = vrot.slane %v4743, 1
        %v4745 = vadd.f32 %v4743, %v4744
        %v4746 = vsel %vm4556, %v450, 0.0
        %v4747 = vsel %vm4556, %v451, 0.0
        %v4748 = vadd.f32 %v4746, %v4747
        %v4749 = vrot.slane %v4748, 4
        %v4750 = vadd.f32 %v4748, %v4749
        %v4751 = vrot.slane %v4750, 2
        %v4752 = vadd.f32 %v4750, %v4751
        %v4753 = vrot.slane %v4752, 1
        %v4754 = vadd.f32 %v4752, %v4753
        %v4755 = vsel %vm4556, %v452, 0.0
        %v4756 = vsel %vm4556, %v453, 0.0
        %v4757 = vadd.f32 %v4755, %v4756
        %v4758 = vrot.slane %v4757, 4
        %v4759 = vadd.f32 %v4757, %v4758
        %v4760 = vrot.slane %v4759, 2
        %v4761 = vadd.f32 %v4759, %v4760
        %v4762 = vrot.slane %v4761, 1
        %v4763 = vadd.f32 %v4761, %v4762
        %v4764 = vsel %vm4556, %v454, 0.0
        %v4765 = vsel %vm4556, %v455, 0.0
        %v4766 = vadd.f32 %v4764, %v4765
        %v4767 = vrot.slane %v4766, 4
        %v4768 = vadd.f32 %v4766, %v4767
        %v4769 = vrot.slane %v4768, 2
        %v4770 = vadd.f32 %v4768, %v4769
        %v4771 = vrot.slane %v4770, 1
        %v4772 = vadd.f32 %v4770, %v4771
        %v4797 = vsel %vm4267, %v4357, %v4348
        %v4798 = vsel %vm4269, %v4366, %v4797
        %v4799 = vsel %vm4271, %v4375, %v4798
        %v4800 = vsel %vm4273, %v4384, %v4799
        %v4801 = vsel %vm4275, %v4393, %v4800
        %v4802 = vsel %vm4277, %v4402, %v4801
        %v4803 = vsel %vm4279, %v4411, %v4802
        %v4804 = vsel %vm4267, %v4429, %v4420
        %v4805 = vsel %vm4269, %v4438, %v4804
        %v4806 = vsel %vm4271, %v4447, %v4805
        %v4807 = vsel %vm4273, %v4456, %v4806
        %v4808 = vsel %vm4275, %v4465, %v4807
        %v4809 = vsel %vm4277, %v4474, %v4808
        %v4810 = vsel %vm4279, %v4483, %v4809
        %v4811 = vsel %vm4267, %v4501, %v4492
        %v4812 = vsel %vm4269, %v4510, %v4811
        %v4813 = vsel %vm4271, %v4519, %v4812
        %v4814 = vsel %vm4273, %v4528, %v4813
        %v4815 = vsel %vm4275, %v4537, %v4814
        %v4816 = vsel %vm4277, %v4546, %v4815
        %v4817 = vsel %vm4279, %v4555, %v4816
        %v4842 = vsel %vm4267, %v4574, %v4565
        %v4843 = vsel %vm4269, %v4583, %v4842
        %v4844 = vsel %vm4271, %v4592, %v4843
        %v4845 = vsel %vm4273, %v4601, %v4844
        %v4846 = vsel %vm4275, %v4610, %v4845
        %v4847 = vsel %vm4277, %v4619, %v4846
        %v4848 = vsel %vm4279, %v4628, %v4847
        %v4849 = vsel %vm4267, %v4646, %v4637
        %v4850 = vsel %vm4269, %v4655, %v4849
        %v4851 = vsel %vm4271, %v4664, %v4850
        %v4852 = vsel %vm4273, %v4673, %v4851
        %v4853 = vsel %vm4275, %v4682, %v4852
        %v4854 = vsel %vm4277, %v4691, %v4853
        %v4855 = vsel %vm4279, %v4700, %v4854
        %v4856 = vsel %vm4267, %v4718, %v4709
        %v4857 = vsel %vm4269, %v4727, %v4856
        %v4858 = vsel %vm4271, %v4736, %v4857
        %v4859 = vsel %vm4273, %v4745, %v4858
        %v4860 = vsel %vm4275, %v4754, %v4859
        %v4861 = vsel %vm4277, %v4763, %v4860
        %v4862 = vsel %vm4279, %v4772, %v4861
        %4863 = vrot.lane.b32.xlu0 %v4848, 127
        %v4864 = vpop.permute.xlu0 %4863
        %4865 = vrot.lane.b32.xlu0 %v4855, 127
        %v4866 = vpop.permute.xlu0 %4865
        %4867 = vrot.lane.b32.xlu0 %v4862, 127
        %v4868 = vpop.permute.xlu0 %4867
        %v4869 = vld [vmem:[%s7] sm:$0xff]
        %v4870 = vld [vmem:[%s7 + $0x8] sm:$0xff]
        %v4871 = vld [vmem:[%s7 + $0x10] sm:$0x3]
        %v4872 = vld [vmem:[%s8] sm:$0x1]
        %4873 = vset.pattern.permute.xlu0 16
        %4874 = vperm.xlu0 %4873, %v4803
        %v4875 = vpop.permute.xlu0 %4874
        %4877 = vset.pattern.permute.xlu0 16
        %4878 = vperm.xlu0 %4877, %v4810
        %v4879 = vpop.permute.xlu0 %4878
        %4881 = vset.pattern.permute.xlu0 16
        %4882 = vperm.xlu0 %4881, %v4817
        %v4883 = vpop.permute.xlu0 %4882
        %4885 = vset.pattern.permute.xlu0 16
        %4886 = vperm.xlu0 %4885, %v4864
        %v4887 = vpop.permute.xlu0 %4886
        %4889 = vset.pattern.permute.xlu0 16
        %4890 = vperm.xlu0 %4889, %v4866
        %v4891 = vpop.permute.xlu0 %4890
        %4893 = vset.pattern.permute.xlu0 16
        %4894 = vperm.xlu0 %4893, %v4868
        %v4895 = vpop.permute.xlu0 %4894
        %v4898 = vperm.slane %v4872, 0
        %v4900 = vmul.f32 %v4875, %v4898
        %v4901 = vmul.f32 %v4879, %v4898
        %v4902 = vmul.f32 %v4883, %v4898
        %v4903 = vmul.f32 %v4887, %v4898
        %v4904 = vmul.f32 %v4891, %v4898
        %v4905 = vmul.f32 %v4895, %v4898
        %v4906 = vsel %vm592, %v4280, 0
        %v4908 = vsel %vm592, %v4287, 0
        %v4910 = vsel %vm592, %v4294, 0
        %v4912 = vsel %vm592, %v4325, 0
        %v4914 = vsel %vm592, %v4332, 0
        %v4916 = vsel %vm592, %v4339, 0
        %vm4918 = vcmask 1041408
        %v4920 = vsel %vm4918, %v4871, 0
        %4922 = vmatpush.msra.mxu0 0.0
        %4923 = vmatpush.msra.mxu0 0.0
        %4924 = vmatpush.msra.mxu0 0.0
        %4925 = vmatpush.msra.mxu0 0.0
        %4926 = vmatpush.msra.mxu0 0.0
        %4927 = vmatpush.msra.mxu0 0.0
        %4928 = vmatpush.msra.mxu0 0.0
        %4929 = vmatpush.msra.mxu0 0.0
        %4930 = vmatpush.msra.mxu0 0.0
        %4931 = vmatpush.msra.mxu0 0.0
        %4932 = vmatpush.msra.mxu0 0.0
        %4933 = vmatpush.msra.mxu0 0.0
        %4934 = vmatpush.msra.mxu0 0.0
        %4935 = vmatpush.msra.mxu0 %v4920
        %4936 = vmatpush.msra.mxu0 %v4870
        %4937 = vmatpush.msra.mxu0 %v4869
        %4938 = vmatmul.f32.gmra.mxu0 %v4906
        %v4939 = vpop.f32.mrf.mxu0
        %v4940 = vadd.f32 %v4900, %v4939
        %4941 = vmatmul.f32.gmra.mxu0 %v4908
        %v4942 = vpop.f32.mrf.mxu0
        %v4943 = vadd.f32 %v4901, %v4942
        %4944 = vmatmul.f32.gmra.mxu0 %v4910
        %v4945 = vpop.f32.mrf.mxu0
        %v4946 = vadd.f32 %v4902, %v4945
        %4947 = vmatmul.f32.gmra.mxu0 %v4912
        %v4948 = vpop.f32.mrf.mxu0
        %v4949 = vadd.f32 %v4903, %v4948
        %4950 = vmatmul.f32.gmra.mxu0 %v4914
        %v4951 = vpop.f32.mrf.mxu0
        %v4952 = vadd.f32 %v4904, %v4951
        %4953 = vmatmul.f32.gmra.mxu0 %v4916
        %v4954 = vpop.f32.mrf.mxu0
        %v4955 = vadd.f32 %v4905, %v4954
        %4956 = vdwg.mxu0
        %4957 = vst [vmem:[%s344] sm:$0xff] %v4940
        %4958 = vst [vmem:[%s344 + $0x8] sm:$0xff] %v4943
        %4959 = vst [vmem:[%s344 + $0x10] sm:$0xff] %v4946
        %4960 = vst [vmem:[%s344 + $0x18] sm:$0xff] %v4949
        %4961 = vst [vmem:[%s344 + $0x20] sm:$0xff] %v4952
        %4962 = vst [vmem:[%s344 + $0x28] sm:$0xff] %v4955
        %s4963 = sand.u32 %s230, 1
        %s4964 = scalar_lea.sflag [#allocation3], %s4963
        %s4965 = sand.u32 %s230, 1
        %s4966 = smul.addr %s4965, 48
        %s4967 = scalar_lea.vmem [#allocation2], %s4966
        // Predicated region
        $region57: #{tpu_custom_call.1} parent=55 // pred_check
          %p4968 = pneg %p240
        $region58: #{tpu_custom_call.1} parent=55 // pred_check_branch
          %4970 = sbr.rel (%p4968) target = $region60
        $region59: #{tpu_custom_call.1} parent=55 // pred_region
          %s4971 = smul.u32 6, %s23
          %4973 = vsyncadd %s4964, 0
          %s4974 = smul.addr %s4971, 8
          %s4975 = scalar_lea.hbm %s9, %s4974
          %s4976 = sshll.u32 %s4967, 4
          %s4977 = int_to_ptr.vmem [resolvable:$true] %s4976
          %s4978 = sshll.u32 %s4975, 4
          %s4979 = int_to_ptr.hbm [resolvable:$true] %s4978
          %4984 = dma.vmem_to_hbm [thread:$0]  %s4977, 768, %s4979, %s4964, 128, 128, 8
        $region60: #{tpu_custom_call.1} parent=55 // pred_fallthru
          _
      $region56: #{tpu_custom_call.1} parent=5 // pred_fallthru
        _
      %p4985 = scmp.le.s32.totalorder 2, %s18
      // Predicated region
      $region61: #{tpu_custom_call.1} parent=5 // pred_check
        %p4986 = pneg %p4985
      $region62: #{tpu_custom_call.1} parent=5 // pred_check_branch
        %4988 = sbr.rel (%p4986) target = $region64
      $region63: #{tpu_custom_call.1} parent=5 // pred_region
        %s4989 = ssub.s32 %s18, 2
        // Predicated region
        $region65: #{tpu_custom_call.1} parent=63 // pred_check
          %p4990 = pneg %p246
        $region66: #{tpu_custom_call.1} parent=63 // pred_check_branch
          %4992 = sbr.rel (%p4990) target = $region68
        $region67: #{tpu_custom_call.1} parent=63 // pred_region
          %s4993 = sand.u32 %s231, 1
          %s4994 = scalar_lea.sflag [#allocation3], %s4993
          %s4995 = sand.u32 %s231, 1
          %s4996 = smul.addr %s4995, 48
          %s4997 = scalar_lea.vmem [#allocation2], %s4996
          %4999 = dma.done %s4994, 768
        $region68: #{tpu_custom_call.1} parent=63 // pred_fallthru
          _
      $region64: #{tpu_custom_call.1} parent=5 // pred_fallthru
        _
    $region6: #{tpu_custom_call.1} parent=1 // loop_footer
      %s22 = sadd.s32 1, %s18
    $region7: #{tpu_custom_call.1} parent=1 // loop_footer_branch
      %17 = sbr.rel target = $region3
    $region8: #{tpu_custom_call.1} parent=1 // loop_exit
      _
    %5000 = vsyncpa [#allocation3], 1
    %s5001 = scalar_lea.sflag [#allocation3], 1
    %5002 = vsyncpa %s5001, 1

</llo_original>
